<compile_context>
chip_gen: v6e
topology: v6e:2x2x1
jax: 0.10.0
libtpu: 0.0.40
codegen_flags: <defaults>
</compile_context>

<pallas_src>
import functools

import jax
import jax.numpy as jnp
from jax.experimental import pallas as pl
from jax.experimental.pallas import tpu as pltpu


# ------------------------------ kernel helpers --------------------------------
def _zero_border(pad, hp, wp, c):
    # Zero only the 1-pixel halo (interior is fully overwritten every step).
    dt = pad.dtype
    pad[0:1, :, :] = jnp.zeros((1, wp + 2, c), dt)
    pad[hp + 1:hp + 2, :, :] = jnp.zeros((1, wp + 2, c), dt)
    pad[:, 0:1, :] = jnp.zeros((hp + 2, 1, c), dt)
    pad[:, wp + 1:wp + 2, :] = jnp.zeros((hp + 2, 1, c), dt)


def _conv3x3_bn_relu(pad, w_ref, s_ref, t_ref, hp, wp, cin):
    # 3x3 SAME conv as nine accumulated shifted-window matmuls (no im2col).
    # pad  : (hp+2, wp+2, cin) bf16 scratch (zero halo, interior = activations)
    # w_ref: (9*cin, cout) bf16, tap-major (HWIO flattened)
    # s/t  : (1, cout) f32 folded BatchNorm scale / shift (+conv bias)
    acc = None
    for tap in range(9):
        dy, dx = divmod(tap, 3)
        patch = pad[dy:dy + hp, dx:dx + wp, :].reshape(hp * wp, cin)   # bf16
        w_tap = w_ref[tap * cin:(tap + 1) * cin, :]                    # bf16
        part = jnp.dot(patch, w_tap, preferred_element_type=jnp.float32)
        acc = part if acc is None else acc + part                      # f32 acc
    return jnp.maximum(acc * s_ref[...] + t_ref[...], 0.0)             # f32


# ----------------------- fully fused Down-block kernel -------------------------
def _down_fused_kernel(x_ref, w1_ref, s1_ref, t1_ref, w2_ref, s2_ref, t2_ref,
                       o_ref, pad1, pad2, *, hp, wp):
    # x_ref : (1, 2*hp, 2*wp, cin)  one input image (NHWC, bf16)
    # w1_ref: (9*cin,  cmid)        conv1 weights (bf16, HWIO tap-major)
    # w2_ref: (9*cmid, cout)        conv2 weights (bf16)
    # s*/t* : (1, c) f32            folded BN scale / shift (+conv bias)
    # o_ref : (1, hp*wp, cout) f32  lane-dense output slab
    cin = x_ref.shape[-1]
    cmid = w1_ref.shape[-1]
    cout = w2_ref.shape[-1]

    # ---- 2x2 / stride-2 max pool: full-tile load + reshape + max ------------
    x = x_ref[...].reshape(hp, 2, wp, 2, cin)
    pooled = jnp.max(jnp.max(x, axis=3), axis=1)          # (hp, wp, cin) bf16

    # ---- conv1 + BN(eval) + ReLU ---------------------------------------------
    _zero_border(pad1, hp, wp, cin)
    pad1[1:hp + 1, 1:wp + 1, :] = pooled
    y1 = _conv3x3_bn_relu(pad1, w1_ref, s1_ref, t1_ref, hp, wp, cin)  # (hp*wp, cmid) f32

    # ---- conv2 + BN(eval) + ReLU ---------------------------------------------
    _zero_border(pad2, hp, wp, cmid)
    pad2[1:hp + 1, 1:wp + 1, :] = y1.reshape(hp, wp, cmid).astype(pad2.dtype)
    y2 = _conv3x3_bn_relu(pad2, w2_ref, s2_ref, t2_ref, hp, wp, cmid)  # (hp*wp, cout) f32

    o_ref[...] = y2.reshape(1, hp * wp, cout).astype(o_ref.dtype)


# --------------------------------- glue / model ---------------------------------
def fold_bn(bias, gamma, beta, mean, var, eps=1e-5):
    inv = gamma / jnp.sqrt(var + eps)
    return inv, beta + (bias - mean) * inv


def _const_spec(shape):
    # Grid-invariant operands: single-buffer them (they never change across
    # grid steps), falling back gracefully if pipeline_mode is unavailable.
    index_map = lambda *_: (0,) * len(shape)
    try:
        return pl.BlockSpec(shape, index_map, pipeline_mode=pl.Buffered(1))
    except (TypeError, AttributeError):
        return pl.BlockSpec(shape, index_map)


def _pick_vmem_limit():
    try:
        cap = pltpu.get_tpu_info().vmem_capacity_bytes
    except Exception:
        cap = 64 * 1024 * 1024        # conservative fallback (v7x-sized)
    # ~96 MiB on v5e/v6e (128 MiB physical), ~48 MiB on v7x (64 MiB physical).
    return int(min(cap * 3 // 4, 100 * 1024 * 1024))


def down_forward(x_nchw, p):
    n, cin, h, w = x_nchw.shape
    hp, wp = h // 2, w // 2                      # MaxPool2d(2,2) floors odd sizes
    cmid = p["w1"].shape[-1]
    cout = p["w2"].shape[-1]

    x = jnp.transpose(x_nchw, (0, 2, 3, 1))      # NCHW -> NHWC
    if h % 2 or w % 2:
        x = x[:, :2 * hp, :2 * wp, :]
    x = x.astype(jnp.bfloat16)                   # bf16 matmul operands, f32 acc

    s1, t1 = fold_bn(p["b1"], p["g1"], p["bt1"], p["m1"], p["v1"])
    s2, t2 = fold_bn(p["b2"], p["g2"], p["bt2"], p["m2"], p["v2"])
    w1 = p["w1"].reshape(9 * cin, cmid).astype(jnp.bfloat16)   # HWIO, tap-major
    w2 = p["w2"].reshape(9 * cmid, cout).astype(jnp.bfloat16)

    flops = 2 * n * hp * wp * 9 * (cin * cmid + cmid * cout)
    bytes_accessed = (n * 4 * hp * wp * cin * 2          # bf16 input
                      + (9 * cin * cmid + 9 * cmid * cout) * 2
                      + (2 * cmid + 2 * cout) * 4
                      + n * hp * wp * cout * 4)           # f32 output

    kernel = functools.partial(_down_fused_kernel, hp=hp, wp=wp)
    out = pl.pallas_call(
        kernel,
        out_shape=jax.ShapeDtypeStruct((n, hp * wp, cout), jnp.float32),
        grid_spec=pltpu.PrefetchScalarGridSpec(
            num_scalar_prefetch=0,
            grid=(n,),
            in_specs=[
                pl.BlockSpec((1, 2 * hp, 2 * wp, cin), lambda i: (i, 0, 0, 0)),
                _const_spec((9 * cin, cmid)),
                _const_spec((1, cmid)),
                _const_spec((1, cmid)),
                _const_spec((9 * cmid, cout)),
                _const_spec((1, cout)),
                _const_spec((1, cout)),
            ],
            out_specs=pl.BlockSpec((1, hp * wp, cout), lambda i: (i, 0, 0)),
            scratch_shapes=[
                pltpu.VMEM((hp + 2, wp + 2, cin), jnp.bfloat16),   # padded pooled
                pltpu.VMEM((hp + 2, wp + 2, cmid), jnp.bfloat16),  # padded conv1 out
            ],
        ),
        compiler_params=pltpu.CompilerParams(
            dimension_semantics=("parallel",),
            vmem_limit_bytes=_pick_vmem_limit(),
        ),
        cost_estimate=pl.CostEstimate(flops=flops, transcendentals=0,
                                      bytes_accessed=bytes_accessed),
    )(x, w1,
      s1.reshape(1, cmid).astype(jnp.float32),
      t1.reshape(1, cmid).astype(jnp.float32),
      w2,
      s2.reshape(1, cout).astype(jnp.float32),
      t2.reshape(1, cout).astype(jnp.float32))

    out = out.reshape(n, hp, wp, cout)           # free row-major reshape
    return jnp.transpose(out, (0, 3, 1, 2))      # NHWC -> NCHW


down_forward_jit = jax.jit(down_forward)


# --------------------------------- references ----------------------------------
def ref_forward_bf16(x_nchw, p):
    # Matches the kernel's math exactly (bf16 operands, f32 accumulate,
    # folded BN, tap-ordered accumulation) -> tight tolerance.
    x = jnp.transpose(x_nchw, (0, 2, 3, 1))
    n, h, w, _ = x.shape
    hp, wp = h // 2, w // 2
    x = x[:, :2 * hp, :2 * wp, :].astype(jnp.bfloat16)
    x = x.reshape(n, hp, 2, wp, 2, x.shape[-1]).max(axis=(2, 4))

    def block(xin, wgt, b, g, bt, m, v):
        s, t = fold_bn(b, g, bt, m, v)
        hh, ww = xin.shape[1], xin.shape[2]
        co = wgt.shape[-1]
        xp = jnp.pad(xin, ((0, 0), (1, 1), (1, 1), (0, 0)))
        wb = wgt.astype(jnp.bfloat16)
        acc = jnp.zeros((n, hh, ww, co), jnp.float32)
        for dy in range(3):
            for dx in range(3):
                acc = acc + jnp.einsum(
                    "nhwc,cd->nhwd", xp[:, dy:dy + hh, dx:dx + ww, :], wb[dy, dx],
                    preferred_element_type=jnp.float32)
        y = jnp.maximum(acc * s + t, 0.0)
        return y.astype(jnp.bfloat16), y

    x16, _ = block(x, p["w1"], p["b1"], p["g1"], p["bt1"], p["m1"], p["v1"])
    _, y2 = block(x16, p["w2"], p["b2"], p["g2"], p["bt2"], p["m2"], p["v2"])
    return jnp.transpose(y2, (0, 3, 1, 2))


def ref_forward_f32(x_nchw, p):
    # Pure-f32 reference (eval-mode BN), i.e. PyTorch float32 semantics.
    x = jnp.transpose(x_nchw, (0, 2, 3, 1))
    x = jax.lax.reduce_window(x, -jnp.inf, jax.lax.max,
                              (1, 2, 2, 1), (1, 2, 2, 1), "VALID")

    def block(x, w, b, g, bt, m, v):
        y = jax.lax.conv_general_dilated(
            x, w, (1, 1), "SAME",
            dimension_numbers=("NHWC", "HWIO", "NHWC")) + b
        y = (y - m) / jnp.sqrt(v + 1e-5) * g + bt
        return jnp.maximum(y, 0.0)

    x = block(x, p["w1"], p["b1"], p["g1"], p["bt1"], p["m1"], p["v1"])
    x = block(x, p["w2"], p["b2"], p["g2"], p["bt2"], p["m2"], p["v2"])
    return jnp.transpose(x, (0, 3, 1, 2))


def make_params(key, in_ch, out_ch):
    ks = jax.random.split(key, 8)
    f32 = jnp.float32
    return {
        "w1": 0.1 * jax.random.normal(ks[0], (3, 3, in_ch, out_ch), f32),
        "b1": 0.1 * jax.random.normal(ks[1], (out_ch,), f32),
        "g1": 1.0 + 0.1 * jnp.arange(out_ch, dtype=f32),
        "bt1": 0.05 * jnp.arange(out_ch, dtype=f32),
        "m1": 0.05 * jax.random.normal(ks[2], (out_ch,), f32),
        "v1": 1.0 + 0.1 * jax.random.uniform(ks[3], (out_ch,), f32),
        "w2": 0.1 * jax.random.normal(ks[4], (3, 3, out_ch, out_ch), f32),
        "b2": 0.1 * jax.random.normal(ks[5], (out_ch,), f32),
        "g2": 1.0 + 0.05 * jnp.arange(out_ch, dtype=f32),
        "bt2": -0.02 * jnp.arange(out_ch, dtype=f32),
        "m2": 0.05 * jax.random.normal(ks[6], (out_ch,), f32),
        "v2": 1.0 + 0.1 * jax.random.uniform(ks[7], (out_ch,), f32),
    }


if __name__ == "__main__":
    in_ch, out_ch = 4, 8
    key = jax.random.PRNGKey(0)
    kx, kp = jax.random.split(key)
    x = jax.random.normal(kx, (2, in_ch, 16, 16), jnp.float32)   # NCHW like PyTorch
    params = make_params(kp, in_ch, out_ch)

    out = jax.block_until_ready(down_forward_jit(x, params))
    assert out.shape == (2, out_ch, 8, 8), out.shape
    assert out.dtype == jnp.float32, out.dtype

    # Tight check vs. a reference using the same bf16-operand / f32-accumulate math.
    ref_t = jax.block_until_ready(ref_forward_bf16(x, params))
    assert jnp.allclose(out, ref_t, atol=2e-3, rtol=2e-3), float(
        jnp.max(jnp.abs(out - ref_t)))

    # Loose sanity check vs. the pure-f32 (PyTorch-semantics) reference:
    # documents the bf16-operand numerics tradeoff.
    ref_f = jax.block_until_ready(ref_forward_f32(x, params))
    assert jnp.allclose(out, ref_f, atol=1e-1, rtol=1e-1), float(
        jnp.max(jnp.abs(out - ref_f)))

    print("KERNEL_OK")
</pallas_src>

<mosaic_0001>
module attributes {stable_mosaic.version = 11 : i64} {
  func.func @_down_fused_kernel(%arg0: i32, %arg1: memref<1x16x16x4xbf16, #tpu.memory_space<vmem>>, %arg2: memref<36x8xbf16, #tpu.memory_space<vmem>>, %arg3: memref<1x8xf32, #tpu.memory_space<vmem>>, %arg4: memref<1x8xf32, #tpu.memory_space<vmem>>, %arg5: memref<72x8xbf16, #tpu.memory_space<vmem>>, %arg6: memref<1x8xf32, #tpu.memory_space<vmem>>, %arg7: memref<1x8xf32, #tpu.memory_space<vmem>>, %arg8: memref<1x64x8xf32, #tpu.memory_space<vmem>>, %arg9: memref<10x10x4xbf16, #tpu.memory_space<vmem>>, %arg10: memref<10x10x8xbf16, #tpu.memory_space<vmem>>) attributes {dimension_semantics = [#tpu.dimension_semantics<parallel>], iteration_bounds = array<i64: 2>, scalar_prefetch = 0 : i64, scratch_operands = 2 : i64, tpu.core_type = #tpu.core_type<tc>, window_params = [{transform_indices = @transform_0, window_bounds = array<i64: 1, 16, 16, 4>}, {pipeline_mode = #tpu.pipeline_mode<synchronous>, transform_indices = @transform_1, window_bounds = array<i64: 36, 8>}, {pipeline_mode = #tpu.pipeline_mode<synchronous>, transform_indices = @transform_2, window_bounds = array<i64: 1, 8>}, {pipeline_mode = #tpu.pipeline_mode<synchronous>, transform_indices = @transform_3, window_bounds = array<i64: 1, 8>}, {pipeline_mode = #tpu.pipeline_mode<synchronous>, transform_indices = @transform_4, window_bounds = array<i64: 72, 8>}, {pipeline_mode = #tpu.pipeline_mode<synchronous>, transform_indices = @transform_5, window_bounds = array<i64: 1, 8>}, {pipeline_mode = #tpu.pipeline_mode<synchronous>, transform_indices = @transform_6, window_bounds = array<i64: 1, 8>}, {transform_indices = @transform_7, window_bounds = array<i64: 1, 64, 8>}]} {
    %c0 = arith.constant 0 : index
    %c0_0 = arith.constant 0 : index
    %c0_1 = arith.constant 0 : index
    %c0_2 = arith.constant 0 : index
    %0 = vector.load %arg1[%c0, %c0_0, %c0_1, %c0_2] : memref<1x16x16x4xbf16, #tpu.memory_space<vmem>>, vector<1x16x16x4xbf16>
    %1 = vector.shape_cast %0 : vector<1x16x16x4xbf16> to vector<8x2x8x2x4xbf16>
    %cst = arith.constant dense<0xFF80> : vector<8x2x8x4xbf16>
    %2 = vector.multi_reduction <maximumf>, %1, %cst [3] : vector<8x2x8x2x4xbf16> to vector<8x2x8x4xbf16>
    %cst_3 = arith.constant dense<0xFF80> : vector<8x8x4xbf16>
    %3 = vector.multi_reduction <maximumf>, %2, %cst_3 [1] : vector<8x2x8x4xbf16> to vector<8x8x4xbf16>
    %cst_4 = arith.constant 0.000000e+00 : bf16
    %4 = vector.broadcast %cst_4 : bf16 to vector<1x10x4xbf16>
    %c0_5 = arith.constant 0 : index
    %c0_6 = arith.constant 0 : index
    %c0_7 = arith.constant 0 : index
    %5 = vector.load %arg9[%c0_5, %c0_6, %c0_7] : memref<10x10x4xbf16, #tpu.memory_space<vmem>>, vector<1x10x4xbf16>
    tpu.vector_store %arg9[%c0_5, %c0_6, %c0_7], %4 {strides = array<i32>} : memref<10x10x4xbf16, #tpu.memory_space<vmem>>, vector<1x10x4xbf16>,
    %cst_8 = arith.constant 0.000000e+00 : bf16
    %6 = vector.broadcast %cst_8 : bf16 to vector<1x10x4xbf16>
    %c9 = arith.constant 9 : index
    %c0_9 = arith.constant 0 : index
    %c0_10 = arith.constant 0 : index
    %7 = vector.load %arg9[%c9, %c0_9, %c0_10] : memref<10x10x4xbf16, #tpu.memory_space<vmem>>, vector<1x10x4xbf16>
    tpu.vector_store %arg9[%c9, %c0_9, %c0_10], %6 {strides = array<i32>} : memref<10x10x4xbf16, #tpu.memory_space<vmem>>, vector<1x10x4xbf16>,
    %cst_11 = arith.constant 0.000000e+00 : bf16
    %8 = vector.broadcast %cst_11 : bf16 to vector<10x1x4xbf16>
    %c0_12 = arith.constant 0 : index
    %c0_13 = arith.constant 0 : index
    %c0_14 = arith.constant 0 : index
    %9 = vector.load %arg9[%c0_12, %c0_13, %c0_14] : memref<10x10x4xbf16, #tpu.memory_space<vmem>>, vector<10x1x4xbf16>
    tpu.vector_store %arg9[%c0_12, %c0_13, %c0_14], %8 {strides = array<i32>} : memref<10x10x4xbf16, #tpu.memory_space<vmem>>, vector<10x1x4xbf16>,
    %cst_15 = arith.constant 0.000000e+00 : bf16
    %10 = vector.broadcast %cst_15 : bf16 to vector<10x1x4xbf16>
    %c0_16 = arith.constant 0 : index
    %c9_17 = arith.constant 9 : index
    %c0_18 = arith.constant 0 : index
    %11 = vector.load %arg9[%c0_16, %c9_17, %c0_18] : memref<10x10x4xbf16, #tpu.memory_space<vmem>>, vector<10x1x4xbf16>
    tpu.vector_store %arg9[%c0_16, %c9_17, %c0_18], %10 {strides = array<i32>} : memref<10x10x4xbf16, #tpu.memory_space<vmem>>, vector<10x1x4xbf16>,
    %c1 = arith.constant 1 : index
    %c1_19 = arith.constant 1 : index
    %c0_20 = arith.constant 0 : index
    %12 = vector.load %arg9[%c1, %c1_19, %c0_20] : memref<10x10x4xbf16, #tpu.memory_space<vmem>>, vector<8x8x4xbf16>
    tpu.vector_store %arg9[%c1, %c1_19, %c0_20], %3 {strides = array<i32>} : memref<10x10x4xbf16, #tpu.memory_space<vmem>>, vector<8x8x4xbf16>,
    %c0_21 = arith.constant 0 : index
    %c0_22 = arith.constant 0 : index
    %c0_23 = arith.constant 0 : index
    %13 = vector.load %arg9[%c0_21, %c0_22, %c0_23] : memref<10x10x4xbf16, #tpu.memory_space<vmem>>, vector<8x8x4xbf16>
    %14 = vector.shape_cast %13 : vector<8x8x4xbf16> to vector<64x4xbf16>
    %c0_24 = arith.constant 0 : index
    %c0_25 = arith.constant 0 : index
    %15 = vector.load %arg2[%c0_24, %c0_25] : memref<36x8xbf16, #tpu.memory_space<vmem>>, vector<4x8xbf16>
    %cst_26 = arith.constant dense<0.000000e+00> : vector<64x8xf32>
    %16 = tpu.matmul %14, %15, %cst_26 {dimension_numbers = #tpu.dot_dimension_numbers<[1], [0], [0], [1], [0, 0, 1, 1], [], []>} : vector<64x4xbf16>, vector<4x8xbf16>, vector<64x8xf32> -> vector<64x8xf32>
    %c0_27 = arith.constant 0 : index
    %c1_28 = arith.constant 1 : index
    %c0_29 = arith.constant 0 : index
    %17 = vector.load %arg9[%c0_27, %c1_28, %c0_29] : memref<10x10x4xbf16, #tpu.memory_space<vmem>>, vector<8x8x4xbf16>
    %18 = vector.shape_cast %17 : vector<8x8x4xbf16> to vector<64x4xbf16>
    %c4 = arith.constant 4 : index
    %c0_30 = arith.constant 0 : index
    %19 = vector.load %arg2[%c4, %c0_30] : memref<36x8xbf16, #tpu.memory_space<vmem>>, vector<4x8xbf16>
    %cst_31 = arith.constant dense<0.000000e+00> : vector<64x8xf32>
    %20 = tpu.matmul %18, %19, %cst_31 {dimension_numbers = #tpu.dot_dimension_numbers<[1], [0], [0], [1], [0, 0, 1, 1], [], []>} : vector<64x4xbf16>, vector<4x8xbf16>, vector<64x8xf32> -> vector<64x8xf32>
    %21 = arith.addf %16, %20 : vector<64x8xf32>
    %c0_32 = arith.constant 0 : index
    %c2 = arith.constant 2 : index
    %c0_33 = arith.constant 0 : index
    %22 = vector.load %arg9[%c0_32, %c2, %c0_33] : memref<10x10x4xbf16, #tpu.memory_space<vmem>>, vector<8x8x4xbf16>
    %23 = vector.shape_cast %22 : vector<8x8x4xbf16> to vector<64x4xbf16>
    %c8 = arith.constant 8 : index
    %c0_34 = arith.constant 0 : index
    %24 = vector.load %arg2[%c8, %c0_34] : memref<36x8xbf16, #tpu.memory_space<vmem>>, vector<4x8xbf16>
    %cst_35 = arith.constant dense<0.000000e+00> : vector<64x8xf32>
    %25 = tpu.matmul %23, %24, %cst_35 {dimension_numbers = #tpu.dot_dimension_numbers<[1], [0], [0], [1], [0, 0, 1, 1], [], []>} : vector<64x4xbf16>, vector<4x8xbf16>, vector<64x8xf32> -> vector<64x8xf32>
    %26 = arith.addf %21, %25 : vector<64x8xf32>
    %c1_36 = arith.constant 1 : index
    %c0_37 = arith.constant 0 : index
    %c0_38 = arith.constant 0 : index
    %27 = vector.load %arg9[%c1_36, %c0_37, %c0_38] : memref<10x10x4xbf16, #tpu.memory_space<vmem>>, vector<8x8x4xbf16>
    %28 = vector.shape_cast %27 : vector<8x8x4xbf16> to vector<64x4xbf16>
    %c12 = arith.constant 12 : index
    %c0_39 = arith.constant 0 : index
    %29 = vector.load %arg2[%c12, %c0_39] : memref<36x8xbf16, #tpu.memory_space<vmem>>, vector<4x8xbf16>
    %cst_40 = arith.constant dense<0.000000e+00> : vector<64x8xf32>
    %30 = tpu.matmul %28, %29, %cst_40 {dimension_numbers = #tpu.dot_dimension_numbers<[1], [0], [0], [1], [0, 0, 1, 1], [], []>} : vector<64x4xbf16>, vector<4x8xbf16>, vector<64x8xf32> -> vector<64x8xf32>
    %31 = arith.addf %26, %30 : vector<64x8xf32>
    %c1_41 = arith.constant 1 : index
    %c1_42 = arith.constant 1 : index
    %c0_43 = arith.constant 0 : index
    %32 = vector.load %arg9[%c1_41, %c1_42, %c0_43] : memref<10x10x4xbf16, #tpu.memory_space<vmem>>, vector<8x8x4xbf16>
    %33 = vector.shape_cast %32 : vector<8x8x4xbf16> to vector<64x4xbf16>
    %c16 = arith.constant 16 : index
    %c0_44 = arith.constant 0 : index
    %34 = vector.load %arg2[%c16, %c0_44] : memref<36x8xbf16, #tpu.memory_space<vmem>>, vector<4x8xbf16>
    %cst_45 = arith.constant dense<0.000000e+00> : vector<64x8xf32>
    %35 = tpu.matmul %33, %34, %cst_45 {dimension_numbers = #tpu.dot_dimension_numbers<[1], [0], [0], [1], [0, 0, 1, 1], [], []>} : vector<64x4xbf16>, vector<4x8xbf16>, vector<64x8xf32> -> vector<64x8xf32>
    %36 = arith.addf %31, %35 : vector<64x8xf32>
    %c1_46 = arith.constant 1 : index
    %c2_47 = arith.constant 2 : index
    %c0_48 = arith.constant 0 : index
    %37 = vector.load %arg9[%c1_46, %c2_47, %c0_48] : memref<10x10x4xbf16, #tpu.memory_space<vmem>>, vector<8x8x4xbf16>
    %38 = vector.shape_cast %37 : vector<8x8x4xbf16> to vector<64x4xbf16>
    %c20 = arith.constant 20 : index
    %c0_49 = arith.constant 0 : index
    %39 = vector.load %arg2[%c20, %c0_49] : memref<36x8xbf16, #tpu.memory_space<vmem>>, vector<4x8xbf16>
    %cst_50 = arith.constant dense<0.000000e+00> : vector<64x8xf32>
    %40 = tpu.matmul %38, %39, %cst_50 {dimension_numbers = #tpu.dot_dimension_numbers<[1], [0], [0], [1], [0, 0, 1, 1], [], []>} : vector<64x4xbf16>, vector<4x8xbf16>, vector<64x8xf32> -> vector<64x8xf32>
    %41 = arith.addf %36, %40 : vector<64x8xf32>
    %c2_51 = arith.constant 2 : index
    %c0_52 = arith.constant 0 : index
    %c0_53 = arith.constant 0 : index
    %42 = vector.load %arg9[%c2_51, %c0_52, %c0_53] : memref<10x10x4xbf16, #tpu.memory_space<vmem>>, vector<8x8x4xbf16>
    %43 = vector.shape_cast %42 : vector<8x8x4xbf16> to vector<64x4xbf16>
    %c24 = arith.constant 24 : index
    %c0_54 = arith.constant 0 : index
    %44 = vector.load %arg2[%c24, %c0_54] : memref<36x8xbf16, #tpu.memory_space<vmem>>, vector<4x8xbf16>
    %cst_55 = arith.constant dense<0.000000e+00> : vector<64x8xf32>
    %45 = tpu.matmul %43, %44, %cst_55 {dimension_numbers = #tpu.dot_dimension_numbers<[1], [0], [0], [1], [0, 0, 1, 1], [], []>} : vector<64x4xbf16>, vector<4x8xbf16>, vector<64x8xf32> -> vector<64x8xf32>
    %46 = arith.addf %41, %45 : vector<64x8xf32>
    %c2_56 = arith.constant 2 : index
    %c1_57 = arith.constant 1 : index
    %c0_58 = arith.constant 0 : index
    %47 = vector.load %arg9[%c2_56, %c1_57, %c0_58] : memref<10x10x4xbf16, #tpu.memory_space<vmem>>, vector<8x8x4xbf16>
    %48 = vector.shape_cast %47 : vector<8x8x4xbf16> to vector<64x4xbf16>
    %c28 = arith.constant 28 : index
    %c0_59 = arith.constant 0 : index
    %49 = vector.load %arg2[%c28, %c0_59] : memref<36x8xbf16, #tpu.memory_space<vmem>>, vector<4x8xbf16>
    %cst_60 = arith.constant dense<0.000000e+00> : vector<64x8xf32>
    %50 = tpu.matmul %48, %49, %cst_60 {dimension_numbers = #tpu.dot_dimension_numbers<[1], [0], [0], [1], [0, 0, 1, 1], [], []>} : vector<64x4xbf16>, vector<4x8xbf16>, vector<64x8xf32> -> vector<64x8xf32>
    %51 = arith.addf %46, %50 : vector<64x8xf32>
    %c2_61 = arith.constant 2 : index
    %c2_62 = arith.constant 2 : index
    %c0_63 = arith.constant 0 : index
    %52 = vector.load %arg9[%c2_61, %c2_62, %c0_63] : memref<10x10x4xbf16, #tpu.memory_space<vmem>>, vector<8x8x4xbf16>
    %53 = vector.shape_cast %52 : vector<8x8x4xbf16> to vector<64x4xbf16>
    %c32 = arith.constant 32 : index
    %c0_64 = arith.constant 0 : index
    %54 = vector.load %arg2[%c32, %c0_64] : memref<36x8xbf16, #tpu.memory_space<vmem>>, vector<4x8xbf16>
    %cst_65 = arith.constant dense<0.000000e+00> : vector<64x8xf32>
    %55 = tpu.matmul %53, %54, %cst_65 {dimension_numbers = #tpu.dot_dimension_numbers<[1], [0], [0], [1], [0, 0, 1, 1], [], []>} : vector<64x4xbf16>, vector<4x8xbf16>, vector<64x8xf32> -> vector<64x8xf32>
    %56 = arith.addf %51, %55 : vector<64x8xf32>
    %c0_66 = arith.constant 0 : index
    %c0_67 = arith.constant 0 : index
    %57 = vector.load %arg3[%c0_66, %c0_67] : memref<1x8xf32, #tpu.memory_space<vmem>>, vector<1x8xf32>
    %58 = vector.broadcast %57 : vector<1x8xf32> to vector<64x8xf32>
    %59 = arith.mulf %56, %58 : vector<64x8xf32>
    %c0_68 = arith.constant 0 : index
    %c0_69 = arith.constant 0 : index
    %60 = vector.load %arg4[%c0_68, %c0_69] : memref<1x8xf32, #tpu.memory_space<vmem>>, vector<1x8xf32>
    %61 = vector.broadcast %60 : vector<1x8xf32> to vector<64x8xf32>
    %62 = arith.addf %59, %61 : vector<64x8xf32>
    %cst_70 = arith.constant 0.000000e+00 : f32
    %63 = vector.broadcast %cst_70 : f32 to vector<64x8xf32>
    %64 = arith.maximumf %62, %63 : vector<64x8xf32>
    %cst_71 = arith.constant 0.000000e+00 : bf16
    %65 = vector.broadcast %cst_71 : bf16 to vector<1x10x8xbf16>
    %c0_72 = arith.constant 0 : index
    %c0_73 = arith.constant 0 : index
    %c0_74 = arith.constant 0 : index
    %66 = vector.load %arg10[%c0_72, %c0_73, %c0_74] : memref<10x10x8xbf16, #tpu.memory_space<vmem>>, vector<1x10x8xbf16>
    tpu.vector_store %arg10[%c0_72, %c0_73, %c0_74], %65 {strides = array<i32>} : memref<10x10x8xbf16, #tpu.memory_space<vmem>>, vector<1x10x8xbf16>,
    %cst_75 = arith.constant 0.000000e+00 : bf16
    %67 = vector.broadcast %cst_75 : bf16 to vector<1x10x8xbf16>
    %c9_76 = arith.constant 9 : index
    %c0_77 = arith.constant 0 : index
    %c0_78 = arith.constant 0 : index
    %68 = vector.load %arg10[%c9_76, %c0_77, %c0_78] : memref<10x10x8xbf16, #tpu.memory_space<vmem>>, vector<1x10x8xbf16>
    tpu.vector_store %arg10[%c9_76, %c0_77, %c0_78], %67 {strides = array<i32>} : memref<10x10x8xbf16, #tpu.memory_space<vmem>>, vector<1x10x8xbf16>,
    %cst_79 = arith.constant 0.000000e+00 : bf16
    %69 = vector.broadcast %cst_79 : bf16 to vector<10x1x8xbf16>
    %c0_80 = arith.constant 0 : index
    %c0_81 = arith.constant 0 : index
    %c0_82 = arith.constant 0 : index
    %70 = vector.load %arg10[%c0_80, %c0_81, %c0_82] : memref<10x10x8xbf16, #tpu.memory_space<vmem>>, vector<10x1x8xbf16>
    tpu.vector_store %arg10[%c0_80, %c0_81, %c0_82], %69 {strides = array<i32>} : memref<10x10x8xbf16, #tpu.memory_space<vmem>>, vector<10x1x8xbf16>,
    %cst_83 = arith.constant 0.000000e+00 : bf16
    %71 = vector.broadcast %cst_83 : bf16 to vector<10x1x8xbf16>
    %c0_84 = arith.constant 0 : index
    %c9_85 = arith.constant 9 : index
    %c0_86 = arith.constant 0 : index
    %72 = vector.load %arg10[%c0_84, %c9_85, %c0_86] : memref<10x10x8xbf16, #tpu.memory_space<vmem>>, vector<10x1x8xbf16>
    tpu.vector_store %arg10[%c0_84, %c9_85, %c0_86], %71 {strides = array<i32>} : memref<10x10x8xbf16, #tpu.memory_space<vmem>>, vector<10x1x8xbf16>,
    %73 = vector.shape_cast %64 : vector<64x8xf32> to vector<8x8x8xf32>
    %74 = arith.truncf %73 : vector<8x8x8xf32> to vector<8x8x8xbf16>
    %c1_87 = arith.constant 1 : index
    %c1_88 = arith.constant 1 : index
    %c0_89 = arith.constant 0 : index
    %75 = vector.load %arg10[%c1_87, %c1_88, %c0_89] : memref<10x10x8xbf16, #tpu.memory_space<vmem>>, vector<8x8x8xbf16>
    tpu.vector_store %arg10[%c1_87, %c1_88, %c0_89], %74 {strides = array<i32>} : memref<10x10x8xbf16, #tpu.memory_space<vmem>>, vector<8x8x8xbf16>,
    %c0_90 = arith.constant 0 : index
    %c0_91 = arith.constant 0 : index
    %c0_92 = arith.constant 0 : index
    %76 = vector.load %arg10[%c0_90, %c0_91, %c0_92] : memref<10x10x8xbf16, #tpu.memory_space<vmem>>, vector<8x8x8xbf16>
    %77 = vector.shape_cast %76 : vector<8x8x8xbf16> to vector<64x8xbf16>
    %c0_93 = arith.constant 0 : index
    %c0_94 = arith.constant 0 : index
    %78 = vector.load %arg5[%c0_93, %c0_94] : memref<72x8xbf16, #tpu.memory_space<vmem>>, vector<8x8xbf16>
    %cst_95 = arith.constant dense<0.000000e+00> : vector<64x8xf32>
    %79 = tpu.matmul %77, %78, %cst_95 {dimension_numbers = #tpu.dot_dimension_numbers<[1], [0], [0], [1], [0, 0, 1, 1], [], []>} : vector<64x8xbf16>, vector<8x8xbf16>, vector<64x8xf32> -> vector<64x8xf32>
    %c0_96 = arith.constant 0 : index
    %c1_97 = arith.constant 1 : index
    %c0_98 = arith.constant 0 : index
    %80 = vector.load %arg10[%c0_96, %c1_97, %c0_98] : memref<10x10x8xbf16, #tpu.memory_space<vmem>>, vector<8x8x8xbf16>
    %81 = vector.shape_cast %80 : vector<8x8x8xbf16> to vector<64x8xbf16>
    %c8_99 = arith.constant 8 : index
    %c0_100 = arith.constant 0 : index
    %82 = vector.load %arg5[%c8_99, %c0_100] : memref<72x8xbf16, #tpu.memory_space<vmem>>, vector<8x8xbf16>
    %cst_101 = arith.constant dense<0.000000e+00> : vector<64x8xf32>
    %83 = tpu.matmul %81, %82, %cst_101 {dimension_numbers = #tpu.dot_dimension_numbers<[1], [0], [0], [1], [0, 0, 1, 1], [], []>} : vector<64x8xbf16>, vector<8x8xbf16>, vector<64x8xf32> -> vector<64x8xf32>
    %84 = arith.addf %79, %83 : vector<64x8xf32>
    %c0_102 = arith.constant 0 : index
    %c2_103 = arith.constant 2 : index
    %c0_104 = arith.constant 0 : index
    %85 = vector.load %arg10[%c0_102, %c2_103, %c0_104] : memref<10x10x8xbf16, #tpu.memory_space<vmem>>, vector<8x8x8xbf16>
    %86 = vector.shape_cast %85 : vector<8x8x8xbf16> to vector<64x8xbf16>
    %c16_105 = arith.constant 16 : index
    %c0_106 = arith.constant 0 : index
    %87 = vector.load %arg5[%c16_105, %c0_106] : memref<72x8xbf16, #tpu.memory_space<vmem>>, vector<8x8xbf16>
    %cst_107 = arith.constant dense<0.000000e+00> : vector<64x8xf32>
    %88 = tpu.matmul %86, %87, %cst_107 {dimension_numbers = #tpu.dot_dimension_numbers<[1], [0], [0], [1], [0, 0, 1, 1], [], []>} : vector<64x8xbf16>, vector<8x8xbf16>, vector<64x8xf32> -> vector<64x8xf32>
    %89 = arith.addf %84, %88 : vector<64x8xf32>
    %c1_108 = arith.constant 1 : index
    %c0_109 = arith.constant 0 : index
    %c0_110 = arith.constant 0 : index
    %90 = vector.load %arg10[%c1_108, %c0_109, %c0_110] : memref<10x10x8xbf16, #tpu.memory_space<vmem>>, vector<8x8x8xbf16>
    %91 = vector.shape_cast %90 : vector<8x8x8xbf16> to vector<64x8xbf16>
    %c24_111 = arith.constant 24 : index
    %c0_112 = arith.constant 0 : index
    %92 = vector.load %arg5[%c24_111, %c0_112] : memref<72x8xbf16, #tpu.memory_space<vmem>>, vector<8x8xbf16>
    %cst_113 = arith.constant dense<0.000000e+00> : vector<64x8xf32>
    %93 = tpu.matmul %91, %92, %cst_113 {dimension_numbers = #tpu.dot_dimension_numbers<[1], [0], [0], [1], [0, 0, 1, 1], [], []>} : vector<64x8xbf16>, vector<8x8xbf16>, vector<64x8xf32> -> vector<64x8xf32>
    %94 = arith.addf %89, %93 : vector<64x8xf32>
    %c1_114 = arith.constant 1 : index
    %c1_115 = arith.constant 1 : index
    %c0_116 = arith.constant 0 : index
    %95 = vector.load %arg10[%c1_114, %c1_115, %c0_116] : memref<10x10x8xbf16, #tpu.memory_space<vmem>>, vector<8x8x8xbf16>
    %96 = vector.shape_cast %95 : vector<8x8x8xbf16> to vector<64x8xbf16>
    %c32_117 = arith.constant 32 : index
    %c0_118 = arith.constant 0 : index
    %97 = vector.load %arg5[%c32_117, %c0_118] : memref<72x8xbf16, #tpu.memory_space<vmem>>, vector<8x8xbf16>
    %cst_119 = arith.constant dense<0.000000e+00> : vector<64x8xf32>
    %98 = tpu.matmul %96, %97, %cst_119 {dimension_numbers = #tpu.dot_dimension_numbers<[1], [0], [0], [1], [0, 0, 1, 1], [], []>} : vector<64x8xbf16>, vector<8x8xbf16>, vector<64x8xf32> -> vector<64x8xf32>
    %99 = arith.addf %94, %98 : vector<64x8xf32>
    %c1_120 = arith.constant 1 : index
    %c2_121 = arith.constant 2 : index
    %c0_122 = arith.constant 0 : index
    %100 = vector.load %arg10[%c1_120, %c2_121, %c0_122] : memref<10x10x8xbf16, #tpu.memory_space<vmem>>, vector<8x8x8xbf16>
    %101 = vector.shape_cast %100 : vector<8x8x8xbf16> to vector<64x8xbf16>
    %c40 = arith.constant 40 : index
    %c0_123 = arith.constant 0 : index
    %102 = vector.load %arg5[%c40, %c0_123] : memref<72x8xbf16, #tpu.memory_space<vmem>>, vector<8x8xbf16>
    %cst_124 = arith.constant dense<0.000000e+00> : vector<64x8xf32>
    %103 = tpu.matmul %101, %102, %cst_124 {dimension_numbers = #tpu.dot_dimension_numbers<[1], [0], [0], [1], [0, 0, 1, 1], [], []>} : vector<64x8xbf16>, vector<8x8xbf16>, vector<64x8xf32> -> vector<64x8xf32>
    %104 = arith.addf %99, %103 : vector<64x8xf32>
    %c2_125 = arith.constant 2 : index
    %c0_126 = arith.constant 0 : index
    %c0_127 = arith.constant 0 : index
    %105 = vector.load %arg10[%c2_125, %c0_126, %c0_127] : memref<10x10x8xbf16, #tpu.memory_space<vmem>>, vector<8x8x8xbf16>
    %106 = vector.shape_cast %105 : vector<8x8x8xbf16> to vector<64x8xbf16>
    %c48 = arith.constant 48 : index
    %c0_128 = arith.constant 0 : index
    %107 = vector.load %arg5[%c48, %c0_128] : memref<72x8xbf16, #tpu.memory_space<vmem>>, vector<8x8xbf16>
    %cst_129 = arith.constant dense<0.000000e+00> : vector<64x8xf32>
    %108 = tpu.matmul %106, %107, %cst_129 {dimension_numbers = #tpu.dot_dimension_numbers<[1], [0], [0], [1], [0, 0, 1, 1], [], []>} : vector<64x8xbf16>, vector<8x8xbf16>, vector<64x8xf32> -> vector<64x8xf32>
    %109 = arith.addf %104, %108 : vector<64x8xf32>
    %c2_130 = arith.constant 2 : index
    %c1_131 = arith.constant 1 : index
    %c0_132 = arith.constant 0 : index
    %110 = vector.load %arg10[%c2_130, %c1_131, %c0_132] : memref<10x10x8xbf16, #tpu.memory_space<vmem>>, vector<8x8x8xbf16>
    %111 = vector.shape_cast %110 : vector<8x8x8xbf16> to vector<64x8xbf16>
    %c56 = arith.constant 56 : index
    %c0_133 = arith.constant 0 : index
    %112 = vector.load %arg5[%c56, %c0_133] : memref<72x8xbf16, #tpu.memory_space<vmem>>, vector<8x8xbf16>
    %cst_134 = arith.constant dense<0.000000e+00> : vector<64x8xf32>
    %113 = tpu.matmul %111, %112, %cst_134 {dimension_numbers = #tpu.dot_dimension_numbers<[1], [0], [0], [1], [0, 0, 1, 1], [], []>} : vector<64x8xbf16>, vector<8x8xbf16>, vector<64x8xf32> -> vector<64x8xf32>
    %114 = arith.addf %109, %113 : vector<64x8xf32>
    %c2_135 = arith.constant 2 : index
    %c2_136 = arith.constant 2 : index
    %c0_137 = arith.constant 0 : index
    %115 = vector.load %arg10[%c2_135, %c2_136, %c0_137] : memref<10x10x8xbf16, #tpu.memory_space<vmem>>, vector<8x8x8xbf16>
    %116 = vector.shape_cast %115 : vector<8x8x8xbf16> to vector<64x8xbf16>
    %c64 = arith.constant 64 : index
    %c0_138 = arith.constant 0 : index
    %117 = vector.load %arg5[%c64, %c0_138] : memref<72x8xbf16, #tpu.memory_space<vmem>>, vector<8x8xbf16>
    %cst_139 = arith.constant dense<0.000000e+00> : vector<64x8xf32>
    %118 = tpu.matmul %116, %117, %cst_139 {dimension_numbers = #tpu.dot_dimension_numbers<[1], [0], [0], [1], [0, 0, 1, 1], [], []>} : vector<64x8xbf16>, vector<8x8xbf16>, vector<64x8xf32> -> vector<64x8xf32>
    %119 = arith.addf %114, %118 : vector<64x8xf32>
    %c0_140 = arith.constant 0 : index
    %c0_141 = arith.constant 0 : index
    %120 = vector.load %arg6[%c0_140, %c0_141] : memref<1x8xf32, #tpu.memory_space<vmem>>, vector<1x8xf32>
    %121 = vector.broadcast %120 : vector<1x8xf32> to vector<64x8xf32>
    %122 = arith.mulf %119, %121 : vector<64x8xf32>
    %c0_142 = arith.constant 0 : index
    %c0_143 = arith.constant 0 : index
    %123 = vector.load %arg7[%c0_142, %c0_143] : memref<1x8xf32, #tpu.memory_space<vmem>>, vector<1x8xf32>
    %124 = vector.broadcast %123 : vector<1x8xf32> to vector<64x8xf32>
    %125 = arith.addf %122, %124 : vector<64x8xf32>
    %cst_144 = arith.constant 0.000000e+00 : f32
    %126 = vector.broadcast %cst_144 : f32 to vector<64x8xf32>
    %127 = arith.maximumf %125, %126 : vector<64x8xf32>
    %128 = vector.shape_cast %127 : vector<64x8xf32> to vector<1x64x8xf32>
    %c0_145 = arith.constant 0 : index
    %c0_146 = arith.constant 0 : index
    %c0_147 = arith.constant 0 : index
    %129 = vector.load %arg8[%c0_145, %c0_146, %c0_147] : memref<1x64x8xf32, #tpu.memory_space<vmem>>, vector<1x64x8xf32>
    tpu.vector_store %arg8[%c0_145, %c0_146, %c0_147], %128 {strides = array<i32>} : memref<1x64x8xf32, #tpu.memory_space<vmem>>, vector<1x64x8xf32>,
    return
  }
  func.func @transform_0(%arg0: i32) -> (i32, i32, i32, i32) {
    %c0_i32 = arith.constant 0 : i32
    %c0_i32_0 = arith.constant 0 : i32
    %c0_i32_1 = arith.constant 0 : i32
    %c0_i32_2 = arith.constant 0 : i32
    return %arg0, %c0_i32, %c0_i32_0, %c0_i32_1 : i32, i32, i32, i32
  }
  func.func @transform_1(%arg0: i32) -> (i32, i32) {
    %c0_i32 = arith.constant 0 : i32
    %c0_i32_0 = arith.constant 0 : i32
    %c0_i32_1 = arith.constant 0 : i32
    return %c0_i32, %c0_i32_0 : i32, i32
  }
  func.func @transform_2(%arg0: i32) -> (i32, i32) {
    %c0_i32 = arith.constant 0 : i32
    %c0_i32_0 = arith.constant 0 : i32
    %c0_i32_1 = arith.constant 0 : i32
    return %c0_i32, %c0_i32_0 : i32, i32
  }
  func.func @transform_3(%arg0: i32) -> (i32, i32) {
    %c0_i32 = arith.constant 0 : i32
    %c0_i32_0 = arith.constant 0 : i32
    %c0_i32_1 = arith.constant 0 : i32
    return %c0_i32, %c0_i32_0 : i32, i32
  }
  func.func @transform_4(%arg0: i32) -> (i32, i32) {
    %c0_i32 = arith.constant 0 : i32
    %c0_i32_0 = arith.constant 0 : i32
    %c0_i32_1 = arith.constant 0 : i32
    return %c0_i32, %c0_i32_0 : i32, i32
  }
  func.func @transform_5(%arg0: i32) -> (i32, i32) {
    %c0_i32 = arith.constant 0 : i32
    %c0_i32_0 = arith.constant 0 : i32
    %c0_i32_1 = arith.constant 0 : i32
    return %c0_i32, %c0_i32_0 : i32, i32
  }
  func.func @transform_6(%arg0: i32) -> (i32, i32) {
    %c0_i32 = arith.constant 0 : i32
    %c0_i32_0 = arith.constant 0 : i32
    %c0_i32_1 = arith.constant 0 : i32
    return %c0_i32, %c0_i32_0 : i32, i32
  }
  func.func @transform_7(%arg0: i32) -> (i32, i32, i32) {
    %c0_i32 = arith.constant 0 : i32
    %c0_i32_0 = arith.constant 0 : i32
    %c0_i32_1 = arith.constant 0 : i32
    return %arg0, %c0_i32, %c0_i32_0 : i32, i32, i32
  }
}

</mosaic_0001>

<llo_original>
// kernel: down_forward.1
$region0: #{down_forward.1}
  #allocation0 [shape = 'u32[]', space=smem, size = 0x4, offset = 0x4, fixed_abs, tag = 'smem constant byte address 0x4 - core index']
  #allocation1 [shape = 'u32[144,128]{1,0:T(1,128)}', space=vmem, size = 0x12000, scoped, tag = 'internal scratch']
  #allocation2 [shape = 'bf16[10,10,4]{2,1,0:T(8,128)(2,1)}', space=vmem, size = 0xa000, scoped, tag = 'scratch operand']
  #allocation3 [shape = 'bf16[10,10,8]{2,1,0:T(8,128)(2,1)}', space=vmem, size = 0xa000, scoped, tag = 'scratch operand']
  %s0 = inlined_call_operand.vmem [shape: bf16[2,16,16,4], index: 0, kind: input, shape index: {}]
  %s1 = inlined_call_operand.vmem [shape: bf16[36,8], index: 1, kind: input, shape index: {}]
  %s2 = inlined_call_operand.vmem [shape: f32[1,8], index: 2, kind: input, shape index: {}]
  %s3 = inlined_call_operand.vmem [shape: f32[1,8], index: 3, kind: input, shape index: {}]
  %s4 = inlined_call_operand.vmem [shape: bf16[72,8], index: 4, kind: input, shape index: {}]
  %s5 = inlined_call_operand.vmem [shape: f32[1,8], index: 5, kind: input, shape index: {}]
  %s6 = inlined_call_operand.vmem [shape: f32[1,8], index: 6, kind: input, shape index: {}]
  %s7 = inlined_call_operand.vmem [shape: f32[2,64,8], index: 7, kind: output, shape index: {}]
  %s8 = sld [smem:[#allocation0]]
  $region61: #{down_forward.1} parent=0
    _
  %s10 = ssub.s32 1, %s8
  %s11 = scalar_select 0, %s10, %s8
  loop: start=0, step=1, limit=4
  $region2: #{down_forward.1} parent=0 // loop_pre_header
    _
  $region3: #{down_forward.1} parent=0 // loop_header
    %s13 = sphi 0, %s17
    %p14 = scmp.ge.s32.totalorder %s13, 4
    %s23 = sphi 0, %s25
    %s26 = sphi 0, %s23
    %s27 = sphi 0, %s26
    %s43 = sphi 0, %s27
    %s47 = sphi 0, %s47
    %s49 = sphi 0, %s47
    %s50 = sphi 0, %s49
    %s64 = sphi 0, %s50
    %s68 = sphi 0, %s68
    %s70 = sphi 0, %s68
    %s71 = sphi 0, %s70
    %s85 = sphi 0, %s71
    %s89 = sphi 0, %s89
    %s91 = sphi 0, %s89
    %s92 = sphi 0, %s91
    %s106 = sphi 0, %s92
    %s110 = sphi 0, %s110
    %s112 = sphi 0, %s110
    %s113 = sphi 0, %s112
    %s127 = sphi 0, %s113
    %s131 = sphi 0, %s131
    %s133 = sphi 0, %s131
    %s134 = sphi 0, %s133
    %s148 = sphi 0, %s134
    %s152 = sphi 0, %s152
    %s154 = sphi 0, %s152
    %s155 = sphi 0, %s154
    %s169 = sphi 0, %s155
    %s175 = sphi 0, %s177
    %s178 = sphi 0, %s175
    %s179 = sphi 0, %s178
    %s195 = sphi 0, %s179
  $region4: #{down_forward.1} parent=0 // loop_header_branch
    %16 = sbr.rel (%p14) target = $region8
  $region5: #{down_forward.1} parent=0 // loop_body
    %s18 = ssub.s32 %s13, 1
    %s19 = ssub.s32 %s13, 2
    %s20 = sadd.s32 %s13, 1
    %s21 = ssub.s32 %s13, %s20
    %p22 = scmp.eq.s32.totalorder %s21, 0
    %s24 = sadd.s32 %s23, 1
    %s25 = scalar_select %p22, %s23, %s24
    %p28 = pneg %p22
    %p29 = scmp.eq.s32.totalorder %s13, 1
    %p30 = por %p28, %p29
    %p31 = scmp.ne.s32.totalorder %s23, %s26
    %p32 = scmp.eq.s32.totalorder %s13, 0
    %p33 = por %p31, %p32
    %p34 = scmp.ne.s32.totalorder %s23, %s26
    %p35 = scmp.eq.s32.totalorder %s18, 1
    %p36 = por %p34, %p35
    %p37 = scmp.ne.s32.totalorder %s26, %s27
    %p38 = scmp.eq.s32.totalorder %s18, 0
    %p39 = por %p37, %p38
    %p40 = scmp.ne.s32.totalorder %s26, %s27
    %p41 = scmp.eq.s32.totalorder %s19, 1
    %p42 = por %p40, %p41
    %p44 = scmp.ne.s32.totalorder %s27, %s43
    %p45 = scmp.eq.s32.totalorder %s19, 0
    %p46 = por %p44, %p45
    %s48 = sadd.s32 %s47, 1
    %p51 = scmp.eq.s32.totalorder %s13, 1
    %p52 = scmp.ne.s32.totalorder %s47, %s49
    %p53 = scmp.eq.s32.totalorder %s13, 0
    %p54 = por %p52, %p53
    %p55 = scmp.ne.s32.totalorder %s47, %s49
    %p56 = scmp.eq.s32.totalorder %s18, 1
    %p57 = por %p55, %p56
    %p58 = scmp.ne.s32.totalorder %s49, %s50
    %p59 = scmp.eq.s32.totalorder %s18, 0
    %p60 = por %p58, %p59
    %p61 = scmp.ne.s32.totalorder %s49, %s50
    %p62 = scmp.eq.s32.totalorder %s19, 1
    %p63 = por %p61, %p62
    %p65 = scmp.ne.s32.totalorder %s50, %s64
    %p66 = scmp.eq.s32.totalorder %s19, 0
    %p67 = por %p65, %p66
    %s69 = sadd.s32 %s68, 1
    %p72 = scmp.eq.s32.totalorder %s13, 1
    %p73 = scmp.ne.s32.totalorder %s68, %s70
    %p74 = scmp.eq.s32.totalorder %s13, 0
    %p75 = por %p73, %p74
    %p76 = scmp.ne.s32.totalorder %s68, %s70
    %p77 = scmp.eq.s32.totalorder %s18, 1
    %p78 = por %p76, %p77
    %p79 = scmp.ne.s32.totalorder %s70, %s71
    %p80 = scmp.eq.s32.totalorder %s18, 0
    %p81 = por %p79, %p80
    %p82 = scmp.ne.s32.totalorder %s70, %s71
    %p83 = scmp.eq.s32.totalorder %s19, 1
    %p84 = por %p82, %p83
    %p86 = scmp.ne.s32.totalorder %s71, %s85
    %p87 = scmp.eq.s32.totalorder %s19, 0
    %p88 = por %p86, %p87
    %s90 = sadd.s32 %s89, 1
    %p93 = scmp.eq.s32.totalorder %s13, 1
    %p94 = scmp.ne.s32.totalorder %s89, %s91
    %p95 = scmp.eq.s32.totalorder %s13, 0
    %p96 = por %p94, %p95
    %p97 = scmp.ne.s32.totalorder %s89, %s91
    %p98 = scmp.eq.s32.totalorder %s18, 1
    %p99 = por %p97, %p98
    %p100 = scmp.ne.s32.totalorder %s91, %s92
    %p101 = scmp.eq.s32.totalorder %s18, 0
    %p102 = por %p100, %p101
    %p103 = scmp.ne.s32.totalorder %s91, %s92
    %p104 = scmp.eq.s32.totalorder %s19, 1
    %p105 = por %p103, %p104
    %p107 = scmp.ne.s32.totalorder %s92, %s106
    %p108 = scmp.eq.s32.totalorder %s19, 0
    %p109 = por %p107, %p108
    %s111 = sadd.s32 %s110, 1
    %p114 = scmp.eq.s32.totalorder %s13, 1
    %p115 = scmp.ne.s32.totalorder %s110, %s112
    %p116 = scmp.eq.s32.totalorder %s13, 0
    %p117 = por %p115, %p116
    %p118 = scmp.ne.s32.totalorder %s110, %s112
    %p119 = scmp.eq.s32.totalorder %s18, 1
    %p120 = por %p118, %p119
    %p121 = scmp.ne.s32.totalorder %s112, %s113
    %p122 = scmp.eq.s32.totalorder %s18, 0
    %p123 = por %p121, %p122
    %p124 = scmp.ne.s32.totalorder %s112, %s113
    %p125 = scmp.eq.s32.totalorder %s19, 1
    %p126 = por %p124, %p125
    %p128 = scmp.ne.s32.totalorder %s113, %s127
    %p129 = scmp.eq.s32.totalorder %s19, 0
    %p130 = por %p128, %p129
    %s132 = sadd.s32 %s131, 1
    %p135 = scmp.eq.s32.totalorder %s13, 1
    %p136 = scmp.ne.s32.totalorder %s131, %s133
    %p137 = scmp.eq.s32.totalorder %s13, 0
    %p138 = por %p136, %p137
    %p139 = scmp.ne.s32.totalorder %s131, %s133
    %p140 = scmp.eq.s32.totalorder %s18, 1
    %p141 = por %p139, %p140
    %p142 = scmp.ne.s32.totalorder %s133, %s134
    %p143 = scmp.eq.s32.totalorder %s18, 0
    %p144 = por %p142, %p143
    %p145 = scmp.ne.s32.totalorder %s133, %s134
    %p146 = scmp.eq.s32.totalorder %s19, 1
    %p147 = por %p145, %p146
    %p149 = scmp.ne.s32.totalorder %s134, %s148
    %p150 = scmp.eq.s32.totalorder %s19, 0
    %p151 = por %p149, %p150
    %s153 = sadd.s32 %s152, 1
    %p156 = scmp.eq.s32.totalorder %s13, 1
    %p157 = scmp.ne.s32.totalorder %s152, %s154
    %p158 = scmp.eq.s32.totalorder %s13, 0
    %p159 = por %p157, %p158
    %p160 = scmp.ne.s32.totalorder %s152, %s154
    %p161 = scmp.eq.s32.totalorder %s18, 1
    %p162 = por %p160, %p161
    %p163 = scmp.ne.s32.totalorder %s154, %s155
    %p164 = scmp.eq.s32.totalorder %s18, 0
    %p165 = por %p163, %p164
    %p166 = scmp.ne.s32.totalorder %s154, %s155
    %p167 = scmp.eq.s32.totalorder %s19, 1
    %p168 = por %p166, %p167
    %p170 = scmp.ne.s32.totalorder %s155, %s169
    %p171 = scmp.eq.s32.totalorder %s19, 0
    %p172 = por %p170, %p171
    %s173 = ssub.s32 %s13, %s20
    %p174 = scmp.eq.s32.totalorder %s173, 0
    %s176 = sadd.s32 %s175, 1
    %s177 = scalar_select %p174, %s175, %s176
    %p180 = pneg %p174
    %p181 = scmp.eq.s32.totalorder %s13, 1
    %p182 = por %p180, %p181
    %p183 = scmp.ne.s32.totalorder %s175, %s178
    %p184 = scmp.eq.s32.totalorder %s13, 0
    %p185 = por %p183, %p184
    %p186 = scmp.ne.s32.totalorder %s175, %s178
    %p187 = scmp.eq.s32.totalorder %s18, 1
    %p188 = por %p186, %p187
    %p189 = scmp.ne.s32.totalorder %s178, %s179
    %p190 = scmp.eq.s32.totalorder %s18, 0
    %p191 = por %p189, %p190
    %p192 = scmp.ne.s32.totalorder %s178, %s179
    %p193 = scmp.eq.s32.totalorder %s19, 1
    %p194 = por %p192, %p193
    %p196 = scmp.ne.s32.totalorder %s179, %s195
    %p197 = scmp.eq.s32.totalorder %s19, 0
    %p198 = por %p196, %p197
    %p199 = scmp.le.s32.totalorder 1, %s13
    %p200 = scmp.lt.s32.totalorder %s13, 3
    %p201 = pnand %p199, %p200
    %p202 = pneg %p201
    // Predicated region
    $region9: #{down_forward.1} parent=5 // pred_check
      _
    $region10: #{down_forward.1} parent=5 // pred_check_branch
      %204 = sbr.rel (%p201) target = $region12
    $region11: #{down_forward.1} parent=5 // pred_region
      %s205 = ssub.s32 %s13, 1
      // Predicated region
      $region13: #{down_forward.1} parent=11 // pred_check
        %p206 = pneg %p60
      $region14: #{down_forward.1} parent=11 // pred_check_branch
        %208 = sbr.rel (%p206) target = $region16
      $region15: #{down_forward.1} parent=11 // pred_region
        _
      $region16: #{down_forward.1} parent=11 // pred_fallthru
        _
      // Predicated region
      $region17: #{down_forward.1} parent=11 // pred_check
        %p209 = pneg %p81
      $region18: #{down_forward.1} parent=11 // pred_check_branch
        %211 = sbr.rel (%p209) target = $region20
      $region19: #{down_forward.1} parent=11 // pred_region
        _
      $region20: #{down_forward.1} parent=11 // pred_fallthru
        _
      // Predicated region
      $region21: #{down_forward.1} parent=11 // pred_check
        %p212 = pneg %p102
      $region22: #{down_forward.1} parent=11 // pred_check_branch
        %214 = sbr.rel (%p212) target = $region24
      $region23: #{down_forward.1} parent=11 // pred_region
        _
      $region24: #{down_forward.1} parent=11 // pred_fallthru
        _
      // Predicated region
      $region25: #{down_forward.1} parent=11 // pred_check
        %p215 = pneg %p123
      $region26: #{down_forward.1} parent=11 // pred_check_branch
        %217 = sbr.rel (%p215) target = $region28
      $region27: #{down_forward.1} parent=11 // pred_region
        _
      $region28: #{down_forward.1} parent=11 // pred_fallthru
        _
      // Predicated region
      $region29: #{down_forward.1} parent=11 // pred_check
        %p218 = pneg %p144
      $region30: #{down_forward.1} parent=11 // pred_check_branch
        %220 = sbr.rel (%p218) target = $region32
      $region31: #{down_forward.1} parent=11 // pred_region
        _
      $region32: #{down_forward.1} parent=11 // pred_fallthru
        _
      // Predicated region
      $region33: #{down_forward.1} parent=11 // pred_check
        %p221 = pneg %p165
      $region34: #{down_forward.1} parent=11 // pred_check_branch
        %223 = sbr.rel (%p221) target = $region36
      $region35: #{down_forward.1} parent=11 // pred_region
        _
      $region36: #{down_forward.1} parent=11 // pred_fallthru
        _
    $region12: #{down_forward.1} parent=5 // pred_fallthru
      _
    %p224 = scmp.lt.s32.totalorder %s13, 2
    // Predicated region
    $region37: #{down_forward.1} parent=5 // pred_check
      %p225 = pneg %p224
    $region38: #{down_forward.1} parent=5 // pred_check_branch
      %227 = sbr.rel (%p225) target = $region40
    $region39: #{down_forward.1} parent=5 // pred_region
      // Predicated region
      $region41: #{down_forward.1} parent=39 // pred_check
        %p228 = pneg %p33
      $region42: #{down_forward.1} parent=39 // pred_check_branch
        %230 = sbr.rel (%p228) target = $region44
      $region43: #{down_forward.1} parent=39 // pred_region
        %p231 = scmp.lt.s32.totalorder %s13, 1
        %s232 = scalar_select %p231, %s13, 1
        %s233 = smul.addr %s232, 32
        %s234 = smul.addr %s233, 4
        %s235 = scalar_lea.vmem %s0, %s234
      $region44: #{down_forward.1} parent=39 // pred_fallthru
        _
    $region40: #{down_forward.1} parent=5 // pred_fallthru
      _
    %p236 = scmp.le.s32.totalorder 1, %s13
    %p237 = scmp.lt.s32.totalorder %s13, 3
    %p238 = pnand %p236, %p237
    %p239 = pneg %p238
    // Predicated region
    $region45: #{down_forward.1} parent=5 // pred_check
      _
    $region46: #{down_forward.1} parent=5 // pred_check_branch
      %241 = sbr.rel (%p238) target = $region48
    $region47: #{down_forward.1} parent=5 // pred_region
      %s242 = ssub.s32 %s13, 1
      %p243 = scmp.lt.s32.totalorder %s18, 1
      %s244 = scalar_select %p243, %s18, 1
      %s245 = smul.addr %s244, 32
      %s246 = smul.addr %s245, 4
      %s247 = scalar_lea.vmem %s0, %s246
      %p248 = pneg %p39
      %p249 = pneg %p36
      %p250 = pneg %p60
      %p251 = pneg %p57
      %p252 = pneg %p81
      %p253 = pneg %p78
      %p254 = pneg %p102
      %p255 = pneg %p99
      %p256 = pneg %p123
      %p257 = pneg %p120
      %p258 = pneg %p144
      %p259 = pneg %p141
      %p260 = pneg %p165
      %p261 = pneg %p162
      %p262 = pneg %p191
      %p263 = pneg %p188
      %p264 = scmp.lt.s32.totalorder %s18, 1
      %s265 = scalar_select %p264, %s18, 1
      %s266 = smul.addr %s265, 8
      %s267 = smul.addr %s266, 8
      %s268 = scalar_lea.vmem %s7, %s267
      %p269 = scmp.lt.s32.totalorder %s18, 1
      %s270 = scalar_select %p269, %s18, 1
      %s271 = smul.addr %s270, 32
      %s272 = smul.addr %s271, 4
      %s273 = scalar_lea.vmem %s0, %s272
      %p274 = scmp.lt.s32.totalorder %s18, 1
      %s275 = scalar_select %p274, %s18, 1
      %s276 = smul.addr %s275, 8
      %s277 = smul.addr %s276, 8
      %s278 = scalar_lea.vmem %s7, %s277
      %v281 = vld [vmem:[%s273] sm:$0xf]
      %v282 = vld [vmem:[%s273 + $0x4] sm:$0xf]
      %v283 = vld [vmem:[%s273 + $0x8] sm:$0xf]
      %v284 = vld [vmem:[%s273 + $0xc] sm:$0xf]
      %v285 = vld [vmem:[%s273 + $0x10] sm:$0xf]
      %v286 = vld [vmem:[%s273 + $0x14] sm:$0xf]
      %v287 = vld [vmem:[%s273 + $0x18] sm:$0xf]
      %v288 = vld [vmem:[%s273 + $0x1c] sm:$0xf]
      %v289 = vld [vmem:[%s273 + $0x20] sm:$0xf]
      %v290 = vld [vmem:[%s273 + $0x24] sm:$0xf]
      %v291 = vld [vmem:[%s273 + $0x28] sm:$0xf]
      %v292 = vld [vmem:[%s273 + $0x2c] sm:$0xf]
      %v293 = vld [vmem:[%s273 + $0x30] sm:$0xf]
      %v294 = vld [vmem:[%s273 + $0x34] sm:$0xf]
      %v295 = vld [vmem:[%s273 + $0x38] sm:$0xf]
      %v296 = vld [vmem:[%s273 + $0x3c] sm:$0xf]
      %v297 = vld [vmem:[%s273 + $0x40] sm:$0xf]
      %v298 = vld [vmem:[%s273 + $0x44] sm:$0xf]
      %v299 = vld [vmem:[%s273 + $0x48] sm:$0xf]
      %v300 = vld [vmem:[%s273 + $0x4c] sm:$0xf]
      %v301 = vld [vmem:[%s273 + $0x50] sm:$0xf]
      %v302 = vld [vmem:[%s273 + $0x54] sm:$0xf]
      %v303 = vld [vmem:[%s273 + $0x58] sm:$0xf]
      %v304 = vld [vmem:[%s273 + $0x5c] sm:$0xf]
      %v305 = vld [vmem:[%s273 + $0x60] sm:$0xf]
      %v306 = vld [vmem:[%s273 + $0x64] sm:$0xf]
      %v307 = vld [vmem:[%s273 + $0x68] sm:$0xf]
      %v308 = vld [vmem:[%s273 + $0x6c] sm:$0xf]
      %v309 = vld [vmem:[%s273 + $0x70] sm:$0xf]
      %v310 = vld [vmem:[%s273 + $0x74] sm:$0xf]
      %v311 = vld [vmem:[%s273 + $0x78] sm:$0xf]
      %v312 = vld [vmem:[%s273 + $0x7c] sm:$0xf]
      %v346 = vunpack.c.l.s4 1966171168
      %v347 = vunpack.c.0.s8 %v346
      %v348 = vlaneseq
      %v349 = vshrl.u32 %v348, 7
      %v350 = vsub.s32 %v347, %v349
      %v351 = vrot.slane %v281, %v350
      %v352 = vcombine.high %v351, %v351
      %v354 = vunpack.c.l.s4 1966171168
      %v355 = vunpack.c.0.s8 %v354
      %v356 = vlaneseq
      %v357 = vshrl.u32 %v356, 7
      %v358 = vsub.s32 %v355, %v357
      %v359 = vrot.slane %v351, %v358
      %v361 = vunpack.c.l.s4 1966171168
      %v362 = vunpack.c.0.s8 %v361
      %v363 = vlaneseq
      %v364 = vshrl.u32 %v363, 7
      %v365 = vsub.s32 %v362, %v364
      %v366 = vrot.slane %v352, %v365
      %v367 = vcombine.high %v359, %v359
      %v368 = vcombine.high %v366, %v366
      %v370 = vunpack.c.l.s4 1966171168
      %v371 = vunpack.c.0.s8 %v370
      %v372 = vlaneseq
      %v373 = vshrl.u32 %v372, 7
      %v374 = vsub.s32 %v371, %v373
      %v375 = vrot.slane %v282, %v374
      %v376 = vcombine.high %v375, %v375
      %v378 = vunpack.c.l.s4 1966171168
      %v379 = vunpack.c.0.s8 %v378
      %v380 = vlaneseq
      %v381 = vshrl.u32 %v380, 7
      %v382 = vsub.s32 %v379, %v381
      %v383 = vrot.slane %v375, %v382
      %v385 = vunpack.c.l.s4 1966171168
      %v386 = vunpack.c.0.s8 %v385
      %v387 = vlaneseq
      %v388 = vshrl.u32 %v387, 7
      %v389 = vsub.s32 %v386, %v388
      %v390 = vrot.slane %v376, %v389
      %v391 = vcombine.high %v383, %v383
      %v392 = vcombine.high %v390, %v390
      %v394 = vunpack.c.l.s4 1966171168
      %v395 = vunpack.c.0.s8 %v394
      %v396 = vlaneseq
      %v397 = vshrl.u32 %v396, 7
      %v398 = vsub.s32 %v395, %v397
      %v399 = vrot.slane %v283, %v398
      %v400 = vcombine.high %v399, %v399
      %v402 = vunpack.c.l.s4 1966171168
      %v403 = vunpack.c.0.s8 %v402
      %v404 = vlaneseq
      %v405 = vshrl.u32 %v404, 7
      %v406 = vsub.s32 %v403, %v405
      %v407 = vrot.slane %v399, %v406
      %v409 = vunpack.c.l.s4 1966171168
      %v410 = vunpack.c.0.s8 %v409
      %v411 = vlaneseq
      %v412 = vshrl.u32 %v411, 7
      %v413 = vsub.s32 %v410, %v412
      %v414 = vrot.slane %v400, %v413
      %v415 = vcombine.high %v407, %v407
      %v416 = vcombine.high %v414, %v414
      %v418 = vunpack.c.l.s4 1966171168
      %v419 = vunpack.c.0.s8 %v418
      %v420 = vlaneseq
      %v421 = vshrl.u32 %v420, 7
      %v422 = vsub.s32 %v419, %v421
      %v423 = vrot.slane %v284, %v422
      %v424 = vcombine.high %v423, %v423
      %v426 = vunpack.c.l.s4 1966171168
      %v427 = vunpack.c.0.s8 %v426
      %v428 = vlaneseq
      %v429 = vshrl.u32 %v428, 7
      %v430 = vsub.s32 %v427, %v429
      %v431 = vrot.slane %v423, %v430
      %v433 = vunpack.c.l.s4 1966171168
      %v434 = vunpack.c.0.s8 %v433
      %v435 = vlaneseq
      %v436 = vshrl.u32 %v435, 7
      %v437 = vsub.s32 %v434, %v436
      %v438 = vrot.slane %v424, %v437
      %v439 = vcombine.high %v431, %v431
      %v440 = vcombine.high %v438, %v438
      %v442 = vunpack.c.l.s4 1966171168
      %v443 = vunpack.c.0.s8 %v442
      %v444 = vlaneseq
      %v445 = vshrl.u32 %v444, 7
      %v446 = vsub.s32 %v443, %v445
      %v447 = vrot.slane %v285, %v446
      %v448 = vcombine.high %v447, %v447
      %v450 = vunpack.c.l.s4 1966171168
      %v451 = vunpack.c.0.s8 %v450
      %v452 = vlaneseq
      %v453 = vshrl.u32 %v452, 7
      %v454 = vsub.s32 %v451, %v453
      %v455 = vrot.slane %v447, %v454
      %v457 = vunpack.c.l.s4 1966171168
      %v458 = vunpack.c.0.s8 %v457
      %v459 = vlaneseq
      %v460 = vshrl.u32 %v459, 7
      %v461 = vsub.s32 %v458, %v460
      %v462 = vrot.slane %v448, %v461
      %v463 = vcombine.high %v455, %v455
      %v464 = vcombine.high %v462, %v462
      %v466 = vunpack.c.l.s4 1966171168
      %v467 = vunpack.c.0.s8 %v466
      %v468 = vlaneseq
      %v469 = vshrl.u32 %v468, 7
      %v470 = vsub.s32 %v467, %v469
      %v471 = vrot.slane %v286, %v470
      %v472 = vcombine.high %v471, %v471
      %v474 = vunpack.c.l.s4 1966171168
      %v475 = vunpack.c.0.s8 %v474
      %v476 = vlaneseq
      %v477 = vshrl.u32 %v476, 7
      %v478 = vsub.s32 %v475, %v477
      %v479 = vrot.slane %v471, %v478
      %v481 = vunpack.c.l.s4 1966171168
      %v482 = vunpack.c.0.s8 %v481
      %v483 = vlaneseq
      %v484 = vshrl.u32 %v483, 7
      %v485 = vsub.s32 %v482, %v484
      %v486 = vrot.slane %v472, %v485
      %v487 = vcombine.high %v479, %v479
      %v488 = vcombine.high %v486, %v486
      %v490 = vunpack.c.l.s4 1966171168
      %v491 = vunpack.c.0.s8 %v490
      %v492 = vlaneseq
      %v493 = vshrl.u32 %v492, 7
      %v494 = vsub.s32 %v491, %v493
      %v495 = vrot.slane %v287, %v494
      %v496 = vcombine.high %v495, %v495
      %v498 = vunpack.c.l.s4 1966171168
      %v499 = vunpack.c.0.s8 %v498
      %v500 = vlaneseq
      %v501 = vshrl.u32 %v500, 7
      %v502 = vsub.s32 %v499, %v501
      %v503 = vrot.slane %v495, %v502
      %v505 = vunpack.c.l.s4 1966171168
      %v506 = vunpack.c.0.s8 %v505
      %v507 = vlaneseq
      %v508 = vshrl.u32 %v507, 7
      %v509 = vsub.s32 %v506, %v508
      %v510 = vrot.slane %v496, %v509
      %v511 = vcombine.high %v503, %v503
      %v512 = vcombine.high %v510, %v510
      %v514 = vunpack.c.l.s4 1966171168
      %v515 = vunpack.c.0.s8 %v514
      %v516 = vlaneseq
      %v517 = vshrl.u32 %v516, 7
      %v518 = vsub.s32 %v515, %v517
      %v519 = vrot.slane %v288, %v518
      %v520 = vcombine.high %v519, %v519
      %v522 = vunpack.c.l.s4 1966171168
      %v523 = vunpack.c.0.s8 %v522
      %v524 = vlaneseq
      %v525 = vshrl.u32 %v524, 7
      %v526 = vsub.s32 %v523, %v525
      %v527 = vrot.slane %v519, %v526
      %v529 = vunpack.c.l.s4 1966171168
      %v530 = vunpack.c.0.s8 %v529
      %v531 = vlaneseq
      %v532 = vshrl.u32 %v531, 7
      %v533 = vsub.s32 %v530, %v532
      %v534 = vrot.slane %v520, %v533
      %v535 = vcombine.high %v527, %v527
      %v536 = vcombine.high %v534, %v534
      %v538 = vunpack.c.l.s4 1966171168
      %v539 = vunpack.c.0.s8 %v538
      %v540 = vlaneseq
      %v541 = vshrl.u32 %v540, 7
      %v542 = vsub.s32 %v539, %v541
      %v543 = vrot.slane %v289, %v542
      %v544 = vcombine.high %v543, %v543
      %v546 = vunpack.c.l.s4 1966171168
      %v547 = vunpack.c.0.s8 %v546
      %v548 = vlaneseq
      %v549 = vshrl.u32 %v548, 7
      %v550 = vsub.s32 %v547, %v549
      %v551 = vrot.slane %v543, %v550
      %v553 = vunpack.c.l.s4 1966171168
      %v554 = vunpack.c.0.s8 %v553
      %v555 = vlaneseq
      %v556 = vshrl.u32 %v555, 7
      %v557 = vsub.s32 %v554, %v556
      %v558 = vrot.slane %v544, %v557
      %v559 = vcombine.high %v551, %v551
      %v560 = vcombine.high %v558, %v558
      %v562 = vunpack.c.l.s4 1966171168
      %v563 = vunpack.c.0.s8 %v562
      %v564 = vlaneseq
      %v565 = vshrl.u32 %v564, 7
      %v566 = vsub.s32 %v563, %v565
      %v567 = vrot.slane %v290, %v566
      %v568 = vcombine.high %v567, %v567
      %v570 = vunpack.c.l.s4 1966171168
      %v571 = vunpack.c.0.s8 %v570
      %v572 = vlaneseq
      %v573 = vshrl.u32 %v572, 7
      %v574 = vsub.s32 %v571, %v573
      %v575 = vrot.slane %v567, %v574
      %v577 = vunpack.c.l.s4 1966171168
      %v578 = vunpack.c.0.s8 %v577
      %v579 = vlaneseq
      %v580 = vshrl.u32 %v579, 7
      %v581 = vsub.s32 %v578, %v580
      %v582 = vrot.slane %v568, %v581
      %v583 = vcombine.high %v575, %v575
      %v584 = vcombine.high %v582, %v582
      %v586 = vunpack.c.l.s4 1966171168
      %v587 = vunpack.c.0.s8 %v586
      %v588 = vlaneseq
      %v589 = vshrl.u32 %v588, 7
      %v590 = vsub.s32 %v587, %v589
      %v591 = vrot.slane %v291, %v590
      %v592 = vcombine.high %v591, %v591
      %v594 = vunpack.c.l.s4 1966171168
      %v595 = vunpack.c.0.s8 %v594
      %v596 = vlaneseq
      %v597 = vshrl.u32 %v596, 7
      %v598 = vsub.s32 %v595, %v597
      %v599 = vrot.slane %v591, %v598
      %v601 = vunpack.c.l.s4 1966171168
      %v602 = vunpack.c.0.s8 %v601
      %v603 = vlaneseq
      %v604 = vshrl.u32 %v603, 7
      %v605 = vsub.s32 %v602, %v604
      %v606 = vrot.slane %v592, %v605
      %v607 = vcombine.high %v599, %v599
      %v608 = vcombine.high %v606, %v606
      %v610 = vunpack.c.l.s4 1966171168
      %v611 = vunpack.c.0.s8 %v610
      %v612 = vlaneseq
      %v613 = vshrl.u32 %v612, 7
      %v614 = vsub.s32 %v611, %v613
      %v615 = vrot.slane %v292, %v614
      %v616 = vcombine.high %v615, %v615
      %v618 = vunpack.c.l.s4 1966171168
      %v619 = vunpack.c.0.s8 %v618
      %v620 = vlaneseq
      %v621 = vshrl.u32 %v620, 7
      %v622 = vsub.s32 %v619, %v621
      %v623 = vrot.slane %v615, %v622
      %v625 = vunpack.c.l.s4 1966171168
      %v626 = vunpack.c.0.s8 %v625
      %v627 = vlaneseq
      %v628 = vshrl.u32 %v627, 7
      %v629 = vsub.s32 %v626, %v628
      %v630 = vrot.slane %v616, %v629
      %v631 = vcombine.high %v623, %v623
      %v632 = vcombine.high %v630, %v630
      %v634 = vunpack.c.l.s4 1966171168
      %v635 = vunpack.c.0.s8 %v634
      %v636 = vlaneseq
      %v637 = vshrl.u32 %v636, 7
      %v638 = vsub.s32 %v635, %v637
      %v639 = vrot.slane %v293, %v638
      %v640 = vcombine.high %v639, %v639
      %v642 = vunpack.c.l.s4 1966171168
      %v643 = vunpack.c.0.s8 %v642
      %v644 = vlaneseq
      %v645 = vshrl.u32 %v644, 7
      %v646 = vsub.s32 %v643, %v645
      %v647 = vrot.slane %v639, %v646
      %v649 = vunpack.c.l.s4 1966171168
      %v650 = vunpack.c.0.s8 %v649
      %v651 = vlaneseq
      %v652 = vshrl.u32 %v651, 7
      %v653 = vsub.s32 %v650, %v652
      %v654 = vrot.slane %v640, %v653
      %v655 = vcombine.high %v647, %v647
      %v656 = vcombine.high %v654, %v654
      %v658 = vunpack.c.l.s4 1966171168
      %v659 = vunpack.c.0.s8 %v658
      %v660 = vlaneseq
      %v661 = vshrl.u32 %v660, 7
      %v662 = vsub.s32 %v659, %v661
      %v663 = vrot.slane %v294, %v662
      %v664 = vcombine.high %v663, %v663
      %v666 = vunpack.c.l.s4 1966171168
      %v667 = vunpack.c.0.s8 %v666
      %v668 = vlaneseq
      %v669 = vshrl.u32 %v668, 7
      %v670 = vsub.s32 %v667, %v669
      %v671 = vrot.slane %v663, %v670
      %v673 = vunpack.c.l.s4 1966171168
      %v674 = vunpack.c.0.s8 %v673
      %v675 = vlaneseq
      %v676 = vshrl.u32 %v675, 7
      %v677 = vsub.s32 %v674, %v676
      %v678 = vrot.slane %v664, %v677
      %v679 = vcombine.high %v671, %v671
      %v680 = vcombine.high %v678, %v678
      %v682 = vunpack.c.l.s4 1966171168
      %v683 = vunpack.c.0.s8 %v682
      %v684 = vlaneseq
      %v685 = vshrl.u32 %v684, 7
      %v686 = vsub.s32 %v683, %v685
      %v687 = vrot.slane %v295, %v686
      %v688 = vcombine.high %v687, %v687
      %v690 = vunpack.c.l.s4 1966171168
      %v691 = vunpack.c.0.s8 %v690
      %v692 = vlaneseq
      %v693 = vshrl.u32 %v692, 7
      %v694 = vsub.s32 %v691, %v693
      %v695 = vrot.slane %v687, %v694
      %v697 = vunpack.c.l.s4 1966171168
      %v698 = vunpack.c.0.s8 %v697
      %v699 = vlaneseq
      %v700 = vshrl.u32 %v699, 7
      %v701 = vsub.s32 %v698, %v700
      %v702 = vrot.slane %v688, %v701
      %v703 = vcombine.high %v695, %v695
      %v704 = vcombine.high %v702, %v702
      %v706 = vunpack.c.l.s4 1966171168
      %v707 = vunpack.c.0.s8 %v706
      %v708 = vlaneseq
      %v709 = vshrl.u32 %v708, 7
      %v710 = vsub.s32 %v707, %v709
      %v711 = vrot.slane %v296, %v710
      %v712 = vcombine.high %v711, %v711
      %v714 = vunpack.c.l.s4 1966171168
      %v715 = vunpack.c.0.s8 %v714
      %v716 = vlaneseq
      %v717 = vshrl.u32 %v716, 7
      %v718 = vsub.s32 %v715, %v717
      %v719 = vrot.slane %v711, %v718
      %v721 = vunpack.c.l.s4 1966171168
      %v722 = vunpack.c.0.s8 %v721
      %v723 = vlaneseq
      %v724 = vshrl.u32 %v723, 7
      %v725 = vsub.s32 %v722, %v724
      %v726 = vrot.slane %v712, %v725
      %v727 = vcombine.high %v719, %v719
      %v728 = vcombine.high %v726, %v726
      %v730 = vunpack.c.l.s4 1966171168
      %v731 = vunpack.c.0.s8 %v730
      %v732 = vlaneseq
      %v733 = vshrl.u32 %v732, 7
      %v734 = vsub.s32 %v731, %v733
      %v735 = vrot.slane %v297, %v734
      %v736 = vcombine.high %v735, %v735
      %v738 = vunpack.c.l.s4 1966171168
      %v739 = vunpack.c.0.s8 %v738
      %v740 = vlaneseq
      %v741 = vshrl.u32 %v740, 7
      %v742 = vsub.s32 %v739, %v741
      %v743 = vrot.slane %v735, %v742
      %v745 = vunpack.c.l.s4 1966171168
      %v746 = vunpack.c.0.s8 %v745
      %v747 = vlaneseq
      %v748 = vshrl.u32 %v747, 7
      %v749 = vsub.s32 %v746, %v748
      %v750 = vrot.slane %v736, %v749
      %v751 = vcombine.high %v743, %v743
      %v752 = vcombine.high %v750, %v750
      %v754 = vunpack.c.l.s4 1966171168
      %v755 = vunpack.c.0.s8 %v754
      %v756 = vlaneseq
      %v757 = vshrl.u32 %v756, 7
      %v758 = vsub.s32 %v755, %v757
      %v759 = vrot.slane %v298, %v758
      %v760 = vcombine.high %v759, %v759
      %v762 = vunpack.c.l.s4 1966171168
      %v763 = vunpack.c.0.s8 %v762
      %v764 = vlaneseq
      %v765 = vshrl.u32 %v764, 7
      %v766 = vsub.s32 %v763, %v765
      %v767 = vrot.slane %v759, %v766
      %v769 = vunpack.c.l.s4 1966171168
      %v770 = vunpack.c.0.s8 %v769
      %v771 = vlaneseq
      %v772 = vshrl.u32 %v771, 7
      %v773 = vsub.s32 %v770, %v772
      %v774 = vrot.slane %v760, %v773
      %v775 = vcombine.high %v767, %v767
      %v776 = vcombine.high %v774, %v774
      %v778 = vunpack.c.l.s4 1966171168
      %v779 = vunpack.c.0.s8 %v778
      %v780 = vlaneseq
      %v781 = vshrl.u32 %v780, 7
      %v782 = vsub.s32 %v779, %v781
      %v783 = vrot.slane %v299, %v782
      %v784 = vcombine.high %v783, %v783
      %v786 = vunpack.c.l.s4 1966171168
      %v787 = vunpack.c.0.s8 %v786
      %v788 = vlaneseq
      %v789 = vshrl.u32 %v788, 7
      %v790 = vsub.s32 %v787, %v789
      %v791 = vrot.slane %v783, %v790
      %v793 = vunpack.c.l.s4 1966171168
      %v794 = vunpack.c.0.s8 %v793
      %v795 = vlaneseq
      %v796 = vshrl.u32 %v795, 7
      %v797 = vsub.s32 %v794, %v796
      %v798 = vrot.slane %v784, %v797
      %v799 = vcombine.high %v791, %v791
      %v800 = vcombine.high %v798, %v798
      %v802 = vunpack.c.l.s4 1966171168
      %v803 = vunpack.c.0.s8 %v802
      %v804 = vlaneseq
      %v805 = vshrl.u32 %v804, 7
      %v806 = vsub.s32 %v803, %v805
      %v807 = vrot.slane %v300, %v806
      %v808 = vcombine.high %v807, %v807
      %v810 = vunpack.c.l.s4 1966171168
      %v811 = vunpack.c.0.s8 %v810
      %v812 = vlaneseq
      %v813 = vshrl.u32 %v812, 7
      %v814 = vsub.s32 %v811, %v813
      %v815 = vrot.slane %v807, %v814
      %v817 = vunpack.c.l.s4 1966171168
      %v818 = vunpack.c.0.s8 %v817
      %v819 = vlaneseq
      %v820 = vshrl.u32 %v819, 7
      %v821 = vsub.s32 %v818, %v820
      %v822 = vrot.slane %v808, %v821
      %v823 = vcombine.high %v815, %v815
      %v824 = vcombine.high %v822, %v822
      %v826 = vunpack.c.l.s4 1966171168
      %v827 = vunpack.c.0.s8 %v826
      %v828 = vlaneseq
      %v829 = vshrl.u32 %v828, 7
      %v830 = vsub.s32 %v827, %v829
      %v831 = vrot.slane %v301, %v830
      %v832 = vcombine.high %v831, %v831
      %v834 = vunpack.c.l.s4 1966171168
      %v835 = vunpack.c.0.s8 %v834
      %v836 = vlaneseq
      %v837 = vshrl.u32 %v836, 7
      %v838 = vsub.s32 %v835, %v837
      %v839 = vrot.slane %v831, %v838
      %v841 = vunpack.c.l.s4 1966171168
      %v842 = vunpack.c.0.s8 %v841
      %v843 = vlaneseq
      %v844 = vshrl.u32 %v843, 7
      %v845 = vsub.s32 %v842, %v844
      %v846 = vrot.slane %v832, %v845
      %v847 = vcombine.high %v839, %v839
      %v848 = vcombine.high %v846, %v846
      %v850 = vunpack.c.l.s4 1966171168
      %v851 = vunpack.c.0.s8 %v850
      %v852 = vlaneseq
      %v853 = vshrl.u32 %v852, 7
      %v854 = vsub.s32 %v851, %v853
      %v855 = vrot.slane %v302, %v854
      %v856 = vcombine.high %v855, %v855
      %v858 = vunpack.c.l.s4 1966171168
      %v859 = vunpack.c.0.s8 %v858
      %v860 = vlaneseq
      %v861 = vshrl.u32 %v860, 7
      %v862 = vsub.s32 %v859, %v861
      %v863 = vrot.slane %v855, %v862
      %v865 = vunpack.c.l.s4 1966171168
      %v866 = vunpack.c.0.s8 %v865
      %v867 = vlaneseq
      %v868 = vshrl.u32 %v867, 7
      %v869 = vsub.s32 %v866, %v868
      %v870 = vrot.slane %v856, %v869
      %v871 = vcombine.high %v863, %v863
      %v872 = vcombine.high %v870, %v870
      %v874 = vunpack.c.l.s4 1966171168
      %v875 = vunpack.c.0.s8 %v874
      %v876 = vlaneseq
      %v877 = vshrl.u32 %v876, 7
      %v878 = vsub.s32 %v875, %v877
      %v879 = vrot.slane %v303, %v878
      %v880 = vcombine.high %v879, %v879
      %v882 = vunpack.c.l.s4 1966171168
      %v883 = vunpack.c.0.s8 %v882
      %v884 = vlaneseq
      %v885 = vshrl.u32 %v884, 7
      %v886 = vsub.s32 %v883, %v885
      %v887 = vrot.slane %v879, %v886
      %v889 = vunpack.c.l.s4 1966171168
      %v890 = vunpack.c.0.s8 %v889
      %v891 = vlaneseq
      %v892 = vshrl.u32 %v891, 7
      %v893 = vsub.s32 %v890, %v892
      %v894 = vrot.slane %v880, %v893
      %v895 = vcombine.high %v887, %v887
      %v896 = vcombine.high %v894, %v894
      %v898 = vunpack.c.l.s4 1966171168
      %v899 = vunpack.c.0.s8 %v898
      %v900 = vlaneseq
      %v901 = vshrl.u32 %v900, 7
      %v902 = vsub.s32 %v899, %v901
      %v903 = vrot.slane %v304, %v902
      %v904 = vcombine.high %v903, %v903
      %v906 = vunpack.c.l.s4 1966171168
      %v907 = vunpack.c.0.s8 %v906
      %v908 = vlaneseq
      %v909 = vshrl.u32 %v908, 7
      %v910 = vsub.s32 %v907, %v909
      %v911 = vrot.slane %v903, %v910
      %v913 = vunpack.c.l.s4 1966171168
      %v914 = vunpack.c.0.s8 %v913
      %v915 = vlaneseq
      %v916 = vshrl.u32 %v915, 7
      %v917 = vsub.s32 %v914, %v916
      %v918 = vrot.slane %v904, %v917
      %v919 = vcombine.high %v911, %v911
      %v920 = vcombine.high %v918, %v918
      %v922 = vunpack.c.l.s4 1966171168
      %v923 = vunpack.c.0.s8 %v922
      %v924 = vlaneseq
      %v925 = vshrl.u32 %v924, 7
      %v926 = vsub.s32 %v923, %v925
      %v927 = vrot.slane %v305, %v926
      %v928 = vcombine.high %v927, %v927
      %v930 = vunpack.c.l.s4 1966171168
      %v931 = vunpack.c.0.s8 %v930
      %v932 = vlaneseq
      %v933 = vshrl.u32 %v932, 7
      %v934 = vsub.s32 %v931, %v933
      %v935 = vrot.slane %v927, %v934
      %v937 = vunpack.c.l.s4 1966171168
      %v938 = vunpack.c.0.s8 %v937
      %v939 = vlaneseq
      %v940 = vshrl.u32 %v939, 7
      %v941 = vsub.s32 %v938, %v940
      %v942 = vrot.slane %v928, %v941
      %v943 = vcombine.high %v935, %v935
      %v944 = vcombine.high %v942, %v942
      %v946 = vunpack.c.l.s4 1966171168
      %v947 = vunpack.c.0.s8 %v946
      %v948 = vlaneseq
      %v949 = vshrl.u32 %v948, 7
      %v950 = vsub.s32 %v947, %v949
      %v951 = vrot.slane %v306, %v950
      %v952 = vcombine.high %v951, %v951
      %v954 = vunpack.c.l.s4 1966171168
      %v955 = vunpack.c.0.s8 %v954
      %v956 = vlaneseq
      %v957 = vshrl.u32 %v956, 7
      %v958 = vsub.s32 %v955, %v957
      %v959 = vrot.slane %v951, %v958
      %v961 = vunpack.c.l.s4 1966171168
      %v962 = vunpack.c.0.s8 %v961
      %v963 = vlaneseq
      %v964 = vshrl.u32 %v963, 7
      %v965 = vsub.s32 %v962, %v964
      %v966 = vrot.slane %v952, %v965
      %v967 = vcombine.high %v959, %v959
      %v968 = vcombine.high %v966, %v966
      %v970 = vunpack.c.l.s4 1966171168
      %v971 = vunpack.c.0.s8 %v970
      %v972 = vlaneseq
      %v973 = vshrl.u32 %v972, 7
      %v974 = vsub.s32 %v971, %v973
      %v975 = vrot.slane %v307, %v974
      %v976 = vcombine.high %v975, %v975
      %v978 = vunpack.c.l.s4 1966171168
      %v979 = vunpack.c.0.s8 %v978
      %v980 = vlaneseq
      %v981 = vshrl.u32 %v980, 7
      %v982 = vsub.s32 %v979, %v981
      %v983 = vrot.slane %v975, %v982
      %v985 = vunpack.c.l.s4 1966171168
      %v986 = vunpack.c.0.s8 %v985
      %v987 = vlaneseq
      %v988 = vshrl.u32 %v987, 7
      %v989 = vsub.s32 %v986, %v988
      %v990 = vrot.slane %v976, %v989
      %v991 = vcombine.high %v983, %v983
      %v992 = vcombine.high %v990, %v990
      %v994 = vunpack.c.l.s4 1966171168
      %v995 = vunpack.c.0.s8 %v994
      %v996 = vlaneseq
      %v997 = vshrl.u32 %v996, 7
      %v998 = vsub.s32 %v995, %v997
      %v999 = vrot.slane %v308, %v998
      %v1000 = vcombine.high %v999, %v999
      %v1002 = vunpack.c.l.s4 1966171168
      %v1003 = vunpack.c.0.s8 %v1002
      %v1004 = vlaneseq
      %v1005 = vshrl.u32 %v1004, 7
      %v1006 = vsub.s32 %v1003, %v1005
      %v1007 = vrot.slane %v999, %v1006
      %v1009 = vunpack.c.l.s4 1966171168
      %v1010 = vunpack.c.0.s8 %v1009
      %v1011 = vlaneseq
      %v1012 = vshrl.u32 %v1011, 7
      %v1013 = vsub.s32 %v1010, %v1012
      %v1014 = vrot.slane %v1000, %v1013
      %v1015 = vcombine.high %v1007, %v1007
      %v1016 = vcombine.high %v1014, %v1014
      %v1018 = vunpack.c.l.s4 1966171168
      %v1019 = vunpack.c.0.s8 %v1018
      %v1020 = vlaneseq
      %v1021 = vshrl.u32 %v1020, 7
      %v1022 = vsub.s32 %v1019, %v1021
      %v1023 = vrot.slane %v309, %v1022
      %v1024 = vcombine.high %v1023, %v1023
      %v1026 = vunpack.c.l.s4 1966171168
      %v1027 = vunpack.c.0.s8 %v1026
      %v1028 = vlaneseq
      %v1029 = vshrl.u32 %v1028, 7
      %v1030 = vsub.s32 %v1027, %v1029
      %v1031 = vrot.slane %v1023, %v1030
      %v1033 = vunpack.c.l.s4 1966171168
      %v1034 = vunpack.c.0.s8 %v1033
      %v1035 = vlaneseq
      %v1036 = vshrl.u32 %v1035, 7
      %v1037 = vsub.s32 %v1034, %v1036
      %v1038 = vrot.slane %v1024, %v1037
      %v1039 = vcombine.high %v1031, %v1031
      %v1040 = vcombine.high %v1038, %v1038
      %v1042 = vunpack.c.l.s4 1966171168
      %v1043 = vunpack.c.0.s8 %v1042
      %v1044 = vlaneseq
      %v1045 = vshrl.u32 %v1044, 7
      %v1046 = vsub.s32 %v1043, %v1045
      %v1047 = vrot.slane %v310, %v1046
      %v1048 = vcombine.high %v1047, %v1047
      %v1050 = vunpack.c.l.s4 1966171168
      %v1051 = vunpack.c.0.s8 %v1050
      %v1052 = vlaneseq
      %v1053 = vshrl.u32 %v1052, 7
      %v1054 = vsub.s32 %v1051, %v1053
      %v1055 = vrot.slane %v1047, %v1054
      %v1057 = vunpack.c.l.s4 1966171168
      %v1058 = vunpack.c.0.s8 %v1057
      %v1059 = vlaneseq
      %v1060 = vshrl.u32 %v1059, 7
      %v1061 = vsub.s32 %v1058, %v1060
      %v1062 = vrot.slane %v1048, %v1061
      %v1063 = vcombine.high %v1055, %v1055
      %v1064 = vcombine.high %v1062, %v1062
      %v1066 = vunpack.c.l.s4 1966171168
      %v1067 = vunpack.c.0.s8 %v1066
      %v1068 = vlaneseq
      %v1069 = vshrl.u32 %v1068, 7
      %v1070 = vsub.s32 %v1067, %v1069
      %v1071 = vrot.slane %v311, %v1070
      %v1072 = vcombine.high %v1071, %v1071
      %v1074 = vunpack.c.l.s4 1966171168
      %v1075 = vunpack.c.0.s8 %v1074
      %v1076 = vlaneseq
      %v1077 = vshrl.u32 %v1076, 7
      %v1078 = vsub.s32 %v1075, %v1077
      %v1079 = vrot.slane %v1071, %v1078
      %v1081 = vunpack.c.l.s4 1966171168
      %v1082 = vunpack.c.0.s8 %v1081
      %v1083 = vlaneseq
      %v1084 = vshrl.u32 %v1083, 7
      %v1085 = vsub.s32 %v1082, %v1084
      %v1086 = vrot.slane %v1072, %v1085
      %v1087 = vcombine.high %v1079, %v1079
      %v1088 = vcombine.high %v1086, %v1086
      %v1090 = vunpack.c.l.s4 1966171168
      %v1091 = vunpack.c.0.s8 %v1090
      %v1092 = vlaneseq
      %v1093 = vshrl.u32 %v1092, 7
      %v1094 = vsub.s32 %v1091, %v1093
      %v1095 = vrot.slane %v312, %v1094
      %v1096 = vcombine.high %v1095, %v1095
      %v1098 = vunpack.c.l.s4 1966171168
      %v1099 = vunpack.c.0.s8 %v1098
      %v1100 = vlaneseq
      %v1101 = vshrl.u32 %v1100, 7
      %v1102 = vsub.s32 %v1099, %v1101
      %v1103 = vrot.slane %v1095, %v1102
      %v1105 = vunpack.c.l.s4 1966171168
      %v1106 = vunpack.c.0.s8 %v1105
      %v1107 = vlaneseq
      %v1108 = vshrl.u32 %v1107, 7
      %v1109 = vsub.s32 %v1106, %v1108
      %v1110 = vrot.slane %v1096, %v1109
      %v1111 = vcombine.high %v1103, %v1103
      %v1112 = vcombine.high %v1110, %v1110
      %vm1113 = vcmask 24576
      %v1116 = vsel %vm1113, %v359, 4286644096
      %v1118 = vunpack.i.l.bf16 %v1116
      %v1119 = vunpack.i.h.bf16 %v1116
      %v1120 = vmax.f32 %v1118, %v1119
      %v1121 = vrot.slane %v1120, 4
      %v1122 = vmax.f32 %v1120, %v1121
      %v1123 = vrot.slane %v1122, 2
      %v1124 = vmax.f32 %v1122, %v1123
      %v1125 = vrot.slane %v1124, 1
      %v1126 = vmax.f32 %v1124, %v1125
      %v1127 = vpack.i.bf16 %v1126, %v1126
      %v1129 = vsel %vm1113, %v366, 4286644096
      %v1131 = vunpack.i.l.bf16 %v1129
      %v1132 = vunpack.i.h.bf16 %v1129
      %v1133 = vmax.f32 %v1131, %v1132
      %v1134 = vrot.slane %v1133, 4
      %v1135 = vmax.f32 %v1133, %v1134
      %v1136 = vrot.slane %v1135, 2
      %v1137 = vmax.f32 %v1135, %v1136
      %v1138 = vrot.slane %v1137, 1
      %v1139 = vmax.f32 %v1137, %v1138
      %v1140 = vpack.i.bf16 %v1139, %v1139
      %v1142 = vsel %vm1113, %v367, 4286644096
      %v1144 = vunpack.i.l.bf16 %v1142
      %v1145 = vunpack.i.h.bf16 %v1142
      %v1146 = vmax.f32 %v1144, %v1145
      %v1147 = vrot.slane %v1146, 4
      %v1148 = vmax.f32 %v1146, %v1147
      %v1149 = vrot.slane %v1148, 2
      %v1150 = vmax.f32 %v1148, %v1149
      %v1151 = vrot.slane %v1150, 1
      %v1152 = vmax.f32 %v1150, %v1151
      %v1153 = vpack.i.bf16 %v1152, %v1152
      %v1155 = vsel %vm1113, %v368, 4286644096
      %v1157 = vunpack.i.l.bf16 %v1155
      %v1158 = vunpack.i.h.bf16 %v1155
      %v1159 = vmax.f32 %v1157, %v1158
      %v1160 = vrot.slane %v1159, 4
      %v1161 = vmax.f32 %v1159, %v1160
      %v1162 = vrot.slane %v1161, 2
      %v1163 = vmax.f32 %v1161, %v1162
      %v1164 = vrot.slane %v1163, 1
      %v1165 = vmax.f32 %v1163, %v1164
      %v1166 = vpack.i.bf16 %v1165, %v1165
      %v1168 = vsel %vm1113, %v383, 4286644096
      %v1170 = vunpack.i.l.bf16 %v1168
      %v1171 = vunpack.i.h.bf16 %v1168
      %v1172 = vmax.f32 %v1170, %v1171
      %v1173 = vrot.slane %v1172, 4
      %v1174 = vmax.f32 %v1172, %v1173
      %v1175 = vrot.slane %v1174, 2
      %v1176 = vmax.f32 %v1174, %v1175
      %v1177 = vrot.slane %v1176, 1
      %v1178 = vmax.f32 %v1176, %v1177
      %v1179 = vpack.i.bf16 %v1178, %v1178
      %v1181 = vsel %vm1113, %v390, 4286644096
      %v1183 = vunpack.i.l.bf16 %v1181
      %v1184 = vunpack.i.h.bf16 %v1181
      %v1185 = vmax.f32 %v1183, %v1184
      %v1186 = vrot.slane %v1185, 4
      %v1187 = vmax.f32 %v1185, %v1186
      %v1188 = vrot.slane %v1187, 2
      %v1189 = vmax.f32 %v1187, %v1188
      %v1190 = vrot.slane %v1189, 1
      %v1191 = vmax.f32 %v1189, %v1190
      %v1192 = vpack.i.bf16 %v1191, %v1191
      %v1194 = vsel %vm1113, %v391, 4286644096
      %v1196 = vunpack.i.l.bf16 %v1194
      %v1197 = vunpack.i.h.bf16 %v1194
      %v1198 = vmax.f32 %v1196, %v1197
      %v1199 = vrot.slane %v1198, 4
      %v1200 = vmax.f32 %v1198, %v1199
      %v1201 = vrot.slane %v1200, 2
      %v1202 = vmax.f32 %v1200, %v1201
      %v1203 = vrot.slane %v1202, 1
      %v1204 = vmax.f32 %v1202, %v1203
      %v1205 = vpack.i.bf16 %v1204, %v1204
      %v1207 = vsel %vm1113, %v392, 4286644096
      %v1209 = vunpack.i.l.bf16 %v1207
      %v1210 = vunpack.i.h.bf16 %v1207
      %v1211 = vmax.f32 %v1209, %v1210
      %v1212 = vrot.slane %v1211, 4
      %v1213 = vmax.f32 %v1211, %v1212
      %v1214 = vrot.slane %v1213, 2
      %v1215 = vmax.f32 %v1213, %v1214
      %v1216 = vrot.slane %v1215, 1
      %v1217 = vmax.f32 %v1215, %v1216
      %v1218 = vpack.i.bf16 %v1217, %v1217
      %v1220 = vsel %vm1113, %v407, 4286644096
      %v1222 = vunpack.i.l.bf16 %v1220
      %v1223 = vunpack.i.h.bf16 %v1220
      %v1224 = vmax.f32 %v1222, %v1223
      %v1225 = vrot.slane %v1224, 4
      %v1226 = vmax.f32 %v1224, %v1225
      %v1227 = vrot.slane %v1226, 2
      %v1228 = vmax.f32 %v1226, %v1227
      %v1229 = vrot.slane %v1228, 1
      %v1230 = vmax.f32 %v1228, %v1229
      %v1231 = vpack.i.bf16 %v1230, %v1230
      %v1233 = vsel %vm1113, %v414, 4286644096
      %v1235 = vunpack.i.l.bf16 %v1233
      %v1236 = vunpack.i.h.bf16 %v1233
      %v1237 = vmax.f32 %v1235, %v1236
      %v1238 = vrot.slane %v1237, 4
      %v1239 = vmax.f32 %v1237, %v1238
      %v1240 = vrot.slane %v1239, 2
      %v1241 = vmax.f32 %v1239, %v1240
      %v1242 = vrot.slane %v1241, 1
      %v1243 = vmax.f32 %v1241, %v1242
      %v1244 = vpack.i.bf16 %v1243, %v1243
      %v1246 = vsel %vm1113, %v415, 4286644096
      %v1248 = vunpack.i.l.bf16 %v1246
      %v1249 = vunpack.i.h.bf16 %v1246
      %v1250 = vmax.f32 %v1248, %v1249
      %v1251 = vrot.slane %v1250, 4
      %v1252 = vmax.f32 %v1250, %v1251
      %v1253 = vrot.slane %v1252, 2
      %v1254 = vmax.f32 %v1252, %v1253
      %v1255 = vrot.slane %v1254, 1
      %v1256 = vmax.f32 %v1254, %v1255
      %v1257 = vpack.i.bf16 %v1256, %v1256
      %v1259 = vsel %vm1113, %v416, 4286644096
      %v1261 = vunpack.i.l.bf16 %v1259
      %v1262 = vunpack.i.h.bf16 %v1259
      %v1263 = vmax.f32 %v1261, %v1262
      %v1264 = vrot.slane %v1263, 4
      %v1265 = vmax.f32 %v1263, %v1264
      %v1266 = vrot.slane %v1265, 2
      %v1267 = vmax.f32 %v1265, %v1266
      %v1268 = vrot.slane %v1267, 1
      %v1269 = vmax.f32 %v1267, %v1268
      %v1270 = vpack.i.bf16 %v1269, %v1269
      %v1272 = vsel %vm1113, %v431, 4286644096
      %v1274 = vunpack.i.l.bf16 %v1272
      %v1275 = vunpack.i.h.bf16 %v1272
      %v1276 = vmax.f32 %v1274, %v1275
      %v1277 = vrot.slane %v1276, 4
      %v1278 = vmax.f32 %v1276, %v1277
      %v1279 = vrot.slane %v1278, 2
      %v1280 = vmax.f32 %v1278, %v1279
      %v1281 = vrot.slane %v1280, 1
      %v1282 = vmax.f32 %v1280, %v1281
      %v1283 = vpack.i.bf16 %v1282, %v1282
      %v1285 = vsel %vm1113, %v438, 4286644096
      %v1287 = vunpack.i.l.bf16 %v1285
      %v1288 = vunpack.i.h.bf16 %v1285
      %v1289 = vmax.f32 %v1287, %v1288
      %v1290 = vrot.slane %v1289, 4
      %v1291 = vmax.f32 %v1289, %v1290
      %v1292 = vrot.slane %v1291, 2
      %v1293 = vmax.f32 %v1291, %v1292
      %v1294 = vrot.slane %v1293, 1
      %v1295 = vmax.f32 %v1293, %v1294
      %v1296 = vpack.i.bf16 %v1295, %v1295
      %v1298 = vsel %vm1113, %v439, 4286644096
      %v1300 = vunpack.i.l.bf16 %v1298
      %v1301 = vunpack.i.h.bf16 %v1298
      %v1302 = vmax.f32 %v1300, %v1301
      %v1303 = vrot.slane %v1302, 4
      %v1304 = vmax.f32 %v1302, %v1303
      %v1305 = vrot.slane %v1304, 2
      %v1306 = vmax.f32 %v1304, %v1305
      %v1307 = vrot.slane %v1306, 1
      %v1308 = vmax.f32 %v1306, %v1307
      %v1309 = vpack.i.bf16 %v1308, %v1308
      %v1311 = vsel %vm1113, %v440, 4286644096
      %v1313 = vunpack.i.l.bf16 %v1311
      %v1314 = vunpack.i.h.bf16 %v1311
      %v1315 = vmax.f32 %v1313, %v1314
      %v1316 = vrot.slane %v1315, 4
      %v1317 = vmax.f32 %v1315, %v1316
      %v1318 = vrot.slane %v1317, 2
      %v1319 = vmax.f32 %v1317, %v1318
      %v1320 = vrot.slane %v1319, 1
      %v1321 = vmax.f32 %v1319, %v1320
      %v1322 = vpack.i.bf16 %v1321, %v1321
      %v1324 = vsel %vm1113, %v455, 4286644096
      %v1326 = vunpack.i.l.bf16 %v1324
      %v1327 = vunpack.i.h.bf16 %v1324
      %v1328 = vmax.f32 %v1326, %v1327
      %v1329 = vrot.slane %v1328, 4
      %v1330 = vmax.f32 %v1328, %v1329
      %v1331 = vrot.slane %v1330, 2
      %v1332 = vmax.f32 %v1330, %v1331
      %v1333 = vrot.slane %v1332, 1
      %v1334 = vmax.f32 %v1332, %v1333
      %v1335 = vpack.i.bf16 %v1334, %v1334
      %v1337 = vsel %vm1113, %v462, 4286644096
      %v1339 = vunpack.i.l.bf16 %v1337
      %v1340 = vunpack.i.h.bf16 %v1337
      %v1341 = vmax.f32 %v1339, %v1340
      %v1342 = vrot.slane %v1341, 4
      %v1343 = vmax.f32 %v1341, %v1342
      %v1344 = vrot.slane %v1343, 2
      %v1345 = vmax.f32 %v1343, %v1344
      %v1346 = vrot.slane %v1345, 1
      %v1347 = vmax.f32 %v1345, %v1346
      %v1348 = vpack.i.bf16 %v1347, %v1347
      %v1350 = vsel %vm1113, %v463, 4286644096
      %v1352 = vunpack.i.l.bf16 %v1350
      %v1353 = vunpack.i.h.bf16 %v1350
      %v1354 = vmax.f32 %v1352, %v1353
      %v1355 = vrot.slane %v1354, 4
      %v1356 = vmax.f32 %v1354, %v1355
      %v1357 = vrot.slane %v1356, 2
      %v1358 = vmax.f32 %v1356, %v1357
      %v1359 = vrot.slane %v1358, 1
      %v1360 = vmax.f32 %v1358, %v1359
      %v1361 = vpack.i.bf16 %v1360, %v1360
      %v1363 = vsel %vm1113, %v464, 4286644096
      %v1365 = vunpack.i.l.bf16 %v1363
      %v1366 = vunpack.i.h.bf16 %v1363
      %v1367 = vmax.f32 %v1365, %v1366
      %v1368 = vrot.slane %v1367, 4
      %v1369 = vmax.f32 %v1367, %v1368
      %v1370 = vrot.slane %v1369, 2
      %v1371 = vmax.f32 %v1369, %v1370
      %v1372 = vrot.slane %v1371, 1
      %v1373 = vmax.f32 %v1371, %v1372
      %v1374 = vpack.i.bf16 %v1373, %v1373
      %v1376 = vsel %vm1113, %v479, 4286644096
      %v1378 = vunpack.i.l.bf16 %v1376
      %v1379 = vunpack.i.h.bf16 %v1376
      %v1380 = vmax.f32 %v1378, %v1379
      %v1381 = vrot.slane %v1380, 4
      %v1382 = vmax.f32 %v1380, %v1381
      %v1383 = vrot.slane %v1382, 2
      %v1384 = vmax.f32 %v1382, %v1383
      %v1385 = vrot.slane %v1384, 1
      %v1386 = vmax.f32 %v1384, %v1385
      %v1387 = vpack.i.bf16 %v1386, %v1386
      %v1389 = vsel %vm1113, %v486, 4286644096
      %v1391 = vunpack.i.l.bf16 %v1389
      %v1392 = vunpack.i.h.bf16 %v1389
      %v1393 = vmax.f32 %v1391, %v1392
      %v1394 = vrot.slane %v1393, 4
      %v1395 = vmax.f32 %v1393, %v1394
      %v1396 = vrot.slane %v1395, 2
      %v1397 = vmax.f32 %v1395, %v1396
      %v1398 = vrot.slane %v1397, 1
      %v1399 = vmax.f32 %v1397, %v1398
      %v1400 = vpack.i.bf16 %v1399, %v1399
      %v1402 = vsel %vm1113, %v487, 4286644096
      %v1404 = vunpack.i.l.bf16 %v1402
      %v1405 = vunpack.i.h.bf16 %v1402
      %v1406 = vmax.f32 %v1404, %v1405
      %v1407 = vrot.slane %v1406, 4
      %v1408 = vmax.f32 %v1406, %v1407
      %v1409 = vrot.slane %v1408, 2
      %v1410 = vmax.f32 %v1408, %v1409
      %v1411 = vrot.slane %v1410, 1
      %v1412 = vmax.f32 %v1410, %v1411
      %v1413 = vpack.i.bf16 %v1412, %v1412
      %v1415 = vsel %vm1113, %v488, 4286644096
      %v1417 = vunpack.i.l.bf16 %v1415
      %v1418 = vunpack.i.h.bf16 %v1415
      %v1419 = vmax.f32 %v1417, %v1418
      %v1420 = vrot.slane %v1419, 4
      %v1421 = vmax.f32 %v1419, %v1420
      %v1422 = vrot.slane %v1421, 2
      %v1423 = vmax.f32 %v1421, %v1422
      %v1424 = vrot.slane %v1423, 1
      %v1425 = vmax.f32 %v1423, %v1424
      %v1426 = vpack.i.bf16 %v1425, %v1425
      %v1428 = vsel %vm1113, %v503, 4286644096
      %v1430 = vunpack.i.l.bf16 %v1428
      %v1431 = vunpack.i.h.bf16 %v1428
      %v1432 = vmax.f32 %v1430, %v1431
      %v1433 = vrot.slane %v1432, 4
      %v1434 = vmax.f32 %v1432, %v1433
      %v1435 = vrot.slane %v1434, 2
      %v1436 = vmax.f32 %v1434, %v1435
      %v1437 = vrot.slane %v1436, 1
      %v1438 = vmax.f32 %v1436, %v1437
      %v1439 = vpack.i.bf16 %v1438, %v1438
      %v1441 = vsel %vm1113, %v510, 4286644096
      %v1443 = vunpack.i.l.bf16 %v1441
      %v1444 = vunpack.i.h.bf16 %v1441
      %v1445 = vmax.f32 %v1443, %v1444
      %v1446 = vrot.slane %v1445, 4
      %v1447 = vmax.f32 %v1445, %v1446
      %v1448 = vrot.slane %v1447, 2
      %v1449 = vmax.f32 %v1447, %v1448
      %v1450 = vrot.slane %v1449, 1
      %v1451 = vmax.f32 %v1449, %v1450
      %v1452 = vpack.i.bf16 %v1451, %v1451
      %v1454 = vsel %vm1113, %v511, 4286644096
      %v1456 = vunpack.i.l.bf16 %v1454
      %v1457 = vunpack.i.h.bf16 %v1454
      %v1458 = vmax.f32 %v1456, %v1457
      %v1459 = vrot.slane %v1458, 4
      %v1460 = vmax.f32 %v1458, %v1459
      %v1461 = vrot.slane %v1460, 2
      %v1462 = vmax.f32 %v1460, %v1461
      %v1463 = vrot.slane %v1462, 1
      %v1464 = vmax.f32 %v1462, %v1463
      %v1465 = vpack.i.bf16 %v1464, %v1464
      %v1467 = vsel %vm1113, %v512, 4286644096
      %v1469 = vunpack.i.l.bf16 %v1467
      %v1470 = vunpack.i.h.bf16 %v1467
      %v1471 = vmax.f32 %v1469, %v1470
      %v1472 = vrot.slane %v1471, 4
      %v1473 = vmax.f32 %v1471, %v1472
      %v1474 = vrot.slane %v1473, 2
      %v1475 = vmax.f32 %v1473, %v1474
      %v1476 = vrot.slane %v1475, 1
      %v1477 = vmax.f32 %v1475, %v1476
      %v1478 = vpack.i.bf16 %v1477, %v1477
      %v1480 = vsel %vm1113, %v527, 4286644096
      %v1482 = vunpack.i.l.bf16 %v1480
      %v1483 = vunpack.i.h.bf16 %v1480
      %v1484 = vmax.f32 %v1482, %v1483
      %v1485 = vrot.slane %v1484, 4
      %v1486 = vmax.f32 %v1484, %v1485
      %v1487 = vrot.slane %v1486, 2
      %v1488 = vmax.f32 %v1486, %v1487
      %v1489 = vrot.slane %v1488, 1
      %v1490 = vmax.f32 %v1488, %v1489
      %v1491 = vpack.i.bf16 %v1490, %v1490
      %v1493 = vsel %vm1113, %v534, 4286644096
      %v1495 = vunpack.i.l.bf16 %v1493
      %v1496 = vunpack.i.h.bf16 %v1493
      %v1497 = vmax.f32 %v1495, %v1496
      %v1498 = vrot.slane %v1497, 4
      %v1499 = vmax.f32 %v1497, %v1498
      %v1500 = vrot.slane %v1499, 2
      %v1501 = vmax.f32 %v1499, %v1500
      %v1502 = vrot.slane %v1501, 1
      %v1503 = vmax.f32 %v1501, %v1502
      %v1504 = vpack.i.bf16 %v1503, %v1503
      %v1506 = vsel %vm1113, %v535, 4286644096
      %v1508 = vunpack.i.l.bf16 %v1506
      %v1509 = vunpack.i.h.bf16 %v1506
      %v1510 = vmax.f32 %v1508, %v1509
      %v1511 = vrot.slane %v1510, 4
      %v1512 = vmax.f32 %v1510, %v1511
      %v1513 = vrot.slane %v1512, 2
      %v1514 = vmax.f32 %v1512, %v1513
      %v1515 = vrot.slane %v1514, 1
      %v1516 = vmax.f32 %v1514, %v1515
      %v1517 = vpack.i.bf16 %v1516, %v1516
      %v1519 = vsel %vm1113, %v536, 4286644096
      %v1521 = vunpack.i.l.bf16 %v1519
      %v1522 = vunpack.i.h.bf16 %v1519
      %v1523 = vmax.f32 %v1521, %v1522
      %v1524 = vrot.slane %v1523, 4
      %v1525 = vmax.f32 %v1523, %v1524
      %v1526 = vrot.slane %v1525, 2
      %v1527 = vmax.f32 %v1525, %v1526
      %v1528 = vrot.slane %v1527, 1
      %v1529 = vmax.f32 %v1527, %v1528
      %v1530 = vpack.i.bf16 %v1529, %v1529
      %v1532 = vsel %vm1113, %v551, 4286644096
      %v1534 = vunpack.i.l.bf16 %v1532
      %v1535 = vunpack.i.h.bf16 %v1532
      %v1536 = vmax.f32 %v1534, %v1535
      %v1537 = vrot.slane %v1536, 4
      %v1538 = vmax.f32 %v1536, %v1537
      %v1539 = vrot.slane %v1538, 2
      %v1540 = vmax.f32 %v1538, %v1539
      %v1541 = vrot.slane %v1540, 1
      %v1542 = vmax.f32 %v1540, %v1541
      %v1543 = vpack.i.bf16 %v1542, %v1542
      %v1545 = vsel %vm1113, %v558, 4286644096
      %v1547 = vunpack.i.l.bf16 %v1545
      %v1548 = vunpack.i.h.bf16 %v1545
      %v1549 = vmax.f32 %v1547, %v1548
      %v1550 = vrot.slane %v1549, 4
      %v1551 = vmax.f32 %v1549, %v1550
      %v1552 = vrot.slane %v1551, 2
      %v1553 = vmax.f32 %v1551, %v1552
      %v1554 = vrot.slane %v1553, 1
      %v1555 = vmax.f32 %v1553, %v1554
      %v1556 = vpack.i.bf16 %v1555, %v1555
      %v1558 = vsel %vm1113, %v559, 4286644096
      %v1560 = vunpack.i.l.bf16 %v1558
      %v1561 = vunpack.i.h.bf16 %v1558
      %v1562 = vmax.f32 %v1560, %v1561
      %v1563 = vrot.slane %v1562, 4
      %v1564 = vmax.f32 %v1562, %v1563
      %v1565 = vrot.slane %v1564, 2
      %v1566 = vmax.f32 %v1564, %v1565
      %v1567 = vrot.slane %v1566, 1
      %v1568 = vmax.f32 %v1566, %v1567
      %v1569 = vpack.i.bf16 %v1568, %v1568
      %v1571 = vsel %vm1113, %v560, 4286644096
      %v1573 = vunpack.i.l.bf16 %v1571
      %v1574 = vunpack.i.h.bf16 %v1571
      %v1575 = vmax.f32 %v1573, %v1574
      %v1576 = vrot.slane %v1575, 4
      %v1577 = vmax.f32 %v1575, %v1576
      %v1578 = vrot.slane %v1577, 2
      %v1579 = vmax.f32 %v1577, %v1578
      %v1580 = vrot.slane %v1579, 1
      %v1581 = vmax.f32 %v1579, %v1580
      %v1582 = vpack.i.bf16 %v1581, %v1581
      %v1584 = vsel %vm1113, %v575, 4286644096
      %v1586 = vunpack.i.l.bf16 %v1584
      %v1587 = vunpack.i.h.bf16 %v1584
      %v1588 = vmax.f32 %v1586, %v1587
      %v1589 = vrot.slane %v1588, 4
      %v1590 = vmax.f32 %v1588, %v1589
      %v1591 = vrot.slane %v1590, 2
      %v1592 = vmax.f32 %v1590, %v1591
      %v1593 = vrot.slane %v1592, 1
      %v1594 = vmax.f32 %v1592, %v1593
      %v1595 = vpack.i.bf16 %v1594, %v1594
      %v1597 = vsel %vm1113, %v582, 4286644096
      %v1599 = vunpack.i.l.bf16 %v1597
      %v1600 = vunpack.i.h.bf16 %v1597
      %v1601 = vmax.f32 %v1599, %v1600
      %v1602 = vrot.slane %v1601, 4
      %v1603 = vmax.f32 %v1601, %v1602
      %v1604 = vrot.slane %v1603, 2
      %v1605 = vmax.f32 %v1603, %v1604
      %v1606 = vrot.slane %v1605, 1
      %v1607 = vmax.f32 %v1605, %v1606
      %v1608 = vpack.i.bf16 %v1607, %v1607
      %v1610 = vsel %vm1113, %v583, 4286644096
      %v1612 = vunpack.i.l.bf16 %v1610
      %v1613 = vunpack.i.h.bf16 %v1610
      %v1614 = vmax.f32 %v1612, %v1613
      %v1615 = vrot.slane %v1614, 4
      %v1616 = vmax.f32 %v1614, %v1615
      %v1617 = vrot.slane %v1616, 2
      %v1618 = vmax.f32 %v1616, %v1617
      %v1619 = vrot.slane %v1618, 1
      %v1620 = vmax.f32 %v1618, %v1619
      %v1621 = vpack.i.bf16 %v1620, %v1620
      %v1623 = vsel %vm1113, %v584, 4286644096
      %v1625 = vunpack.i.l.bf16 %v1623
      %v1626 = vunpack.i.h.bf16 %v1623
      %v1627 = vmax.f32 %v1625, %v1626
      %v1628 = vrot.slane %v1627, 4
      %v1629 = vmax.f32 %v1627, %v1628
      %v1630 = vrot.slane %v1629, 2
      %v1631 = vmax.f32 %v1629, %v1630
      %v1632 = vrot.slane %v1631, 1
      %v1633 = vmax.f32 %v1631, %v1632
      %v1634 = vpack.i.bf16 %v1633, %v1633
      %v1636 = vsel %vm1113, %v599, 4286644096
      %v1638 = vunpack.i.l.bf16 %v1636
      %v1639 = vunpack.i.h.bf16 %v1636
      %v1640 = vmax.f32 %v1638, %v1639
      %v1641 = vrot.slane %v1640, 4
      %v1642 = vmax.f32 %v1640, %v1641
      %v1643 = vrot.slane %v1642, 2
      %v1644 = vmax.f32 %v1642, %v1643
      %v1645 = vrot.slane %v1644, 1
      %v1646 = vmax.f32 %v1644, %v1645
      %v1647 = vpack.i.bf16 %v1646, %v1646
      %v1649 = vsel %vm1113, %v606, 4286644096
      %v1651 = vunpack.i.l.bf16 %v1649
      %v1652 = vunpack.i.h.bf16 %v1649
      %v1653 = vmax.f32 %v1651, %v1652
      %v1654 = vrot.slane %v1653, 4
      %v1655 = vmax.f32 %v1653, %v1654
      %v1656 = vrot.slane %v1655, 2
      %v1657 = vmax.f32 %v1655, %v1656
      %v1658 = vrot.slane %v1657, 1
      %v1659 = vmax.f32 %v1657, %v1658
      %v1660 = vpack.i.bf16 %v1659, %v1659
      %v1662 = vsel %vm1113, %v607, 4286644096
      %v1664 = vunpack.i.l.bf16 %v1662
      %v1665 = vunpack.i.h.bf16 %v1662
      %v1666 = vmax.f32 %v1664, %v1665
      %v1667 = vrot.slane %v1666, 4
      %v1668 = vmax.f32 %v1666, %v1667
      %v1669 = vrot.slane %v1668, 2
      %v1670 = vmax.f32 %v1668, %v1669
      %v1671 = vrot.slane %v1670, 1
      %v1672 = vmax.f32 %v1670, %v1671
      %v1673 = vpack.i.bf16 %v1672, %v1672
      %v1675 = vsel %vm1113, %v608, 4286644096
      %v1677 = vunpack.i.l.bf16 %v1675
      %v1678 = vunpack.i.h.bf16 %v1675
      %v1679 = vmax.f32 %v1677, %v1678
      %v1680 = vrot.slane %v1679, 4
      %v1681 = vmax.f32 %v1679, %v1680
      %v1682 = vrot.slane %v1681, 2
      %v1683 = vmax.f32 %v1681, %v1682
      %v1684 = vrot.slane %v1683, 1
      %v1685 = vmax.f32 %v1683, %v1684
      %v1686 = vpack.i.bf16 %v1685, %v1685
      %v1688 = vsel %vm1113, %v623, 4286644096
      %v1690 = vunpack.i.l.bf16 %v1688
      %v1691 = vunpack.i.h.bf16 %v1688
      %v1692 = vmax.f32 %v1690, %v1691
      %v1693 = vrot.slane %v1692, 4
      %v1694 = vmax.f32 %v1692, %v1693
      %v1695 = vrot.slane %v1694, 2
      %v1696 = vmax.f32 %v1694, %v1695
      %v1697 = vrot.slane %v1696, 1
      %v1698 = vmax.f32 %v1696, %v1697
      %v1699 = vpack.i.bf16 %v1698, %v1698
      %v1701 = vsel %vm1113, %v630, 4286644096
      %v1703 = vunpack.i.l.bf16 %v1701
      %v1704 = vunpack.i.h.bf16 %v1701
      %v1705 = vmax.f32 %v1703, %v1704
      %v1706 = vrot.slane %v1705, 4
      %v1707 = vmax.f32 %v1705, %v1706
      %v1708 = vrot.slane %v1707, 2
      %v1709 = vmax.f32 %v1707, %v1708
      %v1710 = vrot.slane %v1709, 1
      %v1711 = vmax.f32 %v1709, %v1710
      %v1712 = vpack.i.bf16 %v1711, %v1711
      %v1714 = vsel %vm1113, %v631, 4286644096
      %v1716 = vunpack.i.l.bf16 %v1714
      %v1717 = vunpack.i.h.bf16 %v1714
      %v1718 = vmax.f32 %v1716, %v1717
      %v1719 = vrot.slane %v1718, 4
      %v1720 = vmax.f32 %v1718, %v1719
      %v1721 = vrot.slane %v1720, 2
      %v1722 = vmax.f32 %v1720, %v1721
      %v1723 = vrot.slane %v1722, 1
      %v1724 = vmax.f32 %v1722, %v1723
      %v1725 = vpack.i.bf16 %v1724, %v1724
      %v1727 = vsel %vm1113, %v632, 4286644096
      %v1729 = vunpack.i.l.bf16 %v1727
      %v1730 = vunpack.i.h.bf16 %v1727
      %v1731 = vmax.f32 %v1729, %v1730
      %v1732 = vrot.slane %v1731, 4
      %v1733 = vmax.f32 %v1731, %v1732
      %v1734 = vrot.slane %v1733, 2
      %v1735 = vmax.f32 %v1733, %v1734
      %v1736 = vrot.slane %v1735, 1
      %v1737 = vmax.f32 %v1735, %v1736
      %v1738 = vpack.i.bf16 %v1737, %v1737
      %v1740 = vsel %vm1113, %v647, 4286644096
      %v1742 = vunpack.i.l.bf16 %v1740
      %v1743 = vunpack.i.h.bf16 %v1740
      %v1744 = vmax.f32 %v1742, %v1743
      %v1745 = vrot.slane %v1744, 4
      %v1746 = vmax.f32 %v1744, %v1745
      %v1747 = vrot.slane %v1746, 2
      %v1748 = vmax.f32 %v1746, %v1747
      %v1749 = vrot.slane %v1748, 1
      %v1750 = vmax.f32 %v1748, %v1749
      %v1751 = vpack.i.bf16 %v1750, %v1750
      %v1753 = vsel %vm1113, %v654, 4286644096
      %v1755 = vunpack.i.l.bf16 %v1753
      %v1756 = vunpack.i.h.bf16 %v1753
      %v1757 = vmax.f32 %v1755, %v1756
      %v1758 = vrot.slane %v1757, 4
      %v1759 = vmax.f32 %v1757, %v1758
      %v1760 = vrot.slane %v1759, 2
      %v1761 = vmax.f32 %v1759, %v1760
      %v1762 = vrot.slane %v1761, 1
      %v1763 = vmax.f32 %v1761, %v1762
      %v1764 = vpack.i.bf16 %v1763, %v1763
      %v1766 = vsel %vm1113, %v655, 4286644096
      %v1768 = vunpack.i.l.bf16 %v1766
      %v1769 = vunpack.i.h.bf16 %v1766
      %v1770 = vmax.f32 %v1768, %v1769
      %v1771 = vrot.slane %v1770, 4
      %v1772 = vmax.f32 %v1770, %v1771
      %v1773 = vrot.slane %v1772, 2
      %v1774 = vmax.f32 %v1772, %v1773
      %v1775 = vrot.slane %v1774, 1
      %v1776 = vmax.f32 %v1774, %v1775
      %v1777 = vpack.i.bf16 %v1776, %v1776
      %v1779 = vsel %vm1113, %v656, 4286644096
      %v1781 = vunpack.i.l.bf16 %v1779
      %v1782 = vunpack.i.h.bf16 %v1779
      %v1783 = vmax.f32 %v1781, %v1782
      %v1784 = vrot.slane %v1783, 4
      %v1785 = vmax.f32 %v1783, %v1784
      %v1786 = vrot.slane %v1785, 2
      %v1787 = vmax.f32 %v1785, %v1786
      %v1788 = vrot.slane %v1787, 1
      %v1789 = vmax.f32 %v1787, %v1788
      %v1790 = vpack.i.bf16 %v1789, %v1789
      %v1792 = vsel %vm1113, %v671, 4286644096
      %v1794 = vunpack.i.l.bf16 %v1792
      %v1795 = vunpack.i.h.bf16 %v1792
      %v1796 = vmax.f32 %v1794, %v1795
      %v1797 = vrot.slane %v1796, 4
      %v1798 = vmax.f32 %v1796, %v1797
      %v1799 = vrot.slane %v1798, 2
      %v1800 = vmax.f32 %v1798, %v1799
      %v1801 = vrot.slane %v1800, 1
      %v1802 = vmax.f32 %v1800, %v1801
      %v1803 = vpack.i.bf16 %v1802, %v1802
      %v1805 = vsel %vm1113, %v678, 4286644096
      %v1807 = vunpack.i.l.bf16 %v1805
      %v1808 = vunpack.i.h.bf16 %v1805
      %v1809 = vmax.f32 %v1807, %v1808
      %v1810 = vrot.slane %v1809, 4
      %v1811 = vmax.f32 %v1809, %v1810
      %v1812 = vrot.slane %v1811, 2
      %v1813 = vmax.f32 %v1811, %v1812
      %v1814 = vrot.slane %v1813, 1
      %v1815 = vmax.f32 %v1813, %v1814
      %v1816 = vpack.i.bf16 %v1815, %v1815
      %v1818 = vsel %vm1113, %v679, 4286644096
      %v1820 = vunpack.i.l.bf16 %v1818
      %v1821 = vunpack.i.h.bf16 %v1818
      %v1822 = vmax.f32 %v1820, %v1821
      %v1823 = vrot.slane %v1822, 4
      %v1824 = vmax.f32 %v1822, %v1823
      %v1825 = vrot.slane %v1824, 2
      %v1826 = vmax.f32 %v1824, %v1825
      %v1827 = vrot.slane %v1826, 1
      %v1828 = vmax.f32 %v1826, %v1827
      %v1829 = vpack.i.bf16 %v1828, %v1828
      %v1831 = vsel %vm1113, %v680, 4286644096
      %v1833 = vunpack.i.l.bf16 %v1831
      %v1834 = vunpack.i.h.bf16 %v1831
      %v1835 = vmax.f32 %v1833, %v1834
      %v1836 = vrot.slane %v1835, 4
      %v1837 = vmax.f32 %v1835, %v1836
      %v1838 = vrot.slane %v1837, 2
      %v1839 = vmax.f32 %v1837, %v1838
      %v1840 = vrot.slane %v1839, 1
      %v1841 = vmax.f32 %v1839, %v1840
      %v1842 = vpack.i.bf16 %v1841, %v1841
      %v1844 = vsel %vm1113, %v695, 4286644096
      %v1846 = vunpack.i.l.bf16 %v1844
      %v1847 = vunpack.i.h.bf16 %v1844
      %v1848 = vmax.f32 %v1846, %v1847
      %v1849 = vrot.slane %v1848, 4
      %v1850 = vmax.f32 %v1848, %v1849
      %v1851 = vrot.slane %v1850, 2
      %v1852 = vmax.f32 %v1850, %v1851
      %v1853 = vrot.slane %v1852, 1
      %v1854 = vmax.f32 %v1852, %v1853
      %v1855 = vpack.i.bf16 %v1854, %v1854
      %v1857 = vsel %vm1113, %v702, 4286644096
      %v1859 = vunpack.i.l.bf16 %v1857
      %v1860 = vunpack.i.h.bf16 %v1857
      %v1861 = vmax.f32 %v1859, %v1860
      %v1862 = vrot.slane %v1861, 4
      %v1863 = vmax.f32 %v1861, %v1862
      %v1864 = vrot.slane %v1863, 2
      %v1865 = vmax.f32 %v1863, %v1864
      %v1866 = vrot.slane %v1865, 1
      %v1867 = vmax.f32 %v1865, %v1866
      %v1868 = vpack.i.bf16 %v1867, %v1867
      %v1870 = vsel %vm1113, %v703, 4286644096
      %v1872 = vunpack.i.l.bf16 %v1870
      %v1873 = vunpack.i.h.bf16 %v1870
      %v1874 = vmax.f32 %v1872, %v1873
      %v1875 = vrot.slane %v1874, 4
      %v1876 = vmax.f32 %v1874, %v1875
      %v1877 = vrot.slane %v1876, 2
      %v1878 = vmax.f32 %v1876, %v1877
      %v1879 = vrot.slane %v1878, 1
      %v1880 = vmax.f32 %v1878, %v1879
      %v1881 = vpack.i.bf16 %v1880, %v1880
      %v1883 = vsel %vm1113, %v704, 4286644096
      %v1885 = vunpack.i.l.bf16 %v1883
      %v1886 = vunpack.i.h.bf16 %v1883
      %v1887 = vmax.f32 %v1885, %v1886
      %v1888 = vrot.slane %v1887, 4
      %v1889 = vmax.f32 %v1887, %v1888
      %v1890 = vrot.slane %v1889, 2
      %v1891 = vmax.f32 %v1889, %v1890
      %v1892 = vrot.slane %v1891, 1
      %v1893 = vmax.f32 %v1891, %v1892
      %v1894 = vpack.i.bf16 %v1893, %v1893
      %v1896 = vsel %vm1113, %v719, 4286644096
      %v1898 = vunpack.i.l.bf16 %v1896
      %v1899 = vunpack.i.h.bf16 %v1896
      %v1900 = vmax.f32 %v1898, %v1899
      %v1901 = vrot.slane %v1900, 4
      %v1902 = vmax.f32 %v1900, %v1901
      %v1903 = vrot.slane %v1902, 2
      %v1904 = vmax.f32 %v1902, %v1903
      %v1905 = vrot.slane %v1904, 1
      %v1906 = vmax.f32 %v1904, %v1905
      %v1907 = vpack.i.bf16 %v1906, %v1906
      %v1909 = vsel %vm1113, %v726, 4286644096
      %v1911 = vunpack.i.l.bf16 %v1909
      %v1912 = vunpack.i.h.bf16 %v1909
      %v1913 = vmax.f32 %v1911, %v1912
      %v1914 = vrot.slane %v1913, 4
      %v1915 = vmax.f32 %v1913, %v1914
      %v1916 = vrot.slane %v1915, 2
      %v1917 = vmax.f32 %v1915, %v1916
      %v1918 = vrot.slane %v1917, 1
      %v1919 = vmax.f32 %v1917, %v1918
      %v1920 = vpack.i.bf16 %v1919, %v1919
      %v1922 = vsel %vm1113, %v727, 4286644096
      %v1924 = vunpack.i.l.bf16 %v1922
      %v1925 = vunpack.i.h.bf16 %v1922
      %v1926 = vmax.f32 %v1924, %v1925
      %v1927 = vrot.slane %v1926, 4
      %v1928 = vmax.f32 %v1926, %v1927
      %v1929 = vrot.slane %v1928, 2
      %v1930 = vmax.f32 %v1928, %v1929
      %v1931 = vrot.slane %v1930, 1
      %v1932 = vmax.f32 %v1930, %v1931
      %v1933 = vpack.i.bf16 %v1932, %v1932
      %v1935 = vsel %vm1113, %v728, 4286644096
      %v1937 = vunpack.i.l.bf16 %v1935
      %v1938 = vunpack.i.h.bf16 %v1935
      %v1939 = vmax.f32 %v1937, %v1938
      %v1940 = vrot.slane %v1939, 4
      %v1941 = vmax.f32 %v1939, %v1940
      %v1942 = vrot.slane %v1941, 2
      %v1943 = vmax.f32 %v1941, %v1942
      %v1944 = vrot.slane %v1943, 1
      %v1945 = vmax.f32 %v1943, %v1944
      %v1946 = vpack.i.bf16 %v1945, %v1945
      %v1948 = vsel %vm1113, %v743, 4286644096
      %v1950 = vunpack.i.l.bf16 %v1948
      %v1951 = vunpack.i.h.bf16 %v1948
      %v1952 = vmax.f32 %v1950, %v1951
      %v1953 = vrot.slane %v1952, 4
      %v1954 = vmax.f32 %v1952, %v1953
      %v1955 = vrot.slane %v1954, 2
      %v1956 = vmax.f32 %v1954, %v1955
      %v1957 = vrot.slane %v1956, 1
      %v1958 = vmax.f32 %v1956, %v1957
      %v1959 = vpack.i.bf16 %v1958, %v1958
      %v1961 = vsel %vm1113, %v750, 4286644096
      %v1963 = vunpack.i.l.bf16 %v1961
      %v1964 = vunpack.i.h.bf16 %v1961
      %v1965 = vmax.f32 %v1963, %v1964
      %v1966 = vrot.slane %v1965, 4
      %v1967 = vmax.f32 %v1965, %v1966
      %v1968 = vrot.slane %v1967, 2
      %v1969 = vmax.f32 %v1967, %v1968
      %v1970 = vrot.slane %v1969, 1
      %v1971 = vmax.f32 %v1969, %v1970
      %v1972 = vpack.i.bf16 %v1971, %v1971
      %v1974 = vsel %vm1113, %v751, 4286644096
      %v1976 = vunpack.i.l.bf16 %v1974
      %v1977 = vunpack.i.h.bf16 %v1974
      %v1978 = vmax.f32 %v1976, %v1977
      %v1979 = vrot.slane %v1978, 4
      %v1980 = vmax.f32 %v1978, %v1979
      %v1981 = vrot.slane %v1980, 2
      %v1982 = vmax.f32 %v1980, %v1981
      %v1983 = vrot.slane %v1982, 1
      %v1984 = vmax.f32 %v1982, %v1983
      %v1985 = vpack.i.bf16 %v1984, %v1984
      %v1987 = vsel %vm1113, %v752, 4286644096
      %v1989 = vunpack.i.l.bf16 %v1987
      %v1990 = vunpack.i.h.bf16 %v1987
      %v1991 = vmax.f32 %v1989, %v1990
      %v1992 = vrot.slane %v1991, 4
      %v1993 = vmax.f32 %v1991, %v1992
      %v1994 = vrot.slane %v1993, 2
      %v1995 = vmax.f32 %v1993, %v1994
      %v1996 = vrot.slane %v1995, 1
      %v1997 = vmax.f32 %v1995, %v1996
      %v1998 = vpack.i.bf16 %v1997, %v1997
      %v2000 = vsel %vm1113, %v767, 4286644096
      %v2002 = vunpack.i.l.bf16 %v2000
      %v2003 = vunpack.i.h.bf16 %v2000
      %v2004 = vmax.f32 %v2002, %v2003
      %v2005 = vrot.slane %v2004, 4
      %v2006 = vmax.f32 %v2004, %v2005
      %v2007 = vrot.slane %v2006, 2
      %v2008 = vmax.f32 %v2006, %v2007
      %v2009 = vrot.slane %v2008, 1
      %v2010 = vmax.f32 %v2008, %v2009
      %v2011 = vpack.i.bf16 %v2010, %v2010
      %v2013 = vsel %vm1113, %v774, 4286644096
      %v2015 = vunpack.i.l.bf16 %v2013
      %v2016 = vunpack.i.h.bf16 %v2013
      %v2017 = vmax.f32 %v2015, %v2016
      %v2018 = vrot.slane %v2017, 4
      %v2019 = vmax.f32 %v2017, %v2018
      %v2020 = vrot.slane %v2019, 2
      %v2021 = vmax.f32 %v2019, %v2020
      %v2022 = vrot.slane %v2021, 1
      %v2023 = vmax.f32 %v2021, %v2022
      %v2024 = vpack.i.bf16 %v2023, %v2023
      %v2026 = vsel %vm1113, %v775, 4286644096
      %v2028 = vunpack.i.l.bf16 %v2026
      %v2029 = vunpack.i.h.bf16 %v2026
      %v2030 = vmax.f32 %v2028, %v2029
      %v2031 = vrot.slane %v2030, 4
      %v2032 = vmax.f32 %v2030, %v2031
      %v2033 = vrot.slane %v2032, 2
      %v2034 = vmax.f32 %v2032, %v2033
      %v2035 = vrot.slane %v2034, 1
      %v2036 = vmax.f32 %v2034, %v2035
      %v2037 = vpack.i.bf16 %v2036, %v2036
      %v2039 = vsel %vm1113, %v776, 4286644096
      %v2041 = vunpack.i.l.bf16 %v2039
      %v2042 = vunpack.i.h.bf16 %v2039
      %v2043 = vmax.f32 %v2041, %v2042
      %v2044 = vrot.slane %v2043, 4
      %v2045 = vmax.f32 %v2043, %v2044
      %v2046 = vrot.slane %v2045, 2
      %v2047 = vmax.f32 %v2045, %v2046
      %v2048 = vrot.slane %v2047, 1
      %v2049 = vmax.f32 %v2047, %v2048
      %v2050 = vpack.i.bf16 %v2049, %v2049
      %v2052 = vsel %vm1113, %v791, 4286644096
      %v2054 = vunpack.i.l.bf16 %v2052
      %v2055 = vunpack.i.h.bf16 %v2052
      %v2056 = vmax.f32 %v2054, %v2055
      %v2057 = vrot.slane %v2056, 4
      %v2058 = vmax.f32 %v2056, %v2057
      %v2059 = vrot.slane %v2058, 2
      %v2060 = vmax.f32 %v2058, %v2059
      %v2061 = vrot.slane %v2060, 1
      %v2062 = vmax.f32 %v2060, %v2061
      %v2063 = vpack.i.bf16 %v2062, %v2062
      %v2065 = vsel %vm1113, %v798, 4286644096
      %v2067 = vunpack.i.l.bf16 %v2065
      %v2068 = vunpack.i.h.bf16 %v2065
      %v2069 = vmax.f32 %v2067, %v2068
      %v2070 = vrot.slane %v2069, 4
      %v2071 = vmax.f32 %v2069, %v2070
      %v2072 = vrot.slane %v2071, 2
      %v2073 = vmax.f32 %v2071, %v2072
      %v2074 = vrot.slane %v2073, 1
      %v2075 = vmax.f32 %v2073, %v2074
      %v2076 = vpack.i.bf16 %v2075, %v2075
      %v2078 = vsel %vm1113, %v799, 4286644096
      %v2080 = vunpack.i.l.bf16 %v2078
      %v2081 = vunpack.i.h.bf16 %v2078
      %v2082 = vmax.f32 %v2080, %v2081
      %v2083 = vrot.slane %v2082, 4
      %v2084 = vmax.f32 %v2082, %v2083
      %v2085 = vrot.slane %v2084, 2
      %v2086 = vmax.f32 %v2084, %v2085
      %v2087 = vrot.slane %v2086, 1
      %v2088 = vmax.f32 %v2086, %v2087
      %v2089 = vpack.i.bf16 %v2088, %v2088
      %v2091 = vsel %vm1113, %v800, 4286644096
      %v2093 = vunpack.i.l.bf16 %v2091
      %v2094 = vunpack.i.h.bf16 %v2091
      %v2095 = vmax.f32 %v2093, %v2094
      %v2096 = vrot.slane %v2095, 4
      %v2097 = vmax.f32 %v2095, %v2096
      %v2098 = vrot.slane %v2097, 2
      %v2099 = vmax.f32 %v2097, %v2098
      %v2100 = vrot.slane %v2099, 1
      %v2101 = vmax.f32 %v2099, %v2100
      %v2102 = vpack.i.bf16 %v2101, %v2101
      %v2104 = vsel %vm1113, %v815, 4286644096
      %v2106 = vunpack.i.l.bf16 %v2104
      %v2107 = vunpack.i.h.bf16 %v2104
      %v2108 = vmax.f32 %v2106, %v2107
      %v2109 = vrot.slane %v2108, 4
      %v2110 = vmax.f32 %v2108, %v2109
      %v2111 = vrot.slane %v2110, 2
      %v2112 = vmax.f32 %v2110, %v2111
      %v2113 = vrot.slane %v2112, 1
      %v2114 = vmax.f32 %v2112, %v2113
      %v2115 = vpack.i.bf16 %v2114, %v2114
      %v2117 = vsel %vm1113, %v822, 4286644096
      %v2119 = vunpack.i.l.bf16 %v2117
      %v2120 = vunpack.i.h.bf16 %v2117
      %v2121 = vmax.f32 %v2119, %v2120
      %v2122 = vrot.slane %v2121, 4
      %v2123 = vmax.f32 %v2121, %v2122
      %v2124 = vrot.slane %v2123, 2
      %v2125 = vmax.f32 %v2123, %v2124
      %v2126 = vrot.slane %v2125, 1
      %v2127 = vmax.f32 %v2125, %v2126
      %v2128 = vpack.i.bf16 %v2127, %v2127
      %v2130 = vsel %vm1113, %v823, 4286644096
      %v2132 = vunpack.i.l.bf16 %v2130
      %v2133 = vunpack.i.h.bf16 %v2130
      %v2134 = vmax.f32 %v2132, %v2133
      %v2135 = vrot.slane %v2134, 4
      %v2136 = vmax.f32 %v2134, %v2135
      %v2137 = vrot.slane %v2136, 2
      %v2138 = vmax.f32 %v2136, %v2137
      %v2139 = vrot.slane %v2138, 1
      %v2140 = vmax.f32 %v2138, %v2139
      %v2141 = vpack.i.bf16 %v2140, %v2140
      %v2143 = vsel %vm1113, %v824, 4286644096
      %v2145 = vunpack.i.l.bf16 %v2143
      %v2146 = vunpack.i.h.bf16 %v2143
      %v2147 = vmax.f32 %v2145, %v2146
      %v2148 = vrot.slane %v2147, 4
      %v2149 = vmax.f32 %v2147, %v2148
      %v2150 = vrot.slane %v2149, 2
      %v2151 = vmax.f32 %v2149, %v2150
      %v2152 = vrot.slane %v2151, 1
      %v2153 = vmax.f32 %v2151, %v2152
      %v2154 = vpack.i.bf16 %v2153, %v2153
      %v2156 = vsel %vm1113, %v839, 4286644096
      %v2158 = vunpack.i.l.bf16 %v2156
      %v2159 = vunpack.i.h.bf16 %v2156
      %v2160 = vmax.f32 %v2158, %v2159
      %v2161 = vrot.slane %v2160, 4
      %v2162 = vmax.f32 %v2160, %v2161
      %v2163 = vrot.slane %v2162, 2
      %v2164 = vmax.f32 %v2162, %v2163
      %v2165 = vrot.slane %v2164, 1
      %v2166 = vmax.f32 %v2164, %v2165
      %v2167 = vpack.i.bf16 %v2166, %v2166
      %v2169 = vsel %vm1113, %v846, 4286644096
      %v2171 = vunpack.i.l.bf16 %v2169
      %v2172 = vunpack.i.h.bf16 %v2169
      %v2173 = vmax.f32 %v2171, %v2172
      %v2174 = vrot.slane %v2173, 4
      %v2175 = vmax.f32 %v2173, %v2174
      %v2176 = vrot.slane %v2175, 2
      %v2177 = vmax.f32 %v2175, %v2176
      %v2178 = vrot.slane %v2177, 1
      %v2179 = vmax.f32 %v2177, %v2178
      %v2180 = vpack.i.bf16 %v2179, %v2179
      %v2182 = vsel %vm1113, %v847, 4286644096
      %v2184 = vunpack.i.l.bf16 %v2182
      %v2185 = vunpack.i.h.bf16 %v2182
      %v2186 = vmax.f32 %v2184, %v2185
      %v2187 = vrot.slane %v2186, 4
      %v2188 = vmax.f32 %v2186, %v2187
      %v2189 = vrot.slane %v2188, 2
      %v2190 = vmax.f32 %v2188, %v2189
      %v2191 = vrot.slane %v2190, 1
      %v2192 = vmax.f32 %v2190, %v2191
      %v2193 = vpack.i.bf16 %v2192, %v2192
      %v2195 = vsel %vm1113, %v848, 4286644096
      %v2197 = vunpack.i.l.bf16 %v2195
      %v2198 = vunpack.i.h.bf16 %v2195
      %v2199 = vmax.f32 %v2197, %v2198
      %v2200 = vrot.slane %v2199, 4
      %v2201 = vmax.f32 %v2199, %v2200
      %v2202 = vrot.slane %v2201, 2
      %v2203 = vmax.f32 %v2201, %v2202
      %v2204 = vrot.slane %v2203, 1
      %v2205 = vmax.f32 %v2203, %v2204
      %v2206 = vpack.i.bf16 %v2205, %v2205
      %v2208 = vsel %vm1113, %v863, 4286644096
      %v2210 = vunpack.i.l.bf16 %v2208
      %v2211 = vunpack.i.h.bf16 %v2208
      %v2212 = vmax.f32 %v2210, %v2211
      %v2213 = vrot.slane %v2212, 4
      %v2214 = vmax.f32 %v2212, %v2213
      %v2215 = vrot.slane %v2214, 2
      %v2216 = vmax.f32 %v2214, %v2215
      %v2217 = vrot.slane %v2216, 1
      %v2218 = vmax.f32 %v2216, %v2217
      %v2219 = vpack.i.bf16 %v2218, %v2218
      %v2221 = vsel %vm1113, %v870, 4286644096
      %v2223 = vunpack.i.l.bf16 %v2221
      %v2224 = vunpack.i.h.bf16 %v2221
      %v2225 = vmax.f32 %v2223, %v2224
      %v2226 = vrot.slane %v2225, 4
      %v2227 = vmax.f32 %v2225, %v2226
      %v2228 = vrot.slane %v2227, 2
      %v2229 = vmax.f32 %v2227, %v2228
      %v2230 = vrot.slane %v2229, 1
      %v2231 = vmax.f32 %v2229, %v2230
      %v2232 = vpack.i.bf16 %v2231, %v2231
      %v2234 = vsel %vm1113, %v871, 4286644096
      %v2236 = vunpack.i.l.bf16 %v2234
      %v2237 = vunpack.i.h.bf16 %v2234
      %v2238 = vmax.f32 %v2236, %v2237
      %v2239 = vrot.slane %v2238, 4
      %v2240 = vmax.f32 %v2238, %v2239
      %v2241 = vrot.slane %v2240, 2
      %v2242 = vmax.f32 %v2240, %v2241
      %v2243 = vrot.slane %v2242, 1
      %v2244 = vmax.f32 %v2242, %v2243
      %v2245 = vpack.i.bf16 %v2244, %v2244
      %v2247 = vsel %vm1113, %v872, 4286644096
      %v2249 = vunpack.i.l.bf16 %v2247
      %v2250 = vunpack.i.h.bf16 %v2247
      %v2251 = vmax.f32 %v2249, %v2250
      %v2252 = vrot.slane %v2251, 4
      %v2253 = vmax.f32 %v2251, %v2252
      %v2254 = vrot.slane %v2253, 2
      %v2255 = vmax.f32 %v2253, %v2254
      %v2256 = vrot.slane %v2255, 1
      %v2257 = vmax.f32 %v2255, %v2256
      %v2258 = vpack.i.bf16 %v2257, %v2257
      %v2260 = vsel %vm1113, %v887, 4286644096
      %v2262 = vunpack.i.l.bf16 %v2260
      %v2263 = vunpack.i.h.bf16 %v2260
      %v2264 = vmax.f32 %v2262, %v2263
      %v2265 = vrot.slane %v2264, 4
      %v2266 = vmax.f32 %v2264, %v2265
      %v2267 = vrot.slane %v2266, 2
      %v2268 = vmax.f32 %v2266, %v2267
      %v2269 = vrot.slane %v2268, 1
      %v2270 = vmax.f32 %v2268, %v2269
      %v2271 = vpack.i.bf16 %v2270, %v2270
      %v2273 = vsel %vm1113, %v894, 4286644096
      %v2275 = vunpack.i.l.bf16 %v2273
      %v2276 = vunpack.i.h.bf16 %v2273
      %v2277 = vmax.f32 %v2275, %v2276
      %v2278 = vrot.slane %v2277, 4
      %v2279 = vmax.f32 %v2277, %v2278
      %v2280 = vrot.slane %v2279, 2
      %v2281 = vmax.f32 %v2279, %v2280
      %v2282 = vrot.slane %v2281, 1
      %v2283 = vmax.f32 %v2281, %v2282
      %v2284 = vpack.i.bf16 %v2283, %v2283
      %v2286 = vsel %vm1113, %v895, 4286644096
      %v2288 = vunpack.i.l.bf16 %v2286
      %v2289 = vunpack.i.h.bf16 %v2286
      %v2290 = vmax.f32 %v2288, %v2289
      %v2291 = vrot.slane %v2290, 4
      %v2292 = vmax.f32 %v2290, %v2291
      %v2293 = vrot.slane %v2292, 2
      %v2294 = vmax.f32 %v2292, %v2293
      %v2295 = vrot.slane %v2294, 1
      %v2296 = vmax.f32 %v2294, %v2295
      %v2297 = vpack.i.bf16 %v2296, %v2296
      %v2299 = vsel %vm1113, %v896, 4286644096
      %v2301 = vunpack.i.l.bf16 %v2299
      %v2302 = vunpack.i.h.bf16 %v2299
      %v2303 = vmax.f32 %v2301, %v2302
      %v2304 = vrot.slane %v2303, 4
      %v2305 = vmax.f32 %v2303, %v2304
      %v2306 = vrot.slane %v2305, 2
      %v2307 = vmax.f32 %v2305, %v2306
      %v2308 = vrot.slane %v2307, 1
      %v2309 = vmax.f32 %v2307, %v2308
      %v2310 = vpack.i.bf16 %v2309, %v2309
      %v2312 = vsel %vm1113, %v911, 4286644096
      %v2314 = vunpack.i.l.bf16 %v2312
      %v2315 = vunpack.i.h.bf16 %v2312
      %v2316 = vmax.f32 %v2314, %v2315
      %v2317 = vrot.slane %v2316, 4
      %v2318 = vmax.f32 %v2316, %v2317
      %v2319 = vrot.slane %v2318, 2
      %v2320 = vmax.f32 %v2318, %v2319
      %v2321 = vrot.slane %v2320, 1
      %v2322 = vmax.f32 %v2320, %v2321
      %v2323 = vpack.i.bf16 %v2322, %v2322
      %v2325 = vsel %vm1113, %v918, 4286644096
      %v2327 = vunpack.i.l.bf16 %v2325
      %v2328 = vunpack.i.h.bf16 %v2325
      %v2329 = vmax.f32 %v2327, %v2328
      %v2330 = vrot.slane %v2329, 4
      %v2331 = vmax.f32 %v2329, %v2330
      %v2332 = vrot.slane %v2331, 2
      %v2333 = vmax.f32 %v2331, %v2332
      %v2334 = vrot.slane %v2333, 1
      %v2335 = vmax.f32 %v2333, %v2334
      %v2336 = vpack.i.bf16 %v2335, %v2335
      %v2338 = vsel %vm1113, %v919, 4286644096
      %v2340 = vunpack.i.l.bf16 %v2338
      %v2341 = vunpack.i.h.bf16 %v2338
      %v2342 = vmax.f32 %v2340, %v2341
      %v2343 = vrot.slane %v2342, 4
      %v2344 = vmax.f32 %v2342, %v2343
      %v2345 = vrot.slane %v2344, 2
      %v2346 = vmax.f32 %v2344, %v2345
      %v2347 = vrot.slane %v2346, 1
      %v2348 = vmax.f32 %v2346, %v2347
      %v2349 = vpack.i.bf16 %v2348, %v2348
      %v2351 = vsel %vm1113, %v920, 4286644096
      %v2353 = vunpack.i.l.bf16 %v2351
      %v2354 = vunpack.i.h.bf16 %v2351
      %v2355 = vmax.f32 %v2353, %v2354
      %v2356 = vrot.slane %v2355, 4
      %v2357 = vmax.f32 %v2355, %v2356
      %v2358 = vrot.slane %v2357, 2
      %v2359 = vmax.f32 %v2357, %v2358
      %v2360 = vrot.slane %v2359, 1
      %v2361 = vmax.f32 %v2359, %v2360
      %v2362 = vpack.i.bf16 %v2361, %v2361
      %v2364 = vsel %vm1113, %v935, 4286644096
      %v2366 = vunpack.i.l.bf16 %v2364
      %v2367 = vunpack.i.h.bf16 %v2364
      %v2368 = vmax.f32 %v2366, %v2367
      %v2369 = vrot.slane %v2368, 4
      %v2370 = vmax.f32 %v2368, %v2369
      %v2371 = vrot.slane %v2370, 2
      %v2372 = vmax.f32 %v2370, %v2371
      %v2373 = vrot.slane %v2372, 1
      %v2374 = vmax.f32 %v2372, %v2373
      %v2375 = vpack.i.bf16 %v2374, %v2374
      %v2377 = vsel %vm1113, %v942, 4286644096
      %v2379 = vunpack.i.l.bf16 %v2377
      %v2380 = vunpack.i.h.bf16 %v2377
      %v2381 = vmax.f32 %v2379, %v2380
      %v2382 = vrot.slane %v2381, 4
      %v2383 = vmax.f32 %v2381, %v2382
      %v2384 = vrot.slane %v2383, 2
      %v2385 = vmax.f32 %v2383, %v2384
      %v2386 = vrot.slane %v2385, 1
      %v2387 = vmax.f32 %v2385, %v2386
      %v2388 = vpack.i.bf16 %v2387, %v2387
      %v2390 = vsel %vm1113, %v943, 4286644096
      %v2392 = vunpack.i.l.bf16 %v2390
      %v2393 = vunpack.i.h.bf16 %v2390
      %v2394 = vmax.f32 %v2392, %v2393
      %v2395 = vrot.slane %v2394, 4
      %v2396 = vmax.f32 %v2394, %v2395
      %v2397 = vrot.slane %v2396, 2
      %v2398 = vmax.f32 %v2396, %v2397
      %v2399 = vrot.slane %v2398, 1
      %v2400 = vmax.f32 %v2398, %v2399
      %v2401 = vpack.i.bf16 %v2400, %v2400
      %v2403 = vsel %vm1113, %v944, 4286644096
      %v2405 = vunpack.i.l.bf16 %v2403
      %v2406 = vunpack.i.h.bf16 %v2403
      %v2407 = vmax.f32 %v2405, %v2406
      %v2408 = vrot.slane %v2407, 4
      %v2409 = vmax.f32 %v2407, %v2408
      %v2410 = vrot.slane %v2409, 2
      %v2411 = vmax.f32 %v2409, %v2410
      %v2412 = vrot.slane %v2411, 1
      %v2413 = vmax.f32 %v2411, %v2412
      %v2414 = vpack.i.bf16 %v2413, %v2413
      %v2416 = vsel %vm1113, %v959, 4286644096
      %v2418 = vunpack.i.l.bf16 %v2416
      %v2419 = vunpack.i.h.bf16 %v2416
      %v2420 = vmax.f32 %v2418, %v2419
      %v2421 = vrot.slane %v2420, 4
      %v2422 = vmax.f32 %v2420, %v2421
      %v2423 = vrot.slane %v2422, 2
      %v2424 = vmax.f32 %v2422, %v2423
      %v2425 = vrot.slane %v2424, 1
      %v2426 = vmax.f32 %v2424, %v2425
      %v2427 = vpack.i.bf16 %v2426, %v2426
      %v2429 = vsel %vm1113, %v966, 4286644096
      %v2431 = vunpack.i.l.bf16 %v2429
      %v2432 = vunpack.i.h.bf16 %v2429
      %v2433 = vmax.f32 %v2431, %v2432
      %v2434 = vrot.slane %v2433, 4
      %v2435 = vmax.f32 %v2433, %v2434
      %v2436 = vrot.slane %v2435, 2
      %v2437 = vmax.f32 %v2435, %v2436
      %v2438 = vrot.slane %v2437, 1
      %v2439 = vmax.f32 %v2437, %v2438
      %v2440 = vpack.i.bf16 %v2439, %v2439
      %v2442 = vsel %vm1113, %v967, 4286644096
      %v2444 = vunpack.i.l.bf16 %v2442
      %v2445 = vunpack.i.h.bf16 %v2442
      %v2446 = vmax.f32 %v2444, %v2445
      %v2447 = vrot.slane %v2446, 4
      %v2448 = vmax.f32 %v2446, %v2447
      %v2449 = vrot.slane %v2448, 2
      %v2450 = vmax.f32 %v2448, %v2449
      %v2451 = vrot.slane %v2450, 1
      %v2452 = vmax.f32 %v2450, %v2451
      %v2453 = vpack.i.bf16 %v2452, %v2452
      %v2455 = vsel %vm1113, %v968, 4286644096
      %v2457 = vunpack.i.l.bf16 %v2455
      %v2458 = vunpack.i.h.bf16 %v2455
      %v2459 = vmax.f32 %v2457, %v2458
      %v2460 = vrot.slane %v2459, 4
      %v2461 = vmax.f32 %v2459, %v2460
      %v2462 = vrot.slane %v2461, 2
      %v2463 = vmax.f32 %v2461, %v2462
      %v2464 = vrot.slane %v2463, 1
      %v2465 = vmax.f32 %v2463, %v2464
      %v2466 = vpack.i.bf16 %v2465, %v2465
      %v2468 = vsel %vm1113, %v983, 4286644096
      %v2470 = vunpack.i.l.bf16 %v2468
      %v2471 = vunpack.i.h.bf16 %v2468
      %v2472 = vmax.f32 %v2470, %v2471
      %v2473 = vrot.slane %v2472, 4
      %v2474 = vmax.f32 %v2472, %v2473
      %v2475 = vrot.slane %v2474, 2
      %v2476 = vmax.f32 %v2474, %v2475
      %v2477 = vrot.slane %v2476, 1
      %v2478 = vmax.f32 %v2476, %v2477
      %v2479 = vpack.i.bf16 %v2478, %v2478
      %v2481 = vsel %vm1113, %v990, 4286644096
      %v2483 = vunpack.i.l.bf16 %v2481
      %v2484 = vunpack.i.h.bf16 %v2481
      %v2485 = vmax.f32 %v2483, %v2484
      %v2486 = vrot.slane %v2485, 4
      %v2487 = vmax.f32 %v2485, %v2486
      %v2488 = vrot.slane %v2487, 2
      %v2489 = vmax.f32 %v2487, %v2488
      %v2490 = vrot.slane %v2489, 1
      %v2491 = vmax.f32 %v2489, %v2490
      %v2492 = vpack.i.bf16 %v2491, %v2491
      %v2494 = vsel %vm1113, %v991, 4286644096
      %v2496 = vunpack.i.l.bf16 %v2494
      %v2497 = vunpack.i.h.bf16 %v2494
      %v2498 = vmax.f32 %v2496, %v2497
      %v2499 = vrot.slane %v2498, 4
      %v2500 = vmax.f32 %v2498, %v2499
      %v2501 = vrot.slane %v2500, 2
      %v2502 = vmax.f32 %v2500, %v2501
      %v2503 = vrot.slane %v2502, 1
      %v2504 = vmax.f32 %v2502, %v2503
      %v2505 = vpack.i.bf16 %v2504, %v2504
      %v2507 = vsel %vm1113, %v992, 4286644096
      %v2509 = vunpack.i.l.bf16 %v2507
      %v2510 = vunpack.i.h.bf16 %v2507
      %v2511 = vmax.f32 %v2509, %v2510
      %v2512 = vrot.slane %v2511, 4
      %v2513 = vmax.f32 %v2511, %v2512
      %v2514 = vrot.slane %v2513, 2
      %v2515 = vmax.f32 %v2513, %v2514
      %v2516 = vrot.slane %v2515, 1
      %v2517 = vmax.f32 %v2515, %v2516
      %v2518 = vpack.i.bf16 %v2517, %v2517
      %v2520 = vsel %vm1113, %v1007, 4286644096
      %v2522 = vunpack.i.l.bf16 %v2520
      %v2523 = vunpack.i.h.bf16 %v2520
      %v2524 = vmax.f32 %v2522, %v2523
      %v2525 = vrot.slane %v2524, 4
      %v2526 = vmax.f32 %v2524, %v2525
      %v2527 = vrot.slane %v2526, 2
      %v2528 = vmax.f32 %v2526, %v2527
      %v2529 = vrot.slane %v2528, 1
      %v2530 = vmax.f32 %v2528, %v2529
      %v2531 = vpack.i.bf16 %v2530, %v2530
      %v2533 = vsel %vm1113, %v1014, 4286644096
      %v2535 = vunpack.i.l.bf16 %v2533
      %v2536 = vunpack.i.h.bf16 %v2533
      %v2537 = vmax.f32 %v2535, %v2536
      %v2538 = vrot.slane %v2537, 4
      %v2539 = vmax.f32 %v2537, %v2538
      %v2540 = vrot.slane %v2539, 2
      %v2541 = vmax.f32 %v2539, %v2540
      %v2542 = vrot.slane %v2541, 1
      %v2543 = vmax.f32 %v2541, %v2542
      %v2544 = vpack.i.bf16 %v2543, %v2543
      %v2546 = vsel %vm1113, %v1015, 4286644096
      %v2548 = vunpack.i.l.bf16 %v2546
      %v2549 = vunpack.i.h.bf16 %v2546
      %v2550 = vmax.f32 %v2548, %v2549
      %v2551 = vrot.slane %v2550, 4
      %v2552 = vmax.f32 %v2550, %v2551
      %v2553 = vrot.slane %v2552, 2
      %v2554 = vmax.f32 %v2552, %v2553
      %v2555 = vrot.slane %v2554, 1
      %v2556 = vmax.f32 %v2554, %v2555
      %v2557 = vpack.i.bf16 %v2556, %v2556
      %v2559 = vsel %vm1113, %v1016, 4286644096
      %v2561 = vunpack.i.l.bf16 %v2559
      %v2562 = vunpack.i.h.bf16 %v2559
      %v2563 = vmax.f32 %v2561, %v2562
      %v2564 = vrot.slane %v2563, 4
      %v2565 = vmax.f32 %v2563, %v2564
      %v2566 = vrot.slane %v2565, 2
      %v2567 = vmax.f32 %v2565, %v2566
      %v2568 = vrot.slane %v2567, 1
      %v2569 = vmax.f32 %v2567, %v2568
      %v2570 = vpack.i.bf16 %v2569, %v2569
      %v2572 = vsel %vm1113, %v1031, 4286644096
      %v2574 = vunpack.i.l.bf16 %v2572
      %v2575 = vunpack.i.h.bf16 %v2572
      %v2576 = vmax.f32 %v2574, %v2575
      %v2577 = vrot.slane %v2576, 4
      %v2578 = vmax.f32 %v2576, %v2577
      %v2579 = vrot.slane %v2578, 2
      %v2580 = vmax.f32 %v2578, %v2579
      %v2581 = vrot.slane %v2580, 1
      %v2582 = vmax.f32 %v2580, %v2581
      %v2583 = vpack.i.bf16 %v2582, %v2582
      %v2585 = vsel %vm1113, %v1038, 4286644096
      %v2587 = vunpack.i.l.bf16 %v2585
      %v2588 = vunpack.i.h.bf16 %v2585
      %v2589 = vmax.f32 %v2587, %v2588
      %v2590 = vrot.slane %v2589, 4
      %v2591 = vmax.f32 %v2589, %v2590
      %v2592 = vrot.slane %v2591, 2
      %v2593 = vmax.f32 %v2591, %v2592
      %v2594 = vrot.slane %v2593, 1
      %v2595 = vmax.f32 %v2593, %v2594
      %v2596 = vpack.i.bf16 %v2595, %v2595
      %v2598 = vsel %vm1113, %v1039, 4286644096
      %v2600 = vunpack.i.l.bf16 %v2598
      %v2601 = vunpack.i.h.bf16 %v2598
      %v2602 = vmax.f32 %v2600, %v2601
      %v2603 = vrot.slane %v2602, 4
      %v2604 = vmax.f32 %v2602, %v2603
      %v2605 = vrot.slane %v2604, 2
      %v2606 = vmax.f32 %v2604, %v2605
      %v2607 = vrot.slane %v2606, 1
      %v2608 = vmax.f32 %v2606, %v2607
      %v2609 = vpack.i.bf16 %v2608, %v2608
      %v2611 = vsel %vm1113, %v1040, 4286644096
      %v2613 = vunpack.i.l.bf16 %v2611
      %v2614 = vunpack.i.h.bf16 %v2611
      %v2615 = vmax.f32 %v2613, %v2614
      %v2616 = vrot.slane %v2615, 4
      %v2617 = vmax.f32 %v2615, %v2616
      %v2618 = vrot.slane %v2617, 2
      %v2619 = vmax.f32 %v2617, %v2618
      %v2620 = vrot.slane %v2619, 1
      %v2621 = vmax.f32 %v2619, %v2620
      %v2622 = vpack.i.bf16 %v2621, %v2621
      %v2624 = vsel %vm1113, %v1055, 4286644096
      %v2626 = vunpack.i.l.bf16 %v2624
      %v2627 = vunpack.i.h.bf16 %v2624
      %v2628 = vmax.f32 %v2626, %v2627
      %v2629 = vrot.slane %v2628, 4
      %v2630 = vmax.f32 %v2628, %v2629
      %v2631 = vrot.slane %v2630, 2
      %v2632 = vmax.f32 %v2630, %v2631
      %v2633 = vrot.slane %v2632, 1
      %v2634 = vmax.f32 %v2632, %v2633
      %v2635 = vpack.i.bf16 %v2634, %v2634
      %v2637 = vsel %vm1113, %v1062, 4286644096
      %v2639 = vunpack.i.l.bf16 %v2637
      %v2640 = vunpack.i.h.bf16 %v2637
      %v2641 = vmax.f32 %v2639, %v2640
      %v2642 = vrot.slane %v2641, 4
      %v2643 = vmax.f32 %v2641, %v2642
      %v2644 = vrot.slane %v2643, 2
      %v2645 = vmax.f32 %v2643, %v2644
      %v2646 = vrot.slane %v2645, 1
      %v2647 = vmax.f32 %v2645, %v2646
      %v2648 = vpack.i.bf16 %v2647, %v2647
      %v2650 = vsel %vm1113, %v1063, 4286644096
      %v2652 = vunpack.i.l.bf16 %v2650
      %v2653 = vunpack.i.h.bf16 %v2650
      %v2654 = vmax.f32 %v2652, %v2653
      %v2655 = vrot.slane %v2654, 4
      %v2656 = vmax.f32 %v2654, %v2655
      %v2657 = vrot.slane %v2656, 2
      %v2658 = vmax.f32 %v2656, %v2657
      %v2659 = vrot.slane %v2658, 1
      %v2660 = vmax.f32 %v2658, %v2659
      %v2661 = vpack.i.bf16 %v2660, %v2660
      %v2663 = vsel %vm1113, %v1064, 4286644096
      %v2665 = vunpack.i.l.bf16 %v2663
      %v2666 = vunpack.i.h.bf16 %v2663
      %v2667 = vmax.f32 %v2665, %v2666
      %v2668 = vrot.slane %v2667, 4
      %v2669 = vmax.f32 %v2667, %v2668
      %v2670 = vrot.slane %v2669, 2
      %v2671 = vmax.f32 %v2669, %v2670
      %v2672 = vrot.slane %v2671, 1
      %v2673 = vmax.f32 %v2671, %v2672
      %v2674 = vpack.i.bf16 %v2673, %v2673
      %v2676 = vsel %vm1113, %v1079, 4286644096
      %v2678 = vunpack.i.l.bf16 %v2676
      %v2679 = vunpack.i.h.bf16 %v2676
      %v2680 = vmax.f32 %v2678, %v2679
      %v2681 = vrot.slane %v2680, 4
      %v2682 = vmax.f32 %v2680, %v2681
      %v2683 = vrot.slane %v2682, 2
      %v2684 = vmax.f32 %v2682, %v2683
      %v2685 = vrot.slane %v2684, 1
      %v2686 = vmax.f32 %v2684, %v2685
      %v2687 = vpack.i.bf16 %v2686, %v2686
      %v2689 = vsel %vm1113, %v1086, 4286644096
      %v2691 = vunpack.i.l.bf16 %v2689
      %v2692 = vunpack.i.h.bf16 %v2689
      %v2693 = vmax.f32 %v2691, %v2692
      %v2694 = vrot.slane %v2693, 4
      %v2695 = vmax.f32 %v2693, %v2694
      %v2696 = vrot.slane %v2695, 2
      %v2697 = vmax.f32 %v2695, %v2696
      %v2698 = vrot.slane %v2697, 1
      %v2699 = vmax.f32 %v2697, %v2698
      %v2700 = vpack.i.bf16 %v2699, %v2699
      %v2702 = vsel %vm1113, %v1087, 4286644096
      %v2704 = vunpack.i.l.bf16 %v2702
      %v2705 = vunpack.i.h.bf16 %v2702
      %v2706 = vmax.f32 %v2704, %v2705
      %v2707 = vrot.slane %v2706, 4
      %v2708 = vmax.f32 %v2706, %v2707
      %v2709 = vrot.slane %v2708, 2
      %v2710 = vmax.f32 %v2708, %v2709
      %v2711 = vrot.slane %v2710, 1
      %v2712 = vmax.f32 %v2710, %v2711
      %v2713 = vpack.i.bf16 %v2712, %v2712
      %v2715 = vsel %vm1113, %v1088, 4286644096
      %v2717 = vunpack.i.l.bf16 %v2715
      %v2718 = vunpack.i.h.bf16 %v2715
      %v2719 = vmax.f32 %v2717, %v2718
      %v2720 = vrot.slane %v2719, 4
      %v2721 = vmax.f32 %v2719, %v2720
      %v2722 = vrot.slane %v2721, 2
      %v2723 = vmax.f32 %v2721, %v2722
      %v2724 = vrot.slane %v2723, 1
      %v2725 = vmax.f32 %v2723, %v2724
      %v2726 = vpack.i.bf16 %v2725, %v2725
      %v2728 = vsel %vm1113, %v1103, 4286644096
      %v2730 = vunpack.i.l.bf16 %v2728
      %v2731 = vunpack.i.h.bf16 %v2728
      %v2732 = vmax.f32 %v2730, %v2731
      %v2733 = vrot.slane %v2732, 4
      %v2734 = vmax.f32 %v2732, %v2733
      %v2735 = vrot.slane %v2734, 2
      %v2736 = vmax.f32 %v2734, %v2735
      %v2737 = vrot.slane %v2736, 1
      %v2738 = vmax.f32 %v2736, %v2737
      %v2739 = vpack.i.bf16 %v2738, %v2738
      %v2741 = vsel %vm1113, %v1110, 4286644096
      %v2743 = vunpack.i.l.bf16 %v2741
      %v2744 = vunpack.i.h.bf16 %v2741
      %v2745 = vmax.f32 %v2743, %v2744
      %v2746 = vrot.slane %v2745, 4
      %v2747 = vmax.f32 %v2745, %v2746
      %v2748 = vrot.slane %v2747, 2
      %v2749 = vmax.f32 %v2747, %v2748
      %v2750 = vrot.slane %v2749, 1
      %v2751 = vmax.f32 %v2749, %v2750
      %v2752 = vpack.i.bf16 %v2751, %v2751
      %v2754 = vsel %vm1113, %v1111, 4286644096
      %v2756 = vunpack.i.l.bf16 %v2754
      %v2757 = vunpack.i.h.bf16 %v2754
      %v2758 = vmax.f32 %v2756, %v2757
      %v2759 = vrot.slane %v2758, 4
      %v2760 = vmax.f32 %v2758, %v2759
      %v2761 = vrot.slane %v2760, 2
      %v2762 = vmax.f32 %v2760, %v2761
      %v2763 = vrot.slane %v2762, 1
      %v2764 = vmax.f32 %v2762, %v2763
      %v2765 = vpack.i.bf16 %v2764, %v2764
      %v2767 = vsel %vm1113, %v1112, 4286644096
      %v2769 = vunpack.i.l.bf16 %v2767
      %v2770 = vunpack.i.h.bf16 %v2767
      %v2771 = vmax.f32 %v2769, %v2770
      %v2772 = vrot.slane %v2771, 4
      %v2773 = vmax.f32 %v2771, %v2772
      %v2774 = vrot.slane %v2773, 2
      %v2775 = vmax.f32 %v2773, %v2774
      %v2776 = vrot.slane %v2775, 1
      %v2777 = vmax.f32 %v2775, %v2776
      %v2778 = vpack.i.bf16 %v2777, %v2777
      %vm2779 = vcmask 31744
      %v2781 = vsel %vm2779, %v1127, 4286644096
      %v2784 = vsel %vm2779, %v1231, 4286644096
      %v2786 = vmax.bf16 %v2781, %v2784
      %v2788 = vsel %vm2779, %v1140, 4286644096
      %v2791 = vsel %vm2779, %v1244, 4286644096
      %v2793 = vmax.bf16 %v2788, %v2791
      %v2795 = vsel %vm2779, %v1153, 4286644096
      %v2798 = vsel %vm2779, %v1257, 4286644096
      %v2800 = vmax.bf16 %v2795, %v2798
      %v2802 = vsel %vm2779, %v1166, 4286644096
      %v2805 = vsel %vm2779, %v1270, 4286644096
      %v2807 = vmax.bf16 %v2802, %v2805
      %v2809 = vsel %vm2779, %v1179, 4286644096
      %v2812 = vsel %vm2779, %v1283, 4286644096
      %v2814 = vmax.bf16 %v2809, %v2812
      %v2816 = vsel %vm2779, %v1192, 4286644096
      %v2819 = vsel %vm2779, %v1296, 4286644096
      %v2821 = vmax.bf16 %v2816, %v2819
      %v2823 = vsel %vm2779, %v1205, 4286644096
      %v2826 = vsel %vm2779, %v1309, 4286644096
      %v2828 = vmax.bf16 %v2823, %v2826
      %v2830 = vsel %vm2779, %v1218, 4286644096
      %v2833 = vsel %vm2779, %v1322, 4286644096
      %v2835 = vmax.bf16 %v2830, %v2833
      %v2837 = vsel %vm2779, %v1335, 4286644096
      %v2840 = vsel %vm2779, %v1439, 4286644096
      %v2842 = vmax.bf16 %v2837, %v2840
      %v2844 = vsel %vm2779, %v1348, 4286644096
      %v2847 = vsel %vm2779, %v1452, 4286644096
      %v2849 = vmax.bf16 %v2844, %v2847
      %v2851 = vsel %vm2779, %v1361, 4286644096
      %v2854 = vsel %vm2779, %v1465, 4286644096
      %v2856 = vmax.bf16 %v2851, %v2854
      %v2858 = vsel %vm2779, %v1374, 4286644096
      %v2861 = vsel %vm2779, %v1478, 4286644096
      %v2863 = vmax.bf16 %v2858, %v2861
      %v2865 = vsel %vm2779, %v1387, 4286644096
      %v2868 = vsel %vm2779, %v1491, 4286644096
      %v2870 = vmax.bf16 %v2865, %v2868
      %v2872 = vsel %vm2779, %v1400, 4286644096
      %v2875 = vsel %vm2779, %v1504, 4286644096
      %v2877 = vmax.bf16 %v2872, %v2875
      %v2879 = vsel %vm2779, %v1413, 4286644096
      %v2882 = vsel %vm2779, %v1517, 4286644096
      %v2884 = vmax.bf16 %v2879, %v2882
      %v2886 = vsel %vm2779, %v1426, 4286644096
      %v2889 = vsel %vm2779, %v1530, 4286644096
      %v2891 = vmax.bf16 %v2886, %v2889
      %v2893 = vsel %vm2779, %v1543, 4286644096
      %v2896 = vsel %vm2779, %v1647, 4286644096
      %v2898 = vmax.bf16 %v2893, %v2896
      %v2900 = vsel %vm2779, %v1556, 4286644096
      %v2903 = vsel %vm2779, %v1660, 4286644096
      %v2905 = vmax.bf16 %v2900, %v2903
      %v2907 = vsel %vm2779, %v1569, 4286644096
      %v2910 = vsel %vm2779, %v1673, 4286644096
      %v2912 = vmax.bf16 %v2907, %v2910
      %v2914 = vsel %vm2779, %v1582, 4286644096
      %v2917 = vsel %vm2779, %v1686, 4286644096
      %v2919 = vmax.bf16 %v2914, %v2917
      %v2921 = vsel %vm2779, %v1595, 4286644096
      %v2924 = vsel %vm2779, %v1699, 4286644096
      %v2926 = vmax.bf16 %v2921, %v2924
      %v2928 = vsel %vm2779, %v1608, 4286644096
      %v2931 = vsel %vm2779, %v1712, 4286644096
      %v2933 = vmax.bf16 %v2928, %v2931
      %v2935 = vsel %vm2779, %v1621, 4286644096
      %v2938 = vsel %vm2779, %v1725, 4286644096
      %v2940 = vmax.bf16 %v2935, %v2938
      %v2942 = vsel %vm2779, %v1634, 4286644096
      %v2945 = vsel %vm2779, %v1738, 4286644096
      %v2947 = vmax.bf16 %v2942, %v2945
      %v2949 = vsel %vm2779, %v1751, 4286644096
      %v2952 = vsel %vm2779, %v1855, 4286644096
      %v2954 = vmax.bf16 %v2949, %v2952
      %v2956 = vsel %vm2779, %v1764, 4286644096
      %v2959 = vsel %vm2779, %v1868, 4286644096
      %v2961 = vmax.bf16 %v2956, %v2959
      %v2963 = vsel %vm2779, %v1777, 4286644096
      %v2966 = vsel %vm2779, %v1881, 4286644096
      %v2968 = vmax.bf16 %v2963, %v2966
      %v2970 = vsel %vm2779, %v1790, 4286644096
      %v2973 = vsel %vm2779, %v1894, 4286644096
      %v2975 = vmax.bf16 %v2970, %v2973
      %v2977 = vsel %vm2779, %v1803, 4286644096
      %v2980 = vsel %vm2779, %v1907, 4286644096
      %v2982 = vmax.bf16 %v2977, %v2980
      %v2984 = vsel %vm2779, %v1816, 4286644096
      %v2987 = vsel %vm2779, %v1920, 4286644096
      %v2989 = vmax.bf16 %v2984, %v2987
      %v2991 = vsel %vm2779, %v1829, 4286644096
      %v2994 = vsel %vm2779, %v1933, 4286644096
      %v2996 = vmax.bf16 %v2991, %v2994
      %v2998 = vsel %vm2779, %v1842, 4286644096
      %v3001 = vsel %vm2779, %v1946, 4286644096
      %v3003 = vmax.bf16 %v2998, %v3001
      %v3005 = vsel %vm2779, %v1959, 4286644096
      %v3008 = vsel %vm2779, %v2063, 4286644096
      %v3010 = vmax.bf16 %v3005, %v3008
      %v3012 = vsel %vm2779, %v1972, 4286644096
      %v3015 = vsel %vm2779, %v2076, 4286644096
      %v3017 = vmax.bf16 %v3012, %v3015
      %v3019 = vsel %vm2779, %v1985, 4286644096
      %v3022 = vsel %vm2779, %v2089, 4286644096
      %v3024 = vmax.bf16 %v3019, %v3022
      %v3026 = vsel %vm2779, %v1998, 4286644096
      %v3029 = vsel %vm2779, %v2102, 4286644096
      %v3031 = vmax.bf16 %v3026, %v3029
      %v3033 = vsel %vm2779, %v2011, 4286644096
      %v3036 = vsel %vm2779, %v2115, 4286644096
      %v3038 = vmax.bf16 %v3033, %v3036
      %v3040 = vsel %vm2779, %v2024, 4286644096
      %v3043 = vsel %vm2779, %v2128, 4286644096
      %v3045 = vmax.bf16 %v3040, %v3043
      %v3047 = vsel %vm2779, %v2037, 4286644096
      %v3050 = vsel %vm2779, %v2141, 4286644096
      %v3052 = vmax.bf16 %v3047, %v3050
      %v3054 = vsel %vm2779, %v2050, 4286644096
      %v3057 = vsel %vm2779, %v2154, 4286644096
      %v3059 = vmax.bf16 %v3054, %v3057
      %v3061 = vsel %vm2779, %v2167, 4286644096
      %v3064 = vsel %vm2779, %v2271, 4286644096
      %v3066 = vmax.bf16 %v3061, %v3064
      %v3068 = vsel %vm2779, %v2180, 4286644096
      %v3071 = vsel %vm2779, %v2284, 4286644096
      %v3073 = vmax.bf16 %v3068, %v3071
      %v3075 = vsel %vm2779, %v2193, 4286644096
      %v3078 = vsel %vm2779, %v2297, 4286644096
      %v3080 = vmax.bf16 %v3075, %v3078
      %v3082 = vsel %vm2779, %v2206, 4286644096
      %v3085 = vsel %vm2779, %v2310, 4286644096
      %v3087 = vmax.bf16 %v3082, %v3085
      %v3089 = vsel %vm2779, %v2219, 4286644096
      %v3092 = vsel %vm2779, %v2323, 4286644096
      %v3094 = vmax.bf16 %v3089, %v3092
      %v3096 = vsel %vm2779, %v2232, 4286644096
      %v3099 = vsel %vm2779, %v2336, 4286644096
      %v3101 = vmax.bf16 %v3096, %v3099
      %v3103 = vsel %vm2779, %v2245, 4286644096
      %v3106 = vsel %vm2779, %v2349, 4286644096
      %v3108 = vmax.bf16 %v3103, %v3106
      %v3110 = vsel %vm2779, %v2258, 4286644096
      %v3113 = vsel %vm2779, %v2362, 4286644096
      %v3115 = vmax.bf16 %v3110, %v3113
      %v3117 = vsel %vm2779, %v2375, 4286644096
      %v3120 = vsel %vm2779, %v2479, 4286644096
      %v3122 = vmax.bf16 %v3117, %v3120
      %v3124 = vsel %vm2779, %v2388, 4286644096
      %v3127 = vsel %vm2779, %v2492, 4286644096
      %v3129 = vmax.bf16 %v3124, %v3127
      %v3131 = vsel %vm2779, %v2401, 4286644096
      %v3134 = vsel %vm2779, %v2505, 4286644096
      %v3136 = vmax.bf16 %v3131, %v3134
      %v3138 = vsel %vm2779, %v2414, 4286644096
      %v3141 = vsel %vm2779, %v2518, 4286644096
      %v3143 = vmax.bf16 %v3138, %v3141
      %v3145 = vsel %vm2779, %v2427, 4286644096
      %v3148 = vsel %vm2779, %v2531, 4286644096
      %v3150 = vmax.bf16 %v3145, %v3148
      %v3152 = vsel %vm2779, %v2440, 4286644096
      %v3155 = vsel %vm2779, %v2544, 4286644096
      %v3157 = vmax.bf16 %v3152, %v3155
      %v3159 = vsel %vm2779, %v2453, 4286644096
      %v3162 = vsel %vm2779, %v2557, 4286644096
      %v3164 = vmax.bf16 %v3159, %v3162
      %v3166 = vsel %vm2779, %v2466, 4286644096
      %v3169 = vsel %vm2779, %v2570, 4286644096
      %v3171 = vmax.bf16 %v3166, %v3169
      %v3173 = vsel %vm2779, %v2583, 4286644096
      %v3176 = vsel %vm2779, %v2687, 4286644096
      %v3178 = vmax.bf16 %v3173, %v3176
      %v3180 = vsel %vm2779, %v2596, 4286644096
      %v3183 = vsel %vm2779, %v2700, 4286644096
      %v3185 = vmax.bf16 %v3180, %v3183
      %v3187 = vsel %vm2779, %v2609, 4286644096
      %v3190 = vsel %vm2779, %v2713, 4286644096
      %v3192 = vmax.bf16 %v3187, %v3190
      %v3194 = vsel %vm2779, %v2622, 4286644096
      %v3197 = vsel %vm2779, %v2726, 4286644096
      %v3199 = vmax.bf16 %v3194, %v3197
      %v3201 = vsel %vm2779, %v2635, 4286644096
      %v3204 = vsel %vm2779, %v2739, 4286644096
      %v3206 = vmax.bf16 %v3201, %v3204
      %v3208 = vsel %vm2779, %v2648, 4286644096
      %v3211 = vsel %vm2779, %v2752, 4286644096
      %v3213 = vmax.bf16 %v3208, %v3211
      %v3215 = vsel %vm2779, %v2661, 4286644096
      %v3218 = vsel %vm2779, %v2765, 4286644096
      %v3220 = vmax.bf16 %v3215, %v3218
      %v3222 = vsel %vm2779, %v2674, 4286644096
      %v3225 = vsel %vm2779, %v2778, 4286644096
      %v3227 = vmax.bf16 %v3222, %v3225
      %vm3228 = vcmask 27648
      %3229 = vst.msk [vmem:[#allocation2] sm:$0xf] %vm3228, 0
      %3230 = vst.msk [vmem:[#allocation2 + $0x4] sm:$0x1] %vm1113, 0
      %s3231 = scalar_lea.vmem [#allocation2], 72
      %3232 = vst.msk [vmem:[%s3231] sm:$0xf] %vm3228, 0
      %3233 = vst.msk [vmem:[%s3231 + $0x4] sm:$0x1] %vm1113, 0
      %vm3234 = vcmask 24576
      %vm3235 = vsmask.f32 256
      %vm3236 = vmand %vm3234, %vm3235
      %v3237 = vld [vmem:[#allocation2] sm:$0x1]
      %v3238 = vsel %vm3236, 0, %v3237
      %3239 = vst [vmem:[#allocation2] sm:$0x1] %v3238
      %v3240 = vld [vmem:[#allocation2 + $0x8] sm:$0x1]
      %v3241 = vsel %vm3236, 0, %v3240
      %3242 = vst [vmem:[#allocation2 + $0x8] sm:$0x1] %v3241
      %v3243 = vld [vmem:[#allocation2 + $0x10] sm:$0x1]
      %v3244 = vsel %vm3236, 0, %v3243
      %3245 = vst [vmem:[#allocation2 + $0x10] sm:$0x1] %v3244
      %v3246 = vld [vmem:[#allocation2 + $0x18] sm:$0x1]
      %v3247 = vsel %vm3236, 0, %v3246
      %3248 = vst [vmem:[#allocation2 + $0x18] sm:$0x1] %v3247
      %v3249 = vld [vmem:[#allocation2 + $0x20] sm:$0x1]
      %v3250 = vsel %vm3236, 0, %v3249
      %3251 = vst [vmem:[#allocation2 + $0x20] sm:$0x1] %v3250
      %v3252 = vld [vmem:[#allocation2 + $0x28] sm:$0x1]
      %v3253 = vsel %vm3236, 0, %v3252
      %3254 = vst [vmem:[#allocation2 + $0x28] sm:$0x1] %v3253
      %v3255 = vld [vmem:[#allocation2 + $0x30] sm:$0x1]
      %v3256 = vsel %vm3236, 0, %v3255
      %3257 = vst [vmem:[#allocation2 + $0x30] sm:$0x1] %v3256
      %v3258 = vld [vmem:[#allocation2 + $0x38] sm:$0x1]
      %v3259 = vsel %vm3236, 0, %v3258
      %3260 = vst [vmem:[#allocation2 + $0x38] sm:$0x1] %v3259
      %v3261 = vld [vmem:[#allocation2 + $0x40] sm:$0x1]
      %v3262 = vsel %vm3236, 0, %v3261
      %3263 = vst [vmem:[#allocation2 + $0x40] sm:$0x1] %v3262
      %v3264 = vld [vmem:[#allocation2 + $0x48] sm:$0x1]
      %v3265 = vsel %vm3236, 0, %v3264
      %3266 = vst [vmem:[#allocation2 + $0x48] sm:$0x1] %v3265
      %vm3267 = vsmask.f32 7938
      %vm3268 = vmand %vm3234, %vm3267
      %v3269 = vld [vmem:[#allocation2 + $0x4] sm:$0x1]
      %v3270 = vsel %vm3268, 0, %v3269
      %3271 = vst [vmem:[#allocation2 + $0x4] sm:$0x1] %v3270
      %v3272 = vld [vmem:[#allocation2 + $0xc] sm:$0x1]
      %v3273 = vsel %vm3268, 0, %v3272
      %3274 = vst [vmem:[#allocation2 + $0xc] sm:$0x1] %v3273
      %v3275 = vld [vmem:[#allocation2 + $0x14] sm:$0x1]
      %v3276 = vsel %vm3268, 0, %v3275
      %3277 = vst [vmem:[#allocation2 + $0x14] sm:$0x1] %v3276
      %v3278 = vld [vmem:[#allocation2 + $0x1c] sm:$0x1]
      %v3279 = vsel %vm3268, 0, %v3278
      %3280 = vst [vmem:[#allocation2 + $0x1c] sm:$0x1] %v3279
      %v3281 = vld [vmem:[#allocation2 + $0x24] sm:$0x1]
      %v3282 = vsel %vm3268, 0, %v3281
      %3283 = vst [vmem:[#allocation2 + $0x24] sm:$0x1] %v3282
      %v3284 = vld [vmem:[#allocation2 + $0x2c] sm:$0x1]
      %v3285 = vsel %vm3268, 0, %v3284
      %3286 = vst [vmem:[#allocation2 + $0x2c] sm:$0x1] %v3285
      %v3287 = vld [vmem:[#allocation2 + $0x34] sm:$0x1]
      %v3288 = vsel %vm3268, 0, %v3287
      %3289 = vst [vmem:[#allocation2 + $0x34] sm:$0x1] %v3288
      %v3290 = vld [vmem:[#allocation2 + $0x3c] sm:$0x1]
      %v3291 = vsel %vm3268, 0, %v3290
      %3292 = vst [vmem:[#allocation2 + $0x3c] sm:$0x1] %v3291
      %v3293 = vld [vmem:[#allocation2 + $0x44] sm:$0x1]
      %v3294 = vsel %vm3268, 0, %v3293
      %3295 = vst [vmem:[#allocation2 + $0x44] sm:$0x1] %v3294
      %v3296 = vld [vmem:[#allocation2 + $0x4c] sm:$0x1]
      %v3297 = vsel %vm3268, 0, %v3296
      %3298 = vst [vmem:[#allocation2 + $0x4c] sm:$0x1] %v3297
      %v3363 = vunpack.c.l.b16 %v2786
      %v3364 = vunpack.c.l.b16 %v2793
      %v3365 = vunpack.c.l.b16 %v2800
      %v3366 = vunpack.c.l.b16 %v2807
      %v3367 = vunpack.c.l.b16 %v2814
      %v3368 = vunpack.c.l.b16 %v2821
      %v3369 = vunpack.c.l.b16 %v2828
      %v3370 = vunpack.c.l.b16 %v2835
      %v3371 = vunpack.c.l.b16 %v2842
      %v3372 = vunpack.c.l.b16 %v2849
      %v3373 = vunpack.c.l.b16 %v2856
      %v3374 = vunpack.c.l.b16 %v2863
      %v3375 = vunpack.c.l.b16 %v2870
      %v3376 = vunpack.c.l.b16 %v2877
      %v3377 = vunpack.c.l.b16 %v2884
      %v3378 = vunpack.c.l.b16 %v2891
      %v3379 = vunpack.c.l.b16 %v2898
      %v3380 = vunpack.c.l.b16 %v2905
      %v3381 = vunpack.c.l.b16 %v2912
      %v3382 = vunpack.c.l.b16 %v2919
      %v3383 = vunpack.c.l.b16 %v2926
      %v3384 = vunpack.c.l.b16 %v2933
      %v3385 = vunpack.c.l.b16 %v2940
      %v3386 = vunpack.c.l.b16 %v2947
      %v3387 = vunpack.c.l.b16 %v2954
      %v3388 = vunpack.c.l.b16 %v2961
      %v3389 = vunpack.c.l.b16 %v2968
      %v3390 = vunpack.c.l.b16 %v2975
      %v3391 = vunpack.c.l.b16 %v2982
      %v3392 = vunpack.c.l.b16 %v2989
      %v3393 = vunpack.c.l.b16 %v2996
      %v3394 = vunpack.c.l.b16 %v3003
      %v3395 = vunpack.c.l.b16 %v3010
      %v3396 = vunpack.c.l.b16 %v3017
      %v3397 = vunpack.c.l.b16 %v3024
      %v3398 = vunpack.c.l.b16 %v3031
      %v3399 = vunpack.c.l.b16 %v3038
      %v3400 = vunpack.c.l.b16 %v3045
      %v3401 = vunpack.c.l.b16 %v3052
      %v3402 = vunpack.c.l.b16 %v3059
      %v3403 = vunpack.c.l.b16 %v3066
      %v3404 = vunpack.c.l.b16 %v3073
      %v3405 = vunpack.c.l.b16 %v3080
      %v3406 = vunpack.c.l.b16 %v3087
      %v3407 = vunpack.c.l.b16 %v3094
      %v3408 = vunpack.c.l.b16 %v3101
      %v3409 = vunpack.c.l.b16 %v3108
      %v3410 = vunpack.c.l.b16 %v3115
      %v3411 = vunpack.c.l.b16 %v3122
      %v3412 = vunpack.c.l.b16 %v3129
      %v3413 = vunpack.c.l.b16 %v3136
      %v3414 = vunpack.c.l.b16 %v3143
      %v3415 = vunpack.c.l.b16 %v3150
      %v3416 = vunpack.c.l.b16 %v3157
      %v3417 = vunpack.c.l.b16 %v3164
      %v3418 = vunpack.c.l.b16 %v3171
      %v3419 = vunpack.c.l.b16 %v3178
      %v3420 = vunpack.c.l.b16 %v3185
      %v3421 = vunpack.c.l.b16 %v3192
      %v3422 = vunpack.c.l.b16 %v3199
      %v3423 = vunpack.c.l.b16 %v3206
      %v3424 = vunpack.c.l.b16 %v3213
      %v3425 = vunpack.c.l.b16 %v3220
      %v3426 = vunpack.c.l.b16 %v3227
      %v3427 = vpack.c.b16 %v3363, %v3363
      %v3428 = vpack.c.b16 %v3364, %v3364
      %v3429 = vpack.c.b16 %v3365, %v3365
      %v3430 = vpack.c.b16 %v3366, %v3366
      %v3431 = vpack.c.b16 %v3367, %v3367
      %v3432 = vpack.c.b16 %v3368, %v3368
      %v3433 = vpack.c.b16 %v3369, %v3369
      %v3434 = vpack.c.b16 %v3370, %v3370
      %v3435 = vpack.c.b16 %v3371, %v3371
      %v3436 = vpack.c.b16 %v3372, %v3372
      %v3437 = vpack.c.b16 %v3373, %v3373
      %v3438 = vpack.c.b16 %v3374, %v3374
      %v3439 = vpack.c.b16 %v3375, %v3375
      %v3440 = vpack.c.b16 %v3376, %v3376
      %v3441 = vpack.c.b16 %v3377, %v3377
      %v3442 = vpack.c.b16 %v3378, %v3378
      %v3443 = vpack.c.b16 %v3379, %v3379
      %v3444 = vpack.c.b16 %v3380, %v3380
      %v3445 = vpack.c.b16 %v3381, %v3381
      %v3446 = vpack.c.b16 %v3382, %v3382
      %v3447 = vpack.c.b16 %v3383, %v3383
      %v3448 = vpack.c.b16 %v3384, %v3384
      %v3449 = vpack.c.b16 %v3385, %v3385
      %v3450 = vpack.c.b16 %v3386, %v3386
      %v3451 = vpack.c.b16 %v3387, %v3387
      %v3452 = vpack.c.b16 %v3388, %v3388
      %v3453 = vpack.c.b16 %v3389, %v3389
      %v3454 = vpack.c.b16 %v3390, %v3390
      %v3455 = vpack.c.b16 %v3391, %v3391
      %v3456 = vpack.c.b16 %v3392, %v3392
      %v3457 = vpack.c.b16 %v3393, %v3393
      %v3458 = vpack.c.b16 %v3394, %v3394
      %v3459 = vpack.c.b16 %v3395, %v3395
      %v3460 = vpack.c.b16 %v3396, %v3396
      %v3461 = vpack.c.b16 %v3397, %v3397
      %v3462 = vpack.c.b16 %v3398, %v3398
      %v3463 = vpack.c.b16 %v3399, %v3399
      %v3464 = vpack.c.b16 %v3400, %v3400
      %v3465 = vpack.c.b16 %v3401, %v3401
      %v3466 = vpack.c.b16 %v3402, %v3402
      %v3467 = vpack.c.b16 %v3403, %v3403
      %v3468 = vpack.c.b16 %v3404, %v3404
      %v3469 = vpack.c.b16 %v3405, %v3405
      %v3470 = vpack.c.b16 %v3406, %v3406
      %v3471 = vpack.c.b16 %v3407, %v3407
      %v3472 = vpack.c.b16 %v3408, %v3408
      %v3473 = vpack.c.b16 %v3409, %v3409
      %v3474 = vpack.c.b16 %v3410, %v3410
      %v3475 = vpack.c.b16 %v3411, %v3411
      %v3476 = vpack.c.b16 %v3412, %v3412
      %v3477 = vpack.c.b16 %v3413, %v3413
      %v3478 = vpack.c.b16 %v3414, %v3414
      %v3479 = vpack.c.b16 %v3415, %v3415
      %v3480 = vpack.c.b16 %v3416, %v3416
      %v3481 = vpack.c.b16 %v3417, %v3417
      %v3482 = vpack.c.b16 %v3418, %v3418
      %v3483 = vpack.c.b16 %v3419, %v3419
      %v3484 = vpack.c.b16 %v3420, %v3420
      %v3485 = vpack.c.b16 %v3421, %v3421
      %v3486 = vpack.c.b16 %v3422, %v3422
      %v3487 = vpack.c.b16 %v3423, %v3423
      %v3488 = vpack.c.b16 %v3424, %v3424
      %v3489 = vpack.c.b16 %v3425, %v3425
      %v3490 = vpack.c.b16 %v3426, %v3426
      %v3491 = vunpack.c.l.b16 %v3427
      %v3492 = vunpack.c.l.b16 %v3428
      %v3493 = vunpack.c.l.b16 %v3429
      %v3494 = vunpack.c.l.b16 %v3430
      %v3495 = vunpack.c.l.b16 %v3431
      %v3496 = vunpack.c.l.b16 %v3432
      %v3497 = vunpack.c.l.b16 %v3433
      %v3498 = vunpack.c.l.b16 %v3434
      %v3499 = vunpack.c.l.b16 %v3435
      %v3500 = vunpack.c.l.b16 %v3436
      %v3501 = vunpack.c.l.b16 %v3437
      %v3502 = vunpack.c.l.b16 %v3438
      %v3503 = vunpack.c.l.b16 %v3439
      %v3504 = vunpack.c.l.b16 %v3440
      %v3505 = vunpack.c.l.b16 %v3441
      %v3506 = vunpack.c.l.b16 %v3442
      %v3507 = vunpack.c.l.b16 %v3443
      %v3508 = vunpack.c.l.b16 %v3444
      %v3509 = vunpack.c.l.b16 %v3445
      %v3510 = vunpack.c.l.b16 %v3446
      %v3511 = vunpack.c.l.b16 %v3447
      %v3512 = vunpack.c.l.b16 %v3448
      %v3513 = vunpack.c.l.b16 %v3449
      %v3514 = vunpack.c.l.b16 %v3450
      %v3515 = vunpack.c.l.b16 %v3451
      %v3516 = vunpack.c.l.b16 %v3452
      %v3517 = vunpack.c.l.b16 %v3453
      %v3518 = vunpack.c.l.b16 %v3454
      %v3519 = vunpack.c.l.b16 %v3455
      %v3520 = vunpack.c.l.b16 %v3456
      %v3521 = vunpack.c.l.b16 %v3457
      %v3522 = vunpack.c.l.b16 %v3458
      %v3523 = vunpack.c.l.b16 %v3459
      %v3524 = vunpack.c.l.b16 %v3460
      %v3525 = vunpack.c.l.b16 %v3461
      %v3526 = vunpack.c.l.b16 %v3462
      %v3527 = vunpack.c.l.b16 %v3463
      %v3528 = vunpack.c.l.b16 %v3464
      %v3529 = vunpack.c.l.b16 %v3465
      %v3530 = vunpack.c.l.b16 %v3466
      %v3531 = vunpack.c.l.b16 %v3467
      %v3532 = vunpack.c.l.b16 %v3468
      %v3533 = vunpack.c.l.b16 %v3469
      %v3534 = vunpack.c.l.b16 %v3470
      %v3535 = vunpack.c.l.b16 %v3471
      %v3536 = vunpack.c.l.b16 %v3472
      %v3537 = vunpack.c.l.b16 %v3473
      %v3538 = vunpack.c.l.b16 %v3474
      %v3539 = vunpack.c.l.b16 %v3475
      %v3540 = vunpack.c.l.b16 %v3476
      %v3541 = vunpack.c.l.b16 %v3477
      %v3542 = vunpack.c.l.b16 %v3478
      %v3543 = vunpack.c.l.b16 %v3479
      %v3544 = vunpack.c.l.b16 %v3480
      %v3545 = vunpack.c.l.b16 %v3481
      %v3546 = vunpack.c.l.b16 %v3482
      %v3547 = vunpack.c.l.b16 %v3483
      %v3548 = vunpack.c.l.b16 %v3484
      %v3549 = vunpack.c.l.b16 %v3485
      %v3550 = vunpack.c.l.b16 %v3486
      %v3551 = vunpack.c.l.b16 %v3487
      %v3552 = vunpack.c.l.b16 %v3488
      %v3553 = vunpack.c.l.b16 %v3489
      %v3554 = vunpack.c.l.b16 %v3490
      %vm3555 = vcmask 1042434
      %v3556 = vsel %vm3555, %v3492, %v3491
      %vm3557 = vcmask 1043459
      %v3558 = vsel %vm3557, %v3493, %v3556
      %vm3559 = vcmask 1044484
      %v3560 = vsel %vm3559, %v3494, %v3558
      %vm3561 = vcmask 1045509
      %v3562 = vsel %vm3561, %v3495, %v3560
      %vm3563 = vcmask 1046534
      %v3564 = vsel %vm3563, %v3496, %v3562
      %vm3565 = vcmask 1047559
      %v3566 = vsel %vm3565, %v3497, %v3564
      %v3567 = vsel %vm3555, %v3500, %v3499
      %v3568 = vsel %vm3557, %v3501, %v3567
      %v3569 = vsel %vm3559, %v3502, %v3568
      %v3570 = vsel %vm3561, %v3503, %v3569
      %v3571 = vsel %vm3563, %v3504, %v3570
      %v3572 = vsel %vm3565, %v3505, %v3571
      %v3573 = vsel %vm3555, %v3508, %v3507
      %v3574 = vsel %vm3557, %v3509, %v3573
      %v3575 = vsel %vm3559, %v3510, %v3574
      %v3576 = vsel %vm3561, %v3511, %v3575
      %v3577 = vsel %vm3563, %v3512, %v3576
      %v3578 = vsel %vm3565, %v3513, %v3577
      %v3579 = vsel %vm3555, %v3516, %v3515
      %v3580 = vsel %vm3557, %v3517, %v3579
      %v3581 = vsel %vm3559, %v3518, %v3580
      %v3582 = vsel %vm3561, %v3519, %v3581
      %v3583 = vsel %vm3563, %v3520, %v3582
      %v3584 = vsel %vm3565, %v3521, %v3583
      %v3585 = vsel %vm3555, %v3524, %v3523
      %v3586 = vsel %vm3557, %v3525, %v3585
      %v3587 = vsel %vm3559, %v3526, %v3586
      %v3588 = vsel %vm3561, %v3527, %v3587
      %v3589 = vsel %vm3563, %v3528, %v3588
      %v3590 = vsel %vm3565, %v3529, %v3589
      %v3591 = vsel %vm3555, %v3532, %v3531
      %v3592 = vsel %vm3557, %v3533, %v3591
      %v3593 = vsel %vm3559, %v3534, %v3592
      %v3594 = vsel %vm3561, %v3535, %v3593
      %v3595 = vsel %vm3563, %v3536, %v3594
      %v3596 = vsel %vm3565, %v3537, %v3595
      %v3597 = vsel %vm3555, %v3540, %v3539
      %v3598 = vsel %vm3557, %v3541, %v3597
      %v3599 = vsel %vm3559, %v3542, %v3598
      %v3600 = vsel %vm3561, %v3543, %v3599
      %v3601 = vsel %vm3563, %v3544, %v3600
      %v3602 = vsel %vm3565, %v3545, %v3601
      %v3603 = vsel %vm3555, %v3548, %v3547
      %v3604 = vsel %vm3557, %v3549, %v3603
      %v3605 = vsel %vm3559, %v3550, %v3604
      %v3606 = vsel %vm3561, %v3551, %v3605
      %v3607 = vsel %vm3563, %v3552, %v3606
      %v3608 = vsel %vm3565, %v3553, %v3607
      %v3609 = vpack.c.b16 %v3566, %v3566
      %v3610 = vpack.c.b16 %v3498, %v3498
      %v3611 = vpack.c.b16 %v3572, %v3572
      %v3612 = vpack.c.b16 %v3506, %v3506
      %v3613 = vpack.c.b16 %v3578, %v3578
      %v3614 = vpack.c.b16 %v3514, %v3514
      %v3615 = vpack.c.b16 %v3584, %v3584
      %v3616 = vpack.c.b16 %v3522, %v3522
      %v3617 = vpack.c.b16 %v3590, %v3590
      %v3618 = vpack.c.b16 %v3530, %v3530
      %v3619 = vpack.c.b16 %v3596, %v3596
      %v3620 = vpack.c.b16 %v3538, %v3538
      %v3621 = vpack.c.b16 %v3602, %v3602
      %v3622 = vpack.c.b16 %v3546, %v3546
      %v3623 = vpack.c.b16 %v3608, %v3608
      %v3624 = vpack.c.b16 %v3554, %v3554
      %s3641 = scalar_lea.vmem [#allocation2], 8
      %vm3642 = vcmask 27648
      %vm3643 = vmand %vm3642, %vm3267
      %v3644 = vld [vmem:[%s3641] sm:$0xf]
      %v3645 = vsel %vm3643, %v3609, %v3644
      %3646 = vst [vmem:[%s3641] sm:$0xf] %v3645
      %v3647 = vld [vmem:[%s3641 + $0x4] sm:$0x1]
      %v3648 = vsel %vm3236, %v3610, %v3647
      %3649 = vst [vmem:[%s3641 + $0x4] sm:$0x1] %v3648
      %v3650 = vld [vmem:[%s3641 + $0x8] sm:$0xf]
      %v3651 = vsel %vm3643, %v3611, %v3650
      %3652 = vst [vmem:[%s3641 + $0x8] sm:$0xf] %v3651
      %v3653 = vld [vmem:[%s3641 + $0xc] sm:$0x1]
      %v3654 = vsel %vm3236, %v3612, %v3653
      %3655 = vst [vmem:[%s3641 + $0xc] sm:$0x1] %v3654
      %v3656 = vld [vmem:[%s3641 + $0x10] sm:$0xf]
      %v3657 = vsel %vm3643, %v3613, %v3656
      %3658 = vst [vmem:[%s3641 + $0x10] sm:$0xf] %v3657
      %v3659 = vld [vmem:[%s3641 + $0x14] sm:$0x1]
      %v3660 = vsel %vm3236, %v3614, %v3659
      %3661 = vst [vmem:[%s3641 + $0x14] sm:$0x1] %v3660
      %v3662 = vld [vmem:[%s3641 + $0x18] sm:$0xf]
      %v3663 = vsel %vm3643, %v3615, %v3662
      %3664 = vst [vmem:[%s3641 + $0x18] sm:$0xf] %v3663
      %v3665 = vld [vmem:[%s3641 + $0x1c] sm:$0x1]
      %v3666 = vsel %vm3236, %v3616, %v3665
      %3667 = vst [vmem:[%s3641 + $0x1c] sm:$0x1] %v3666
      %v3668 = vld [vmem:[%s3641 + $0x20] sm:$0xf]
      %v3669 = vsel %vm3643, %v3617, %v3668
      %3670 = vst [vmem:[%s3641 + $0x20] sm:$0xf] %v3669
      %v3671 = vld [vmem:[%s3641 + $0x24] sm:$0x1]
      %v3672 = vsel %vm3236, %v3618, %v3671
      %3673 = vst [vmem:[%s3641 + $0x24] sm:$0x1] %v3672
      %v3674 = vld [vmem:[%s3641 + $0x28] sm:$0xf]
      %v3675 = vsel %vm3643, %v3619, %v3674
      %3676 = vst [vmem:[%s3641 + $0x28] sm:$0xf] %v3675
      %v3677 = vld [vmem:[%s3641 + $0x2c] sm:$0x1]
      %v3678 = vsel %vm3236, %v3620, %v3677
      %3679 = vst [vmem:[%s3641 + $0x2c] sm:$0x1] %v3678
      %v3680 = vld [vmem:[%s3641 + $0x30] sm:$0xf]
      %v3681 = vsel %vm3643, %v3621, %v3680
      %3682 = vst [vmem:[%s3641 + $0x30] sm:$0xf] %v3681
      %v3683 = vld [vmem:[%s3641 + $0x34] sm:$0x1]
      %v3684 = vsel %vm3236, %v3622, %v3683
      %3685 = vst [vmem:[%s3641 + $0x34] sm:$0x1] %v3684
      %v3686 = vld [vmem:[%s3641 + $0x38] sm:$0xf]
      %v3687 = vsel %vm3643, %v3623, %v3686
      %3688 = vst [vmem:[%s3641 + $0x38] sm:$0xf] %v3687
      %v3689 = vld [vmem:[%s3641 + $0x3c] sm:$0x1]
      %v3690 = vsel %vm3236, %v3624, %v3689
      %3691 = vst [vmem:[%s3641 + $0x3c] sm:$0x1] %v3690
      %v3692 = vld [vmem:[#allocation2] sm:$0xf]
      %v3693 = vld [vmem:[#allocation2 + $0x8] sm:$0xf]
      %v3694 = vld [vmem:[#allocation2 + $0x10] sm:$0xf]
      %v3695 = vld [vmem:[#allocation2 + $0x18] sm:$0xf]
      %v3696 = vld [vmem:[#allocation2 + $0x20] sm:$0xf]
      %v3697 = vld [vmem:[#allocation2 + $0x28] sm:$0xf]
      %v3698 = vld [vmem:[#allocation2 + $0x30] sm:$0xf]
      %v3699 = vld [vmem:[#allocation2 + $0x38] sm:$0xf]
      %v3700 = vld [vmem:[%s1] sm:$0x3]
      %v3701 = vld [vmem:[#allocation2 + $0x4] sm:$0x1]
      %v3702 = vld [vmem:[#allocation2 + $0xc] sm:$0x1]
      %v3703 = vld [vmem:[#allocation2 + $0x14] sm:$0x1]
      %v3704 = vld [vmem:[#allocation2 + $0x1c] sm:$0x1]
      %v3705 = vld [vmem:[#allocation2 + $0x24] sm:$0x1]
      %v3706 = vld [vmem:[#allocation2 + $0x2c] sm:$0x1]
      %v3707 = vld [vmem:[#allocation2 + $0x34] sm:$0x1]
      %v3708 = vld [vmem:[#allocation2 + $0x3c] sm:$0x1]
      %vm3709 = vsmask.f32 3328
      %vm3710 = vsmask.f32 7440
      %vm3711 = vmor %vm3709, %vm3710
      %v3713 = vshrl.u32 %v3692, 16
      %v3715 = vrot.slane %v3713, 4
      %v3716 = vshll.u32 %v3692, 16
      %v3718 = vrot.slane %v3716, 5
      %v3719 = vor.u32 %v3715, %v3718
      %v3720 = vrot.slane %v3719, 4
      %v3722 = vshll.u32 %v3701, 16
      %v3724 = vrot.slane %v3722, 5
      %v3725 = vsel %vm3711, %v3720, %v3724
      %v3727 = vshrl.u32 %v3693, 16
      %v3729 = vrot.slane %v3727, 4
      %v3730 = vshll.u32 %v3693, 16
      %v3732 = vrot.slane %v3730, 5
      %v3733 = vor.u32 %v3729, %v3732
      %v3734 = vrot.slane %v3733, 4
      %v3736 = vshll.u32 %v3702, 16
      %v3738 = vrot.slane %v3736, 5
      %v3739 = vsel %vm3711, %v3734, %v3738
      %v3741 = vshrl.u32 %v3694, 16
      %v3743 = vrot.slane %v3741, 4
      %v3744 = vshll.u32 %v3694, 16
      %v3746 = vrot.slane %v3744, 5
      %v3747 = vor.u32 %v3743, %v3746
      %v3748 = vrot.slane %v3747, 4
      %v3750 = vshll.u32 %v3703, 16
      %v3752 = vrot.slane %v3750, 5
      %v3753 = vsel %vm3711, %v3748, %v3752
      %v3755 = vshrl.u32 %v3695, 16
      %v3757 = vrot.slane %v3755, 4
      %v3758 = vshll.u32 %v3695, 16
      %v3760 = vrot.slane %v3758, 5
      %v3761 = vor.u32 %v3757, %v3760
      %v3762 = vrot.slane %v3761, 4
      %v3764 = vshll.u32 %v3704, 16
      %v3766 = vrot.slane %v3764, 5
      %v3767 = vsel %vm3711, %v3762, %v3766
      %v3769 = vshrl.u32 %v3696, 16
      %v3771 = vrot.slane %v3769, 4
      %v3772 = vshll.u32 %v3696, 16
      %v3774 = vrot.slane %v3772, 5
      %v3775 = vor.u32 %v3771, %v3774
      %v3776 = vrot.slane %v3775, 4
      %v3778 = vshll.u32 %v3705, 16
      %v3780 = vrot.slane %v3778, 5
      %v3781 = vsel %vm3711, %v3776, %v3780
      %v3783 = vshrl.u32 %v3697, 16
      %v3785 = vrot.slane %v3783, 4
      %v3786 = vshll.u32 %v3697, 16
      %v3788 = vrot.slane %v3786, 5
      %v3789 = vor.u32 %v3785, %v3788
      %v3790 = vrot.slane %v3789, 4
      %v3792 = vshll.u32 %v3706, 16
      %v3794 = vrot.slane %v3792, 5
      %v3795 = vsel %vm3711, %v3790, %v3794
      %v3797 = vshrl.u32 %v3698, 16
      %v3799 = vrot.slane %v3797, 4
      %v3800 = vshll.u32 %v3698, 16
      %v3802 = vrot.slane %v3800, 5
      %v3803 = vor.u32 %v3799, %v3802
      %v3804 = vrot.slane %v3803, 4
      %v3806 = vshll.u32 %v3707, 16
      %v3808 = vrot.slane %v3806, 5
      %v3809 = vsel %vm3711, %v3804, %v3808
      %v3811 = vshrl.u32 %v3699, 16
      %v3813 = vrot.slane %v3811, 4
      %v3814 = vshll.u32 %v3699, 16
      %v3816 = vrot.slane %v3814, 5
      %v3817 = vor.u32 %v3813, %v3816
      %v3818 = vrot.slane %v3817, 4
      %v3820 = vshll.u32 %v3708, 16
      %v3822 = vrot.slane %v3820, 5
      %v3823 = vsel %vm3711, %v3818, %v3822
      %v3824 = vld [vmem:[%s1] sm:$0xc]
      %v3825 = vunpack.c.l.b16 %v3725
      %v3826 = vunpack.c.l.b16 %v3739
      %v3827 = vunpack.c.l.b16 %v3753
      %v3828 = vunpack.c.l.b16 %v3767
      %v3829 = vunpack.c.l.b16 %v3781
      %v3830 = vunpack.c.l.b16 %v3795
      %v3831 = vunpack.c.l.b16 %v3809
      %v3832 = vunpack.c.l.b16 %v3823
      %v3833 = vpack.c.b16 %v3826, %v3825
      %v3834 = vpack.c.b16 %v3828, %v3827
      %v3835 = vpack.c.b16 %v3830, %v3829
      %v3836 = vpack.c.b16 %v3832, %v3831
      %v3838 = vunpack.c.l.b16 %v3824
      %v3839 = vpack.c.b16 %v3838, %v3838
      %v3840 = vrot.slane %v3839, 2
      %v3842 = vsel %vm2779, %v3833, 0
      %v3845 = vsel %vm2779, %v3834, 0
      %v3848 = vsel %vm2779, %v3835, 0
      %v3851 = vsel %vm2779, %v3836, 0
      %vm3853 = vcmask 1041408
      %v3855 = vsel %vm3853, %v3840, 0
      %3857 = vmatprep.subr.bf16.mxu0 0
      %3858 = vmatpush1.bf16.msra.mxu0 0
      %3859 = vmatprep.subr.bf16.mxu0 0
      %3860 = vmatpush1.bf16.msra.mxu0 0
      %3861 = vmatprep.subr.bf16.mxu0 0
      %3862 = vmatpush1.bf16.msra.mxu0 0
      %3863 = vmatprep.subr.bf16.mxu0 0
      %3864 = vmatpush1.bf16.msra.mxu0 0
      %3865 = vmatprep.subr.bf16.mxu0 0
      %3866 = vmatpush1.bf16.msra.mxu0 0
      %3867 = vmatprep.subr.bf16.mxu0 0
      %3868 = vmatpush1.bf16.msra.mxu0 0
      %3869 = vmatprep.subr.bf16.mxu0 0
      %3870 = vmatpush1.bf16.msra.mxu0 0
      %3871 = vmatprep.subr.bf16.mxu0 0
      %3872 = vmatpush1.bf16.msra.mxu0 %v3855
      %3873 = vmatprep.subr.bf16.mxu0 0
      %3874 = vmatpush2.bf16.msra.mxu0 0
      %3875 = vmatprep.subr.bf16.mxu0 0
      %3876 = vmatpush2.bf16.msra.mxu0 0
      %3877 = vmatprep.subr.bf16.mxu0 0
      %3878 = vmatpush2.bf16.msra.mxu0 0
      %3879 = vmatprep.subr.bf16.mxu0 0
      %3880 = vmatpush2.bf16.msra.mxu0 0
      %3881 = vmatprep.subr.bf16.mxu0 0
      %3882 = vmatpush2.bf16.msra.mxu0 0
      %3883 = vmatprep.subr.bf16.mxu0 0
      %3884 = vmatpush2.bf16.msra.mxu0 0
      %3885 = vmatprep.subr.bf16.mxu0 0
      %3886 = vmatpush2.bf16.msra.mxu0 0
      %3887 = vmatprep.subr.bf16.mxu0 0
      %3888 = vmatpush2.bf16.msra.mxu0 0
      %3889 = vmatprep.mubr.bf16.mxu0 0
      %3890 = vmatmul.mubr.bf16.gmra.mxu0 %v3842
      %v3891 = vpop.f32.mrf.mxu0
      %v3892 = vadd.f32 0.0, %v3891
      %v3893 = vpop.f32.mrf.mxu0
      %v3894 = vpop.f32.mrf.mxu0
      %v3895 = vadd.f32 0.0, %v3894
      %v3896 = vpop.f32.mrf.mxu0
      %3897 = vmatprep.mubr.bf16.mxu0 0
      %3898 = vmatmul.mubr.bf16.gmra.mxu0 %v3845
      %v3899 = vpop.f32.mrf.mxu0
      %v3900 = vadd.f32 0.0, %v3899
      %v3901 = vpop.f32.mrf.mxu0
      %v3902 = vpop.f32.mrf.mxu0
      %v3903 = vadd.f32 0.0, %v3902
      %v3904 = vpop.f32.mrf.mxu0
      %3905 = vmatprep.mubr.bf16.mxu0 0
      %3906 = vmatmul.mubr.bf16.gmra.mxu0 %v3848
      %v3907 = vpop.f32.mrf.mxu0
      %v3908 = vadd.f32 0.0, %v3907
      %v3909 = vpop.f32.mrf.mxu0
      %v3910 = vpop.f32.mrf.mxu0
      %v3911 = vadd.f32 0.0, %v3910
      %v3912 = vpop.f32.mrf.mxu0
      %3913 = vmatprep.mubr.bf16.mxu0 0
      %3914 = vmatmul.mubr.bf16.gmra.mxu0 %v3851
      %v3915 = vpop.f32.mrf.mxu0
      %v3916 = vadd.f32 0.0, %v3915
      %v3917 = vpop.f32.mrf.mxu0
      %v3918 = vpop.f32.mrf.mxu0
      %v3919 = vadd.f32 0.0, %v3918
      %v3920 = vpop.f32.mrf.mxu0
      %3921 = vdwg.mxu0
      %v3930 = vunpack.c.l.b16 %v3692
      %v3931 = vunpack.c.l.b16 %v3693
      %v3932 = vunpack.c.l.b16 %v3694
      %v3933 = vunpack.c.l.b16 %v3695
      %v3934 = vunpack.c.l.b16 %v3696
      %v3935 = vunpack.c.l.b16 %v3697
      %v3936 = vunpack.c.l.b16 %v3698
      %v3937 = vunpack.c.l.b16 %v3699
      %v3938 = vpack.c.b16 %v3931, %v3930
      %v3939 = vpack.c.b16 %v3933, %v3932
      %v3940 = vpack.c.b16 %v3935, %v3934
      %v3941 = vpack.c.b16 %v3937, %v3936
      %v3943 = vsel %vm2779, %v3938, 0
      %v3946 = vsel %vm2779, %v3939, 0
      %v3949 = vsel %vm2779, %v3940, 0
      %v3952 = vsel %vm2779, %v3941, 0
      %v3955 = vsel %vm3853, %v3700, 0
      %3957 = vmatprep.subr.bf16.mxu0 0
      %3958 = vmatpush1.bf16.msra.mxu0 0
      %3959 = vmatprep.subr.bf16.mxu0 0
      %3960 = vmatpush1.bf16.msra.mxu0 0
      %3961 = vmatprep.subr.bf16.mxu0 0
      %3962 = vmatpush1.bf16.msra.mxu0 0
      %3963 = vmatprep.subr.bf16.mxu0 0
      %3964 = vmatpush1.bf16.msra.mxu0 0
      %3965 = vmatprep.subr.bf16.mxu0 0
      %3966 = vmatpush1.bf16.msra.mxu0 0
      %3967 = vmatprep.subr.bf16.mxu0 0
      %3968 = vmatpush1.bf16.msra.mxu0 0
      %3969 = vmatprep.subr.bf16.mxu0 0
      %3970 = vmatpush1.bf16.msra.mxu0 0
      %3971 = vmatprep.subr.bf16.mxu0 0
      %3972 = vmatpush1.bf16.msra.mxu0 %v3955
      %3973 = vmatprep.subr.bf16.mxu0 0
      %3974 = vmatpush2.bf16.msra.mxu0 0
      %3975 = vmatprep.subr.bf16.mxu0 0
      %3976 = vmatpush2.bf16.msra.mxu0 0
      %3977 = vmatprep.subr.bf16.mxu0 0
      %3978 = vmatpush2.bf16.msra.mxu0 0
      %3979 = vmatprep.subr.bf16.mxu0 0
      %3980 = vmatpush2.bf16.msra.mxu0 0
      %3981 = vmatprep.subr.bf16.mxu0 0
      %3982 = vmatpush2.bf16.msra.mxu0 0
      %3983 = vmatprep.subr.bf16.mxu0 0
      %3984 = vmatpush2.bf16.msra.mxu0 0
      %3985 = vmatprep.subr.bf16.mxu0 0
      %3986 = vmatpush2.bf16.msra.mxu0 0
      %3987 = vmatprep.subr.bf16.mxu0 0
      %3988 = vmatpush2.bf16.msra.mxu0 0
      %3989 = vmatprep.mubr.bf16.mxu0 0
      %3990 = vmatmul.mubr.bf16.gmra.mxu0 %v3943
      %v3991 = vpop.f32.mrf.mxu0
      %v3992 = vadd.f32 %v3892, %v3991
      %v3993 = vpop.f32.mrf.mxu0
      %v3994 = vpop.f32.mrf.mxu0
      %v3995 = vadd.f32 %v3895, %v3994
      %v3996 = vpop.f32.mrf.mxu0
      %3997 = vmatprep.mubr.bf16.mxu0 0
      %3998 = vmatmul.mubr.bf16.gmra.mxu0 %v3946
      %v3999 = vpop.f32.mrf.mxu0
      %v4000 = vadd.f32 %v3900, %v3999
      %v4001 = vpop.f32.mrf.mxu0
      %v4002 = vpop.f32.mrf.mxu0
      %v4003 = vadd.f32 %v3903, %v4002
      %v4004 = vpop.f32.mrf.mxu0
      %4005 = vmatprep.mubr.bf16.mxu0 0
      %4006 = vmatmul.mubr.bf16.gmra.mxu0 %v3949
      %v4007 = vpop.f32.mrf.mxu0
      %v4008 = vadd.f32 %v3908, %v4007
      %v4009 = vpop.f32.mrf.mxu0
      %v4010 = vpop.f32.mrf.mxu0
      %v4011 = vadd.f32 %v3911, %v4010
      %v4012 = vpop.f32.mrf.mxu0
      %4013 = vmatprep.mubr.bf16.mxu0 0
      %4014 = vmatmul.mubr.bf16.gmra.mxu0 %v3952
      %v4015 = vpop.f32.mrf.mxu0
      %v4016 = vadd.f32 %v3916, %v4015
      %v4017 = vpop.f32.mrf.mxu0
      %v4018 = vpop.f32.mrf.mxu0
      %v4019 = vadd.f32 %v3919, %v4018
      %v4020 = vpop.f32.mrf.mxu0
      %4021 = vdwg.mxu0
      %v4022 = vld [vmem:[#allocation2] sm:$0xe]
      %v4023 = vld [vmem:[#allocation2 + $0x8] sm:$0xe]
      %v4024 = vld [vmem:[#allocation2 + $0x10] sm:$0xe]
      %v4025 = vld [vmem:[#allocation2 + $0x18] sm:$0xe]
      %v4026 = vld [vmem:[#allocation2 + $0x20] sm:$0xe]
      %v4027 = vld [vmem:[#allocation2 + $0x28] sm:$0xe]
      %v4028 = vld [vmem:[#allocation2 + $0x30] sm:$0xe]
      %v4029 = vld [vmem:[#allocation2 + $0x38] sm:$0xe]
      %vm4046 = vcmask 1042432
      %vm4047 = vcmask 1046532
      %vm4048 = vmor %vm4046, %vm4047
      %v4049 = vrot.slane %v4022, 5
      %v4050 = vrot.slane %v4049, 4
      %v4051 = vrot.slane %v3701, 5
      %v4052 = vsel %vm4048, %v4050, %v4051
      %v4053 = vrot.slane %v4023, 5
      %v4054 = vrot.slane %v4053, 4
      %v4055 = vrot.slane %v3702, 5
      %v4056 = vsel %vm4048, %v4054, %v4055
      %v4057 = vrot.slane %v4024, 5
      %v4058 = vrot.slane %v4057, 4
      %v4059 = vrot.slane %v3703, 5
      %v4060 = vsel %vm4048, %v4058, %v4059
      %v4061 = vrot.slane %v4025, 5
      %v4062 = vrot.slane %v4061, 4
      %v4063 = vrot.slane %v3704, 5
      %v4064 = vsel %vm4048, %v4062, %v4063
      %v4065 = vrot.slane %v4026, 5
      %v4066 = vrot.slane %v4065, 4
      %v4067 = vrot.slane %v3705, 5
      %v4068 = vsel %vm4048, %v4066, %v4067
      %v4069 = vrot.slane %v4027, 5
      %v4070 = vrot.slane %v4069, 4
      %v4071 = vrot.slane %v3706, 5
      %v4072 = vsel %vm4048, %v4070, %v4071
      %v4073 = vrot.slane %v4028, 5
      %v4074 = vrot.slane %v4073, 4
      %v4075 = vrot.slane %v3707, 5
      %v4076 = vsel %vm4048, %v4074, %v4075
      %v4077 = vrot.slane %v4029, 5
      %v4078 = vrot.slane %v4077, 4
      %v4079 = vrot.slane %v3708, 5
      %v4080 = vsel %vm4048, %v4078, %v4079
      %v4081 = vld [vmem:[%s1 + $0x4] sm:$0x3]
      %v4082 = vunpack.c.l.b16 %v4052
      %v4083 = vunpack.c.l.b16 %v4056
      %v4084 = vunpack.c.l.b16 %v4060
      %v4085 = vunpack.c.l.b16 %v4064
      %v4086 = vunpack.c.l.b16 %v4068
      %v4087 = vunpack.c.l.b16 %v4072
      %v4088 = vunpack.c.l.b16 %v4076
      %v4089 = vunpack.c.l.b16 %v4080
      %v4090 = vpack.c.b16 %v4083, %v4082
      %v4091 = vpack.c.b16 %v4085, %v4084
      %v4092 = vpack.c.b16 %v4087, %v4086
      %v4093 = vpack.c.b16 %v4089, %v4088
      %v4095 = vsel %vm2779, %v4090, 0
      %v4098 = vsel %vm2779, %v4091, 0
      %v4101 = vsel %vm2779, %v4092, 0
      %v4104 = vsel %vm2779, %v4093, 0
      %v4107 = vsel %vm3853, %v4081, 0
      %4109 = vmatprep.subr.bf16.mxu0 0
      %4110 = vmatpush1.bf16.msra.mxu0 0
      %4111 = vmatprep.subr.bf16.mxu0 0
      %4112 = vmatpush1.bf16.msra.mxu0 0
      %4113 = vmatprep.subr.bf16.mxu0 0
      %4114 = vmatpush1.bf16.msra.mxu0 0
      %4115 = vmatprep.subr.bf16.mxu0 0
      %4116 = vmatpush1.bf16.msra.mxu0 0
      %4117 = vmatprep.subr.bf16.mxu0 0
      %4118 = vmatpush1.bf16.msra.mxu0 0
      %4119 = vmatprep.subr.bf16.mxu0 0
      %4120 = vmatpush1.bf16.msra.mxu0 0
      %4121 = vmatprep.subr.bf16.mxu0 0
      %4122 = vmatpush1.bf16.msra.mxu0 0
      %4123 = vmatprep.subr.bf16.mxu0 0
      %4124 = vmatpush1.bf16.msra.mxu0 %v4107
      %4125 = vmatprep.subr.bf16.mxu0 0
      %4126 = vmatpush2.bf16.msra.mxu0 0
      %4127 = vmatprep.subr.bf16.mxu0 0
      %4128 = vmatpush2.bf16.msra.mxu0 0
      %4129 = vmatprep.subr.bf16.mxu0 0
      %4130 = vmatpush2.bf16.msra.mxu0 0
      %4131 = vmatprep.subr.bf16.mxu0 0
      %4132 = vmatpush2.bf16.msra.mxu0 0
      %4133 = vmatprep.subr.bf16.mxu0 0
      %4134 = vmatpush2.bf16.msra.mxu0 0
      %4135 = vmatprep.subr.bf16.mxu0 0
      %4136 = vmatpush2.bf16.msra.mxu0 0
      %4137 = vmatprep.subr.bf16.mxu0 0
      %4138 = vmatpush2.bf16.msra.mxu0 0
      %4139 = vmatprep.subr.bf16.mxu0 0
      %4140 = vmatpush2.bf16.msra.mxu0 0
      %4141 = vmatprep.mubr.bf16.mxu0 0
      %4142 = vmatmul.mubr.bf16.gmra.mxu0 %v4095
      %v4143 = vpop.f32.mrf.mxu0
      %v4144 = vadd.f32 0.0, %v4143
      %v4145 = vpop.f32.mrf.mxu0
      %v4146 = vpop.f32.mrf.mxu0
      %v4147 = vadd.f32 0.0, %v4146
      %v4148 = vpop.f32.mrf.mxu0
      %4149 = vmatprep.mubr.bf16.mxu0 0
      %4150 = vmatmul.mubr.bf16.gmra.mxu0 %v4098
      %v4151 = vpop.f32.mrf.mxu0
      %v4152 = vadd.f32 0.0, %v4151
      %v4153 = vpop.f32.mrf.mxu0
      %v4154 = vpop.f32.mrf.mxu0
      %v4155 = vadd.f32 0.0, %v4154
      %v4156 = vpop.f32.mrf.mxu0
      %4157 = vmatprep.mubr.bf16.mxu0 0
      %4158 = vmatmul.mubr.bf16.gmra.mxu0 %v4101
      %v4159 = vpop.f32.mrf.mxu0
      %v4160 = vadd.f32 0.0, %v4159
      %v4161 = vpop.f32.mrf.mxu0
      %v4162 = vpop.f32.mrf.mxu0
      %v4163 = vadd.f32 0.0, %v4162
      %v4164 = vpop.f32.mrf.mxu0
      %4165 = vmatprep.mubr.bf16.mxu0 0
      %4166 = vmatmul.mubr.bf16.gmra.mxu0 %v4104
      %v4167 = vpop.f32.mrf.mxu0
      %v4168 = vadd.f32 0.0, %v4167
      %v4169 = vpop.f32.mrf.mxu0
      %v4170 = vpop.f32.mrf.mxu0
      %v4171 = vadd.f32 0.0, %v4170
      %v4172 = vpop.f32.mrf.mxu0
      %4173 = vdwg.mxu0
      %v4174 = vadd.f32 %v3992, %v4144
      %v4175 = vadd.f32 %v3995, %v4147
      %v4176 = vadd.f32 %v4000, %v4152
      %v4177 = vadd.f32 %v4003, %v4155
      %v4178 = vadd.f32 %v4008, %v4160
      %v4179 = vadd.f32 %v4011, %v4163
      %v4180 = vadd.f32 %v4016, %v4168
      %v4181 = vadd.f32 %v4019, %v4171
      %v4182 = vld [vmem:[%s3641] sm:$0xf]
      %v4183 = vld [vmem:[%s3641 + $0x8] sm:$0xf]
      %v4184 = vld [vmem:[%s3641 + $0x10] sm:$0xf]
      %v4185 = vld [vmem:[%s3641 + $0x18] sm:$0xf]
      %v4186 = vld [vmem:[%s3641 + $0x20] sm:$0xf]
      %v4187 = vld [vmem:[%s3641 + $0x28] sm:$0xf]
      %v4188 = vld [vmem:[%s3641 + $0x30] sm:$0xf]
      %v4189 = vld [vmem:[%s3641 + $0x38] sm:$0xf]
      %v4190 = vld [vmem:[%s1 + $0x4] sm:$0xc]
      %v4199 = vunpack.c.l.b16 %v4182
      %v4200 = vunpack.c.l.b16 %v4183
      %v4201 = vunpack.c.l.b16 %v4184
      %v4202 = vunpack.c.l.b16 %v4185
      %v4203 = vunpack.c.l.b16 %v4186
      %v4204 = vunpack.c.l.b16 %v4187
      %v4205 = vunpack.c.l.b16 %v4188
      %v4206 = vunpack.c.l.b16 %v4189
      %v4207 = vpack.c.b16 %v4200, %v4199
      %v4208 = vpack.c.b16 %v4202, %v4201
      %v4209 = vpack.c.b16 %v4204, %v4203
      %v4210 = vpack.c.b16 %v4206, %v4205
      %v4212 = vunpack.c.l.b16 %v4190
      %v4213 = vpack.c.b16 %v4212, %v4212
      %v4214 = vrot.slane %v4213, 2
      %v4216 = vsel %vm2779, %v4207, 0
      %v4219 = vsel %vm2779, %v4208, 0
      %v4222 = vsel %vm2779, %v4209, 0
      %v4225 = vsel %vm2779, %v4210, 0
      %v4228 = vsel %vm3853, %v4214, 0
      %4230 = vmatprep.subr.bf16.mxu0 0
      %4231 = vmatpush1.bf16.msra.mxu0 0
      %4232 = vmatprep.subr.bf16.mxu0 0
      %4233 = vmatpush1.bf16.msra.mxu0 0
      %4234 = vmatprep.subr.bf16.mxu0 0
      %4235 = vmatpush1.bf16.msra.mxu0 0
      %4236 = vmatprep.subr.bf16.mxu0 0
      %4237 = vmatpush1.bf16.msra.mxu0 0
      %4238 = vmatprep.subr.bf16.mxu0 0
      %4239 = vmatpush1.bf16.msra.mxu0 0
      %4240 = vmatprep.subr.bf16.mxu0 0
      %4241 = vmatpush1.bf16.msra.mxu0 0
      %4242 = vmatprep.subr.bf16.mxu0 0
      %4243 = vmatpush1.bf16.msra.mxu0 0
      %4244 = vmatprep.subr.bf16.mxu0 0
      %4245 = vmatpush1.bf16.msra.mxu0 %v4228
      %4246 = vmatprep.subr.bf16.mxu0 0
      %4247 = vmatpush2.bf16.msra.mxu0 0
      %4248 = vmatprep.subr.bf16.mxu0 0
      %4249 = vmatpush2.bf16.msra.mxu0 0
      %4250 = vmatprep.subr.bf16.mxu0 0
      %4251 = vmatpush2.bf16.msra.mxu0 0
      %4252 = vmatprep.subr.bf16.mxu0 0
      %4253 = vmatpush2.bf16.msra.mxu0 0
      %4254 = vmatprep.subr.bf16.mxu0 0
      %4255 = vmatpush2.bf16.msra.mxu0 0
      %4256 = vmatprep.subr.bf16.mxu0 0
      %4257 = vmatpush2.bf16.msra.mxu0 0
      %4258 = vmatprep.subr.bf16.mxu0 0
      %4259 = vmatpush2.bf16.msra.mxu0 0
      %4260 = vmatprep.subr.bf16.mxu0 0
      %4261 = vmatpush2.bf16.msra.mxu0 0
      %4262 = vmatprep.mubr.bf16.mxu0 0
      %4263 = vmatmul.mubr.bf16.gmra.mxu0 %v4216
      %v4264 = vpop.f32.mrf.mxu0
      %v4265 = vadd.f32 0.0, %v4264
      %v4266 = vpop.f32.mrf.mxu0
      %v4267 = vpop.f32.mrf.mxu0
      %v4268 = vadd.f32 0.0, %v4267
      %v4269 = vpop.f32.mrf.mxu0
      %4270 = vmatprep.mubr.bf16.mxu0 0
      %4271 = vmatmul.mubr.bf16.gmra.mxu0 %v4219
      %v4272 = vpop.f32.mrf.mxu0
      %v4273 = vadd.f32 0.0, %v4272
      %v4274 = vpop.f32.mrf.mxu0
      %v4275 = vpop.f32.mrf.mxu0
      %v4276 = vadd.f32 0.0, %v4275
      %v4277 = vpop.f32.mrf.mxu0
      %4278 = vmatprep.mubr.bf16.mxu0 0
      %4279 = vmatmul.mubr.bf16.gmra.mxu0 %v4222
      %v4280 = vpop.f32.mrf.mxu0
      %v4281 = vadd.f32 0.0, %v4280
      %v4282 = vpop.f32.mrf.mxu0
      %v4283 = vpop.f32.mrf.mxu0
      %v4284 = vadd.f32 0.0, %v4283
      %v4285 = vpop.f32.mrf.mxu0
      %4286 = vmatprep.mubr.bf16.mxu0 0
      %4287 = vmatmul.mubr.bf16.gmra.mxu0 %v4225
      %v4288 = vpop.f32.mrf.mxu0
      %v4289 = vadd.f32 0.0, %v4288
      %v4290 = vpop.f32.mrf.mxu0
      %v4291 = vpop.f32.mrf.mxu0
      %v4292 = vadd.f32 0.0, %v4291
      %v4293 = vpop.f32.mrf.mxu0
      %4294 = vdwg.mxu0
      %v4295 = vadd.f32 %v4174, %v4265
      %v4296 = vadd.f32 %v4175, %v4268
      %v4297 = vadd.f32 %v4176, %v4273
      %v4298 = vadd.f32 %v4177, %v4276
      %v4299 = vadd.f32 %v4178, %v4281
      %v4300 = vadd.f32 %v4179, %v4284
      %v4301 = vadd.f32 %v4180, %v4289
      %v4302 = vadd.f32 %v4181, %v4292
      %v4303 = vld [vmem:[%s3641] sm:$0xf]
      %v4304 = vld [vmem:[%s3641 + $0x4] sm:$0x1]
      %v4305 = vld [vmem:[%s3641 + $0x8] sm:$0xf]
      %v4306 = vld [vmem:[%s3641 + $0xc] sm:$0x1]
      %v4307 = vld [vmem:[%s3641 + $0x10] sm:$0xf]
      %v4308 = vld [vmem:[%s3641 + $0x14] sm:$0x1]
      %v4309 = vld [vmem:[%s3641 + $0x18] sm:$0xf]
      %v4310 = vld [vmem:[%s3641 + $0x1c] sm:$0x1]
      %v4311 = vld [vmem:[%s3641 + $0x20] sm:$0xf]
      %v4312 = vld [vmem:[%s3641 + $0x24] sm:$0x1]
      %v4313 = vld [vmem:[%s3641 + $0x28] sm:$0xf]
      %v4314 = vld [vmem:[%s3641 + $0x2c] sm:$0x1]
      %v4315 = vld [vmem:[%s3641 + $0x30] sm:$0xf]
      %v4316 = vld [vmem:[%s3641 + $0x34] sm:$0x1]
      %v4317 = vld [vmem:[%s3641 + $0x38] sm:$0xf]
      %v4318 = vld [vmem:[%s3641 + $0x3c] sm:$0x1]
      %v4320 = vshrl.u32 %v4303, 16
      %v4322 = vrot.slane %v4320, 4
      %v4323 = vshll.u32 %v4303, 16
      %v4325 = vrot.slane %v4323, 5
      %v4326 = vor.u32 %v4322, %v4325
      %v4327 = vrot.slane %v4326, 4
      %v4329 = vshll.u32 %v4304, 16
      %v4331 = vrot.slane %v4329, 5
      %v4332 = vsel %vm3711, %v4327, %v4331
      %v4334 = vshrl.u32 %v4305, 16
      %v4336 = vrot.slane %v4334, 4
      %v4337 = vshll.u32 %v4305, 16
      %v4339 = vrot.slane %v4337, 5
      %v4340 = vor.u32 %v4336, %v4339
      %v4341 = vrot.slane %v4340, 4
      %v4343 = vshll.u32 %v4306, 16
      %v4345 = vrot.slane %v4343, 5
      %v4346 = vsel %vm3711, %v4341, %v4345
      %v4348 = vshrl.u32 %v4307, 16
      %v4350 = vrot.slane %v4348, 4
      %v4351 = vshll.u32 %v4307, 16
      %v4353 = vrot.slane %v4351, 5
      %v4354 = vor.u32 %v4350, %v4353
      %v4355 = vrot.slane %v4354, 4
      %v4357 = vshll.u32 %v4308, 16
      %v4359 = vrot.slane %v4357, 5
      %v4360 = vsel %vm3711, %v4355, %v4359
      %v4362 = vshrl.u32 %v4309, 16
      %v4364 = vrot.slane %v4362, 4
      %v4365 = vshll.u32 %v4309, 16
      %v4367 = vrot.slane %v4365, 5
      %v4368 = vor.u32 %v4364, %v4367
      %v4369 = vrot.slane %v4368, 4
      %v4371 = vshll.u32 %v4310, 16
      %v4373 = vrot.slane %v4371, 5
      %v4374 = vsel %vm3711, %v4369, %v4373
      %v4376 = vshrl.u32 %v4311, 16
      %v4378 = vrot.slane %v4376, 4
      %v4379 = vshll.u32 %v4311, 16
      %v4381 = vrot.slane %v4379, 5
      %v4382 = vor.u32 %v4378, %v4381
      %v4383 = vrot.slane %v4382, 4
      %v4385 = vshll.u32 %v4312, 16
      %v4387 = vrot.slane %v4385, 5
      %v4388 = vsel %vm3711, %v4383, %v4387
      %v4390 = vshrl.u32 %v4313, 16
      %v4392 = vrot.slane %v4390, 4
      %v4393 = vshll.u32 %v4313, 16
      %v4395 = vrot.slane %v4393, 5
      %v4396 = vor.u32 %v4392, %v4395
      %v4397 = vrot.slane %v4396, 4
      %v4399 = vshll.u32 %v4314, 16
      %v4401 = vrot.slane %v4399, 5
      %v4402 = vsel %vm3711, %v4397, %v4401
      %v4404 = vshrl.u32 %v4315, 16
      %v4406 = vrot.slane %v4404, 4
      %v4407 = vshll.u32 %v4315, 16
      %v4409 = vrot.slane %v4407, 5
      %v4410 = vor.u32 %v4406, %v4409
      %v4411 = vrot.slane %v4410, 4
      %v4413 = vshll.u32 %v4316, 16
      %v4415 = vrot.slane %v4413, 5
      %v4416 = vsel %vm3711, %v4411, %v4415
      %v4418 = vshrl.u32 %v4317, 16
      %v4420 = vrot.slane %v4418, 4
      %v4421 = vshll.u32 %v4317, 16
      %v4423 = vrot.slane %v4421, 5
      %v4424 = vor.u32 %v4420, %v4423
      %v4425 = vrot.slane %v4424, 4
      %v4427 = vshll.u32 %v4318, 16
      %v4429 = vrot.slane %v4427, 5
      %v4430 = vsel %vm3711, %v4425, %v4429
      %v4431 = vld [vmem:[%s1 + $0x8] sm:$0x3]
      %v4432 = vunpack.c.l.b16 %v4332
      %v4433 = vunpack.c.l.b16 %v4346
      %v4434 = vunpack.c.l.b16 %v4360
      %v4435 = vunpack.c.l.b16 %v4374
      %v4436 = vunpack.c.l.b16 %v4388
      %v4437 = vunpack.c.l.b16 %v4402
      %v4438 = vunpack.c.l.b16 %v4416
      %v4439 = vunpack.c.l.b16 %v4430
      %v4440 = vpack.c.b16 %v4433, %v4432
      %v4441 = vpack.c.b16 %v4435, %v4434
      %v4442 = vpack.c.b16 %v4437, %v4436
      %v4443 = vpack.c.b16 %v4439, %v4438
      %v4445 = vsel %vm2779, %v4440, 0
      %v4448 = vsel %vm2779, %v4441, 0
      %v4451 = vsel %vm2779, %v4442, 0
      %v4454 = vsel %vm2779, %v4443, 0
      %v4457 = vsel %vm3853, %v4431, 0
      %4459 = vmatprep.subr.bf16.mxu0 0
      %4460 = vmatpush1.bf16.msra.mxu0 0
      %4461 = vmatprep.subr.bf16.mxu0 0
      %4462 = vmatpush1.bf16.msra.mxu0 0
      %4463 = vmatprep.subr.bf16.mxu0 0
      %4464 = vmatpush1.bf16.msra.mxu0 0
      %4465 = vmatprep.subr.bf16.mxu0 0
      %4466 = vmatpush1.bf16.msra.mxu0 0
      %4467 = vmatprep.subr.bf16.mxu0 0
      %4468 = vmatpush1.bf16.msra.mxu0 0
      %4469 = vmatprep.subr.bf16.mxu0 0
      %4470 = vmatpush1.bf16.msra.mxu0 0
      %4471 = vmatprep.subr.bf16.mxu0 0
      %4472 = vmatpush1.bf16.msra.mxu0 0
      %4473 = vmatprep.subr.bf16.mxu0 0
      %4474 = vmatpush1.bf16.msra.mxu0 %v4457
      %4475 = vmatprep.subr.bf16.mxu0 0
      %4476 = vmatpush2.bf16.msra.mxu0 0
      %4477 = vmatprep.subr.bf16.mxu0 0
      %4478 = vmatpush2.bf16.msra.mxu0 0
      %4479 = vmatprep.subr.bf16.mxu0 0
      %4480 = vmatpush2.bf16.msra.mxu0 0
      %4481 = vmatprep.subr.bf16.mxu0 0
      %4482 = vmatpush2.bf16.msra.mxu0 0
      %4483 = vmatprep.subr.bf16.mxu0 0
      %4484 = vmatpush2.bf16.msra.mxu0 0
      %4485 = vmatprep.subr.bf16.mxu0 0
      %4486 = vmatpush2.bf16.msra.mxu0 0
      %4487 = vmatprep.subr.bf16.mxu0 0
      %4488 = vmatpush2.bf16.msra.mxu0 0
      %4489 = vmatprep.subr.bf16.mxu0 0
      %4490 = vmatpush2.bf16.msra.mxu0 0
      %4491 = vmatprep.mubr.bf16.mxu0 0
      %4492 = vmatmul.mubr.bf16.gmra.mxu0 %v4445
      %v4493 = vpop.f32.mrf.mxu0
      %v4494 = vadd.f32 0.0, %v4493
      %v4495 = vpop.f32.mrf.mxu0
      %v4496 = vpop.f32.mrf.mxu0
      %v4497 = vadd.f32 0.0, %v4496
      %v4498 = vpop.f32.mrf.mxu0
      %4499 = vmatprep.mubr.bf16.mxu0 0
      %4500 = vmatmul.mubr.bf16.gmra.mxu0 %v4448
      %v4501 = vpop.f32.mrf.mxu0
      %v4502 = vadd.f32 0.0, %v4501
      %v4503 = vpop.f32.mrf.mxu0
      %v4504 = vpop.f32.mrf.mxu0
      %v4505 = vadd.f32 0.0, %v4504
      %v4506 = vpop.f32.mrf.mxu0
      %4507 = vmatprep.mubr.bf16.mxu0 0
      %4508 = vmatmul.mubr.bf16.gmra.mxu0 %v4451
      %v4509 = vpop.f32.mrf.mxu0
      %v4510 = vadd.f32 0.0, %v4509
      %v4511 = vpop.f32.mrf.mxu0
      %v4512 = vpop.f32.mrf.mxu0
      %v4513 = vadd.f32 0.0, %v4512
      %v4514 = vpop.f32.mrf.mxu0
      %4515 = vmatprep.mubr.bf16.mxu0 0
      %4516 = vmatmul.mubr.bf16.gmra.mxu0 %v4454
      %v4517 = vpop.f32.mrf.mxu0
      %v4518 = vadd.f32 0.0, %v4517
      %v4519 = vpop.f32.mrf.mxu0
      %v4520 = vpop.f32.mrf.mxu0
      %v4521 = vadd.f32 0.0, %v4520
      %v4522 = vpop.f32.mrf.mxu0
      %4523 = vdwg.mxu0
      %v4524 = vadd.f32 %v4295, %v4494
      %v4525 = vadd.f32 %v4296, %v4497
      %v4526 = vadd.f32 %v4297, %v4502
      %v4527 = vadd.f32 %v4298, %v4505
      %v4528 = vadd.f32 %v4299, %v4510
      %v4529 = vadd.f32 %v4300, %v4513
      %v4530 = vadd.f32 %v4301, %v4518
      %v4531 = vadd.f32 %v4302, %v4521
      %v4532 = vld [vmem:[%s3641] sm:$0xe]
      %v4533 = vld [vmem:[%s3641 + $0x8] sm:$0xe]
      %v4534 = vld [vmem:[%s3641 + $0x10] sm:$0xe]
      %v4535 = vld [vmem:[%s3641 + $0x18] sm:$0xe]
      %v4536 = vld [vmem:[%s3641 + $0x20] sm:$0xe]
      %v4537 = vld [vmem:[%s3641 + $0x28] sm:$0xe]
      %v4538 = vld [vmem:[%s3641 + $0x30] sm:$0xe]
      %v4539 = vld [vmem:[%s3641 + $0x38] sm:$0xe]
      %v4556 = vrot.slane %v4532, 5
      %v4557 = vrot.slane %v4556, 4
      %v4558 = vrot.slane %v4304, 5
      %v4559 = vsel %vm4048, %v4557, %v4558
      %v4560 = vrot.slane %v4533, 5
      %v4561 = vrot.slane %v4560, 4
      %v4562 = vrot.slane %v4306, 5
      %v4563 = vsel %vm4048, %v4561, %v4562
      %v4564 = vrot.slane %v4534, 5
      %v4565 = vrot.slane %v4564, 4
      %v4566 = vrot.slane %v4308, 5
      %v4567 = vsel %vm4048, %v4565, %v4566
      %v4568 = vrot.slane %v4535, 5
      %v4569 = vrot.slane %v4568, 4
      %v4570 = vrot.slane %v4310, 5
      %v4571 = vsel %vm4048, %v4569, %v4570
      %v4572 = vrot.slane %v4536, 5
      %v4573 = vrot.slane %v4572, 4
      %v4574 = vrot.slane %v4312, 5
      %v4575 = vsel %vm4048, %v4573, %v4574
      %v4576 = vrot.slane %v4537, 5
      %v4577 = vrot.slane %v4576, 4
      %v4578 = vrot.slane %v4314, 5
      %v4579 = vsel %vm4048, %v4577, %v4578
      %v4580 = vrot.slane %v4538, 5
      %v4581 = vrot.slane %v4580, 4
      %v4582 = vrot.slane %v4316, 5
      %v4583 = vsel %vm4048, %v4581, %v4582
      %v4584 = vrot.slane %v4539, 5
      %v4585 = vrot.slane %v4584, 4
      %v4586 = vrot.slane %v4318, 5
      %v4587 = vsel %vm4048, %v4585, %v4586
      %v4588 = vld [vmem:[%s1 + $0x8] sm:$0xc]
      %v4589 = vunpack.c.l.b16 %v4559
      %v4590 = vunpack.c.l.b16 %v4563
      %v4591 = vunpack.c.l.b16 %v4567
      %v4592 = vunpack.c.l.b16 %v4571
      %v4593 = vunpack.c.l.b16 %v4575
      %v4594 = vunpack.c.l.b16 %v4579
      %v4595 = vunpack.c.l.b16 %v4583
      %v4596 = vunpack.c.l.b16 %v4587
      %v4597 = vpack.c.b16 %v4590, %v4589
      %v4598 = vpack.c.b16 %v4592, %v4591
      %v4599 = vpack.c.b16 %v4594, %v4593
      %v4600 = vpack.c.b16 %v4596, %v4595
      %v4602 = vunpack.c.l.b16 %v4588
      %v4603 = vpack.c.b16 %v4602, %v4602
      %v4604 = vrot.slane %v4603, 2
      %v4606 = vsel %vm2779, %v4597, 0
      %v4609 = vsel %vm2779, %v4598, 0
      %v4612 = vsel %vm2779, %v4599, 0
      %v4615 = vsel %vm2779, %v4600, 0
      %v4618 = vsel %vm3853, %v4604, 0
      %4620 = vmatprep.subr.bf16.mxu0 0
      %4621 = vmatpush1.bf16.msra.mxu0 0
      %4622 = vmatprep.subr.bf16.mxu0 0
      %4623 = vmatpush1.bf16.msra.mxu0 0
      %4624 = vmatprep.subr.bf16.mxu0 0
      %4625 = vmatpush1.bf16.msra.mxu0 0
      %4626 = vmatprep.subr.bf16.mxu0 0
      %4627 = vmatpush1.bf16.msra.mxu0 0
      %4628 = vmatprep.subr.bf16.mxu0 0
      %4629 = vmatpush1.bf16.msra.mxu0 0
      %4630 = vmatprep.subr.bf16.mxu0 0
      %4631 = vmatpush1.bf16.msra.mxu0 0
      %4632 = vmatprep.subr.bf16.mxu0 0
      %4633 = vmatpush1.bf16.msra.mxu0 0
      %4634 = vmatprep.subr.bf16.mxu0 0
      %4635 = vmatpush1.bf16.msra.mxu0 %v4618
      %4636 = vmatprep.subr.bf16.mxu0 0
      %4637 = vmatpush2.bf16.msra.mxu0 0
      %4638 = vmatprep.subr.bf16.mxu0 0
      %4639 = vmatpush2.bf16.msra.mxu0 0
      %4640 = vmatprep.subr.bf16.mxu0 0
      %4641 = vmatpush2.bf16.msra.mxu0 0
      %4642 = vmatprep.subr.bf16.mxu0 0
      %4643 = vmatpush2.bf16.msra.mxu0 0
      %4644 = vmatprep.subr.bf16.mxu0 0
      %4645 = vmatpush2.bf16.msra.mxu0 0
      %4646 = vmatprep.subr.bf16.mxu0 0
      %4647 = vmatpush2.bf16.msra.mxu0 0
      %4648 = vmatprep.subr.bf16.mxu0 0
      %4649 = vmatpush2.bf16.msra.mxu0 0
      %4650 = vmatprep.subr.bf16.mxu0 0
      %4651 = vmatpush2.bf16.msra.mxu0 0
      %4652 = vmatprep.mubr.bf16.mxu0 0
      %4653 = vmatmul.mubr.bf16.gmra.mxu0 %v4606
      %v4654 = vpop.f32.mrf.mxu0
      %v4655 = vadd.f32 0.0, %v4654
      %v4656 = vpop.f32.mrf.mxu0
      %v4657 = vpop.f32.mrf.mxu0
      %v4658 = vadd.f32 0.0, %v4657
      %v4659 = vpop.f32.mrf.mxu0
      %4660 = vmatprep.mubr.bf16.mxu0 0
      %4661 = vmatmul.mubr.bf16.gmra.mxu0 %v4609
      %v4662 = vpop.f32.mrf.mxu0
      %v4663 = vadd.f32 0.0, %v4662
      %v4664 = vpop.f32.mrf.mxu0
      %v4665 = vpop.f32.mrf.mxu0
      %v4666 = vadd.f32 0.0, %v4665
      %v4667 = vpop.f32.mrf.mxu0
      %4668 = vmatprep.mubr.bf16.mxu0 0
      %4669 = vmatmul.mubr.bf16.gmra.mxu0 %v4612
      %v4670 = vpop.f32.mrf.mxu0
      %v4671 = vadd.f32 0.0, %v4670
      %v4672 = vpop.f32.mrf.mxu0
      %v4673 = vpop.f32.mrf.mxu0
      %v4674 = vadd.f32 0.0, %v4673
      %v4675 = vpop.f32.mrf.mxu0
      %4676 = vmatprep.mubr.bf16.mxu0 0
      %4677 = vmatmul.mubr.bf16.gmra.mxu0 %v4615
      %v4678 = vpop.f32.mrf.mxu0
      %v4679 = vadd.f32 0.0, %v4678
      %v4680 = vpop.f32.mrf.mxu0
      %v4681 = vpop.f32.mrf.mxu0
      %v4682 = vadd.f32 0.0, %v4681
      %v4683 = vpop.f32.mrf.mxu0
      %4684 = vdwg.mxu0
      %v4685 = vadd.f32 %v4524, %v4655
      %v4686 = vadd.f32 %v4525, %v4658
      %v4687 = vadd.f32 %v4526, %v4663
      %v4688 = vadd.f32 %v4527, %v4666
      %v4689 = vadd.f32 %v4528, %v4671
      %v4690 = vadd.f32 %v4529, %v4674
      %v4691 = vadd.f32 %v4530, %v4679
      %v4692 = vadd.f32 %v4531, %v4682
      %s4693 = scalar_lea.vmem [#allocation2], 16
      %v4694 = vld [vmem:[%s4693] sm:$0xf]
      %v4695 = vld [vmem:[%s4693 + $0x8] sm:$0xf]
      %v4696 = vld [vmem:[%s4693 + $0x10] sm:$0xf]
      %v4697 = vld [vmem:[%s4693 + $0x18] sm:$0xf]
      %v4698 = vld [vmem:[%s4693 + $0x20] sm:$0xf]
      %v4699 = vld [vmem:[%s4693 + $0x28] sm:$0xf]
      %v4700 = vld [vmem:[%s4693 + $0x30] sm:$0xf]
      %v4701 = vld [vmem:[%s4693 + $0x38] sm:$0xf]
      %v4702 = vld [vmem:[%s1 + $0xc] sm:$0x3]
      %v4711 = vunpack.c.l.b16 %v4694
      %v4712 = vunpack.c.l.b16 %v4695
      %v4713 = vunpack.c.l.b16 %v4696
      %v4714 = vunpack.c.l.b16 %v4697
      %v4715 = vunpack.c.l.b16 %v4698
      %v4716 = vunpack.c.l.b16 %v4699
      %v4717 = vunpack.c.l.b16 %v4700
      %v4718 = vunpack.c.l.b16 %v4701
      %v4719 = vpack.c.b16 %v4712, %v4711
      %v4720 = vpack.c.b16 %v4714, %v4713
      %v4721 = vpack.c.b16 %v4716, %v4715
      %v4722 = vpack.c.b16 %v4718, %v4717
      %v4724 = vsel %vm2779, %v4719, 0
      %v4727 = vsel %vm2779, %v4720, 0
      %v4730 = vsel %vm2779, %v4721, 0
      %v4733 = vsel %vm2779, %v4722, 0
      %v4736 = vsel %vm3853, %v4702, 0
      %4738 = vmatprep.subr.bf16.mxu0 0
      %4739 = vmatpush1.bf16.msra.mxu0 0
      %4740 = vmatprep.subr.bf16.mxu0 0
      %4741 = vmatpush1.bf16.msra.mxu0 0
      %4742 = vmatprep.subr.bf16.mxu0 0
      %4743 = vmatpush1.bf16.msra.mxu0 0
      %4744 = vmatprep.subr.bf16.mxu0 0
      %4745 = vmatpush1.bf16.msra.mxu0 0
      %4746 = vmatprep.subr.bf16.mxu0 0
      %4747 = vmatpush1.bf16.msra.mxu0 0
      %4748 = vmatprep.subr.bf16.mxu0 0
      %4749 = vmatpush1.bf16.msra.mxu0 0
      %4750 = vmatprep.subr.bf16.mxu0 0
      %4751 = vmatpush1.bf16.msra.mxu0 0
      %4752 = vmatprep.subr.bf16.mxu0 0
      %4753 = vmatpush1.bf16.msra.mxu0 %v4736
      %4754 = vmatprep.subr.bf16.mxu0 0
      %4755 = vmatpush2.bf16.msra.mxu0 0
      %4756 = vmatprep.subr.bf16.mxu0 0
      %4757 = vmatpush2.bf16.msra.mxu0 0
      %4758 = vmatprep.subr.bf16.mxu0 0
      %4759 = vmatpush2.bf16.msra.mxu0 0
      %4760 = vmatprep.subr.bf16.mxu0 0
      %4761 = vmatpush2.bf16.msra.mxu0 0
      %4762 = vmatprep.subr.bf16.mxu0 0
      %4763 = vmatpush2.bf16.msra.mxu0 0
      %4764 = vmatprep.subr.bf16.mxu0 0
      %4765 = vmatpush2.bf16.msra.mxu0 0
      %4766 = vmatprep.subr.bf16.mxu0 0
      %4767 = vmatpush2.bf16.msra.mxu0 0
      %4768 = vmatprep.subr.bf16.mxu0 0
      %4769 = vmatpush2.bf16.msra.mxu0 0
      %4770 = vmatprep.mubr.bf16.mxu0 0
      %4771 = vmatmul.mubr.bf16.gmra.mxu0 %v4724
      %v4772 = vpop.f32.mrf.mxu0
      %v4773 = vadd.f32 0.0, %v4772
      %v4774 = vpop.f32.mrf.mxu0
      %v4775 = vpop.f32.mrf.mxu0
      %v4776 = vadd.f32 0.0, %v4775
      %v4777 = vpop.f32.mrf.mxu0
      %4778 = vmatprep.mubr.bf16.mxu0 0
      %4779 = vmatmul.mubr.bf16.gmra.mxu0 %v4727
      %v4780 = vpop.f32.mrf.mxu0
      %v4781 = vadd.f32 0.0, %v4780
      %v4782 = vpop.f32.mrf.mxu0
      %v4783 = vpop.f32.mrf.mxu0
      %v4784 = vadd.f32 0.0, %v4783
      %v4785 = vpop.f32.mrf.mxu0
      %4786 = vmatprep.mubr.bf16.mxu0 0
      %4787 = vmatmul.mubr.bf16.gmra.mxu0 %v4730
      %v4788 = vpop.f32.mrf.mxu0
      %v4789 = vadd.f32 0.0, %v4788
      %v4790 = vpop.f32.mrf.mxu0
      %v4791 = vpop.f32.mrf.mxu0
      %v4792 = vadd.f32 0.0, %v4791
      %v4793 = vpop.f32.mrf.mxu0
      %4794 = vmatprep.mubr.bf16.mxu0 0
      %4795 = vmatmul.mubr.bf16.gmra.mxu0 %v4733
      %v4796 = vpop.f32.mrf.mxu0
      %v4797 = vadd.f32 0.0, %v4796
      %v4798 = vpop.f32.mrf.mxu0
      %v4799 = vpop.f32.mrf.mxu0
      %v4800 = vadd.f32 0.0, %v4799
      %v4801 = vpop.f32.mrf.mxu0
      %4802 = vdwg.mxu0
      %v4803 = vadd.f32 %v4685, %v4773
      %v4804 = vadd.f32 %v4686, %v4776
      %v4805 = vadd.f32 %v4687, %v4781
      %v4806 = vadd.f32 %v4688, %v4784
      %v4807 = vadd.f32 %v4689, %v4789
      %v4808 = vadd.f32 %v4690, %v4792
      %v4809 = vadd.f32 %v4691, %v4797
      %v4810 = vadd.f32 %v4692, %v4800
      %v4811 = vld [vmem:[%s4693] sm:$0xf]
      %v4812 = vld [vmem:[%s4693 + $0x4] sm:$0x1]
      %v4813 = vld [vmem:[%s4693 + $0x8] sm:$0xf]
      %v4814 = vld [vmem:[%s4693 + $0xc] sm:$0x1]
      %v4815 = vld [vmem:[%s4693 + $0x10] sm:$0xf]
      %v4816 = vld [vmem:[%s4693 + $0x14] sm:$0x1]
      %v4817 = vld [vmem:[%s4693 + $0x18] sm:$0xf]
      %v4818 = vld [vmem:[%s4693 + $0x1c] sm:$0x1]
      %v4819 = vld [vmem:[%s4693 + $0x20] sm:$0xf]
      %v4820 = vld [vmem:[%s4693 + $0x24] sm:$0x1]
      %v4821 = vld [vmem:[%s4693 + $0x28] sm:$0xf]
      %v4822 = vld [vmem:[%s4693 + $0x2c] sm:$0x1]
      %v4823 = vld [vmem:[%s4693 + $0x30] sm:$0xf]
      %v4824 = vld [vmem:[%s4693 + $0x34] sm:$0x1]
      %v4825 = vld [vmem:[%s4693 + $0x38] sm:$0xf]
      %v4826 = vld [vmem:[%s4693 + $0x3c] sm:$0x1]
      %v4828 = vshrl.u32 %v4811, 16
      %v4830 = vrot.slane %v4828, 4
      %v4831 = vshll.u32 %v4811, 16
      %v4833 = vrot.slane %v4831, 5
      %v4834 = vor.u32 %v4830, %v4833
      %v4835 = vrot.slane %v4834, 4
      %v4837 = vshll.u32 %v4812, 16
      %v4839 = vrot.slane %v4837, 5
      %v4840 = vsel %vm3711, %v4835, %v4839
      %v4842 = vshrl.u32 %v4813, 16
      %v4844 = vrot.slane %v4842, 4
      %v4845 = vshll.u32 %v4813, 16
      %v4847 = vrot.slane %v4845, 5
      %v4848 = vor.u32 %v4844, %v4847
      %v4849 = vrot.slane %v4848, 4
      %v4851 = vshll.u32 %v4814, 16
      %v4853 = vrot.slane %v4851, 5
      %v4854 = vsel %vm3711, %v4849, %v4853
      %v4856 = vshrl.u32 %v4815, 16
      %v4858 = vrot.slane %v4856, 4
      %v4859 = vshll.u32 %v4815, 16
      %v4861 = vrot.slane %v4859, 5
      %v4862 = vor.u32 %v4858, %v4861
      %v4863 = vrot.slane %v4862, 4
      %v4865 = vshll.u32 %v4816, 16
      %v4867 = vrot.slane %v4865, 5
      %v4868 = vsel %vm3711, %v4863, %v4867
      %v4870 = vshrl.u32 %v4817, 16
      %v4872 = vrot.slane %v4870, 4
      %v4873 = vshll.u32 %v4817, 16
      %v4875 = vrot.slane %v4873, 5
      %v4876 = vor.u32 %v4872, %v4875
      %v4877 = vrot.slane %v4876, 4
      %v4879 = vshll.u32 %v4818, 16
      %v4881 = vrot.slane %v4879, 5
      %v4882 = vsel %vm3711, %v4877, %v4881
      %v4884 = vshrl.u32 %v4819, 16
      %v4886 = vrot.slane %v4884, 4
      %v4887 = vshll.u32 %v4819, 16
      %v4889 = vrot.slane %v4887, 5
      %v4890 = vor.u32 %v4886, %v4889
      %v4891 = vrot.slane %v4890, 4
      %v4893 = vshll.u32 %v4820, 16
      %v4895 = vrot.slane %v4893, 5
      %v4896 = vsel %vm3711, %v4891, %v4895
      %v4898 = vshrl.u32 %v4821, 16
      %v4900 = vrot.slane %v4898, 4
      %v4901 = vshll.u32 %v4821, 16
      %v4903 = vrot.slane %v4901, 5
      %v4904 = vor.u32 %v4900, %v4903
      %v4905 = vrot.slane %v4904, 4
      %v4907 = vshll.u32 %v4822, 16
      %v4909 = vrot.slane %v4907, 5
      %v4910 = vsel %vm3711, %v4905, %v4909
      %v4912 = vshrl.u32 %v4823, 16
      %v4914 = vrot.slane %v4912, 4
      %v4915 = vshll.u32 %v4823, 16
      %v4917 = vrot.slane %v4915, 5
      %v4918 = vor.u32 %v4914, %v4917
      %v4919 = vrot.slane %v4918, 4
      %v4921 = vshll.u32 %v4824, 16
      %v4923 = vrot.slane %v4921, 5
      %v4924 = vsel %vm3711, %v4919, %v4923
      %v4926 = vshrl.u32 %v4825, 16
      %v4928 = vrot.slane %v4926, 4
      %v4929 = vshll.u32 %v4825, 16
      %v4931 = vrot.slane %v4929, 5
      %v4932 = vor.u32 %v4928, %v4931
      %v4933 = vrot.slane %v4932, 4
      %v4935 = vshll.u32 %v4826, 16
      %v4937 = vrot.slane %v4935, 5
      %v4938 = vsel %vm3711, %v4933, %v4937
      %v4939 = vld [vmem:[%s1 + $0xc] sm:$0xc]
      %v4940 = vunpack.c.l.b16 %v4840
      %v4941 = vunpack.c.l.b16 %v4854
      %v4942 = vunpack.c.l.b16 %v4868
      %v4943 = vunpack.c.l.b16 %v4882
      %v4944 = vunpack.c.l.b16 %v4896
      %v4945 = vunpack.c.l.b16 %v4910
      %v4946 = vunpack.c.l.b16 %v4924
      %v4947 = vunpack.c.l.b16 %v4938
      %v4948 = vpack.c.b16 %v4941, %v4940
      %v4949 = vpack.c.b16 %v4943, %v4942
      %v4950 = vpack.c.b16 %v4945, %v4944
      %v4951 = vpack.c.b16 %v4947, %v4946
      %v4953 = vunpack.c.l.b16 %v4939
      %v4954 = vpack.c.b16 %v4953, %v4953
      %v4955 = vrot.slane %v4954, 2
      %v4957 = vsel %vm2779, %v4948, 0
      %v4960 = vsel %vm2779, %v4949, 0
      %v4963 = vsel %vm2779, %v4950, 0
      %v4966 = vsel %vm2779, %v4951, 0
      %v4969 = vsel %vm3853, %v4955, 0
      %4971 = vmatprep.subr.bf16.mxu0 0
      %4972 = vmatpush1.bf16.msra.mxu0 0
      %4973 = vmatprep.subr.bf16.mxu0 0
      %4974 = vmatpush1.bf16.msra.mxu0 0
      %4975 = vmatprep.subr.bf16.mxu0 0
      %4976 = vmatpush1.bf16.msra.mxu0 0
      %4977 = vmatprep.subr.bf16.mxu0 0
      %4978 = vmatpush1.bf16.msra.mxu0 0
      %4979 = vmatprep.subr.bf16.mxu0 0
      %4980 = vmatpush1.bf16.msra.mxu0 0
      %4981 = vmatprep.subr.bf16.mxu0 0
      %4982 = vmatpush1.bf16.msra.mxu0 0
      %4983 = vmatprep.subr.bf16.mxu0 0
      %4984 = vmatpush1.bf16.msra.mxu0 0
      %4985 = vmatprep.subr.bf16.mxu0 0
      %4986 = vmatpush1.bf16.msra.mxu0 %v4969
      %4987 = vmatprep.subr.bf16.mxu0 0
      %4988 = vmatpush2.bf16.msra.mxu0 0
      %4989 = vmatprep.subr.bf16.mxu0 0
      %4990 = vmatpush2.bf16.msra.mxu0 0
      %4991 = vmatprep.subr.bf16.mxu0 0
      %4992 = vmatpush2.bf16.msra.mxu0 0
      %4993 = vmatprep.subr.bf16.mxu0 0
      %4994 = vmatpush2.bf16.msra.mxu0 0
      %4995 = vmatprep.subr.bf16.mxu0 0
      %4996 = vmatpush2.bf16.msra.mxu0 0
      %4997 = vmatprep.subr.bf16.mxu0 0
      %4998 = vmatpush2.bf16.msra.mxu0 0
      %4999 = vmatprep.subr.bf16.mxu0 0
      %5000 = vmatpush2.bf16.msra.mxu0 0
      %5001 = vmatprep.subr.bf16.mxu0 0
      %5002 = vmatpush2.bf16.msra.mxu0 0
      %5003 = vmatprep.mubr.bf16.mxu0 0
      %5004 = vmatmul.mubr.bf16.gmra.mxu0 %v4957
      %v5005 = vpop.f32.mrf.mxu0
      %v5006 = vadd.f32 0.0, %v5005
      %v5007 = vpop.f32.mrf.mxu0
      %v5008 = vpop.f32.mrf.mxu0
      %v5009 = vadd.f32 0.0, %v5008
      %v5010 = vpop.f32.mrf.mxu0
      %5011 = vmatprep.mubr.bf16.mxu0 0
      %5012 = vmatmul.mubr.bf16.gmra.mxu0 %v4960
      %v5013 = vpop.f32.mrf.mxu0
      %v5014 = vadd.f32 0.0, %v5013
      %v5015 = vpop.f32.mrf.mxu0
      %v5016 = vpop.f32.mrf.mxu0
      %v5017 = vadd.f32 0.0, %v5016
      %v5018 = vpop.f32.mrf.mxu0
      %5019 = vmatprep.mubr.bf16.mxu0 0
      %5020 = vmatmul.mubr.bf16.gmra.mxu0 %v4963
      %v5021 = vpop.f32.mrf.mxu0
      %v5022 = vadd.f32 0.0, %v5021
      %v5023 = vpop.f32.mrf.mxu0
      %v5024 = vpop.f32.mrf.mxu0
      %v5025 = vadd.f32 0.0, %v5024
      %v5026 = vpop.f32.mrf.mxu0
      %5027 = vmatprep.mubr.bf16.mxu0 0
      %5028 = vmatmul.mubr.bf16.gmra.mxu0 %v4966
      %v5029 = vpop.f32.mrf.mxu0
      %v5030 = vadd.f32 0.0, %v5029
      %v5031 = vpop.f32.mrf.mxu0
      %v5032 = vpop.f32.mrf.mxu0
      %v5033 = vadd.f32 0.0, %v5032
      %v5034 = vpop.f32.mrf.mxu0
      %5035 = vdwg.mxu0
      %v5036 = vadd.f32 %v4803, %v5006
      %v5037 = vadd.f32 %v4804, %v5009
      %v5038 = vadd.f32 %v4805, %v5014
      %v5039 = vadd.f32 %v4806, %v5017
      %v5040 = vadd.f32 %v4807, %v5022
      %v5041 = vadd.f32 %v4808, %v5025
      %v5042 = vadd.f32 %v4809, %v5030
      %v5043 = vadd.f32 %v4810, %v5033
      %v5044 = vld [vmem:[%s4693] sm:$0xe]
      %v5045 = vld [vmem:[%s4693 + $0x8] sm:$0xe]
      %v5046 = vld [vmem:[%s4693 + $0x10] sm:$0xe]
      %v5047 = vld [vmem:[%s4693 + $0x18] sm:$0xe]
      %v5048 = vld [vmem:[%s4693 + $0x20] sm:$0xe]
      %v5049 = vld [vmem:[%s4693 + $0x28] sm:$0xe]
      %v5050 = vld [vmem:[%s4693 + $0x30] sm:$0xe]
      %v5051 = vld [vmem:[%s4693 + $0x38] sm:$0xe]
      %v5068 = vrot.slane %v5044, 5
      %v5069 = vrot.slane %v5068, 4
      %v5070 = vrot.slane %v4812, 5
      %v5071 = vsel %vm4048, %v5069, %v5070
      %v5072 = vrot.slane %v5045, 5
      %v5073 = vrot.slane %v5072, 4
      %v5074 = vrot.slane %v4814, 5
      %v5075 = vsel %vm4048, %v5073, %v5074
      %v5076 = vrot.slane %v5046, 5
      %v5077 = vrot.slane %v5076, 4
      %v5078 = vrot.slane %v4816, 5
      %v5079 = vsel %vm4048, %v5077, %v5078
      %v5080 = vrot.slane %v5047, 5
      %v5081 = vrot.slane %v5080, 4
      %v5082 = vrot.slane %v4818, 5
      %v5083 = vsel %vm4048, %v5081, %v5082
      %v5084 = vrot.slane %v5048, 5
      %v5085 = vrot.slane %v5084, 4
      %v5086 = vrot.slane %v4820, 5
      %v5087 = vsel %vm4048, %v5085, %v5086
      %v5088 = vrot.slane %v5049, 5
      %v5089 = vrot.slane %v5088, 4
      %v5090 = vrot.slane %v4822, 5
      %v5091 = vsel %vm4048, %v5089, %v5090
      %v5092 = vrot.slane %v5050, 5
      %v5093 = vrot.slane %v5092, 4
      %v5094 = vrot.slane %v4824, 5
      %v5095 = vsel %vm4048, %v5093, %v5094
      %v5096 = vrot.slane %v5051, 5
      %v5097 = vrot.slane %v5096, 4
      %v5098 = vrot.slane %v4826, 5
      %v5099 = vsel %vm4048, %v5097, %v5098
      %v5100 = vld [vmem:[%s1 + $0x10] sm:$0x3]
      %v5101 = vunpack.c.l.b16 %v5071
      %v5102 = vunpack.c.l.b16 %v5075
      %v5103 = vunpack.c.l.b16 %v5079
      %v5104 = vunpack.c.l.b16 %v5083
      %v5105 = vunpack.c.l.b16 %v5087
      %v5106 = vunpack.c.l.b16 %v5091
      %v5107 = vunpack.c.l.b16 %v5095
      %v5108 = vunpack.c.l.b16 %v5099
      %v5109 = vpack.c.b16 %v5102, %v5101
      %v5110 = vpack.c.b16 %v5104, %v5103
      %v5111 = vpack.c.b16 %v5106, %v5105
      %v5112 = vpack.c.b16 %v5108, %v5107
      %v5114 = vsel %vm2779, %v5109, 0
      %v5117 = vsel %vm2779, %v5110, 0
      %v5120 = vsel %vm2779, %v5111, 0
      %v5123 = vsel %vm2779, %v5112, 0
      %v5126 = vsel %vm3853, %v5100, 0
      %5128 = vmatprep.subr.bf16.mxu0 0
      %5129 = vmatpush1.bf16.msra.mxu0 0
      %5130 = vmatprep.subr.bf16.mxu0 0
      %5131 = vmatpush1.bf16.msra.mxu0 0
      %5132 = vmatprep.subr.bf16.mxu0 0
      %5133 = vmatpush1.bf16.msra.mxu0 0
      %5134 = vmatprep.subr.bf16.mxu0 0
      %5135 = vmatpush1.bf16.msra.mxu0 0
      %5136 = vmatprep.subr.bf16.mxu0 0
      %5137 = vmatpush1.bf16.msra.mxu0 0
      %5138 = vmatprep.subr.bf16.mxu0 0
      %5139 = vmatpush1.bf16.msra.mxu0 0
      %5140 = vmatprep.subr.bf16.mxu0 0
      %5141 = vmatpush1.bf16.msra.mxu0 0
      %5142 = vmatprep.subr.bf16.mxu0 0
      %5143 = vmatpush1.bf16.msra.mxu0 %v5126
      %5144 = vmatprep.subr.bf16.mxu0 0
      %5145 = vmatpush2.bf16.msra.mxu0 0
      %5146 = vmatprep.subr.bf16.mxu0 0
      %5147 = vmatpush2.bf16.msra.mxu0 0
      %5148 = vmatprep.subr.bf16.mxu0 0
      %5149 = vmatpush2.bf16.msra.mxu0 0
      %5150 = vmatprep.subr.bf16.mxu0 0
      %5151 = vmatpush2.bf16.msra.mxu0 0
      %5152 = vmatprep.subr.bf16.mxu0 0
      %5153 = vmatpush2.bf16.msra.mxu0 0
      %5154 = vmatprep.subr.bf16.mxu0 0
      %5155 = vmatpush2.bf16.msra.mxu0 0
      %5156 = vmatprep.subr.bf16.mxu0 0
      %5157 = vmatpush2.bf16.msra.mxu0 0
      %5158 = vmatprep.subr.bf16.mxu0 0
      %5159 = vmatpush2.bf16.msra.mxu0 0
      %5160 = vmatprep.mubr.bf16.mxu0 0
      %5161 = vmatmul.mubr.bf16.gmra.mxu0 %v5114
      %v5162 = vpop.f32.mrf.mxu0
      %v5163 = vadd.f32 0.0, %v5162
      %v5164 = vpop.f32.mrf.mxu0
      %v5165 = vpop.f32.mrf.mxu0
      %v5166 = vadd.f32 0.0, %v5165
      %v5167 = vpop.f32.mrf.mxu0
      %5168 = vmatprep.mubr.bf16.mxu0 0
      %5169 = vmatmul.mubr.bf16.gmra.mxu0 %v5117
      %v5170 = vpop.f32.mrf.mxu0
      %v5171 = vadd.f32 0.0, %v5170
      %v5172 = vpop.f32.mrf.mxu0
      %v5173 = vpop.f32.mrf.mxu0
      %v5174 = vadd.f32 0.0, %v5173
      %v5175 = vpop.f32.mrf.mxu0
      %5176 = vmatprep.mubr.bf16.mxu0 0
      %5177 = vmatmul.mubr.bf16.gmra.mxu0 %v5120
      %v5178 = vpop.f32.mrf.mxu0
      %v5179 = vadd.f32 0.0, %v5178
      %v5180 = vpop.f32.mrf.mxu0
      %v5181 = vpop.f32.mrf.mxu0
      %v5182 = vadd.f32 0.0, %v5181
      %v5183 = vpop.f32.mrf.mxu0
      %5184 = vmatprep.mubr.bf16.mxu0 0
      %5185 = vmatmul.mubr.bf16.gmra.mxu0 %v5123
      %v5186 = vpop.f32.mrf.mxu0
      %v5187 = vadd.f32 0.0, %v5186
      %v5188 = vpop.f32.mrf.mxu0
      %v5189 = vpop.f32.mrf.mxu0
      %v5190 = vadd.f32 0.0, %v5189
      %v5191 = vpop.f32.mrf.mxu0
      %5192 = vdwg.mxu0
      %v5193 = vadd.f32 %v5036, %v5163
      %v5194 = vadd.f32 %v5037, %v5166
      %v5195 = vadd.f32 %v5038, %v5171
      %v5196 = vadd.f32 %v5039, %v5174
      %v5197 = vadd.f32 %v5040, %v5179
      %v5198 = vadd.f32 %v5041, %v5182
      %v5199 = vadd.f32 %v5042, %v5187
      %v5200 = vadd.f32 %v5043, %v5190
      %v5201 = vld [vmem:[%s2] sm:$0x1]
      %v5203 = vlaneseq
      %v5204 = vshrl.u32 %v5203, 7
      %v5205 = vsub.s32 0, %v5204
      %v5206 = vrot.slane %v5201, %v5205
      %v5208 = vmul.f32 %v5193, %v5206
      %v5209 = vmul.f32 %v5194, %v5206
      %v5210 = vmul.f32 %v5195, %v5206
      %v5211 = vmul.f32 %v5196, %v5206
      %v5212 = vmul.f32 %v5197, %v5206
      %v5213 = vmul.f32 %v5198, %v5206
      %v5214 = vmul.f32 %v5199, %v5206
      %v5215 = vmul.f32 %v5200, %v5206
      %v5216 = vld [vmem:[%s3] sm:$0x1]
      %v5218 = vlaneseq
      %v5219 = vshrl.u32 %v5218, 7
      %v5220 = vsub.s32 0, %v5219
      %v5221 = vrot.slane %v5216, %v5220
      %v5223 = vadd.f32 %v5208, %v5221
      %v5224 = vadd.f32 %v5209, %v5221
      %v5225 = vadd.f32 %v5210, %v5221
      %v5226 = vadd.f32 %v5211, %v5221
      %v5227 = vadd.f32 %v5212, %v5221
      %v5228 = vadd.f32 %v5213, %v5221
      %v5229 = vadd.f32 %v5214, %v5221
      %v5230 = vadd.f32 %v5215, %v5221
      %v5231 = vmax.f32 %v5223, 0.0
      %v5232 = vmax.f32 %v5224, 0.0
      %v5233 = vmax.f32 %v5225, 0.0
      %v5234 = vmax.f32 %v5226, 0.0
      %v5235 = vmax.f32 %v5227, 0.0
      %v5236 = vmax.f32 %v5228, 0.0
      %v5237 = vmax.f32 %v5229, 0.0
      %v5238 = vmax.f32 %v5230, 0.0
      %vm5239 = vcmask 60416
      %5240 = vst.msk [vmem:[#allocation3] sm:$0xf] %vm5239, 0
      %vm5241 = vcmask 57344
      %5242 = vst.msk [vmem:[#allocation3 + $0x4] sm:$0x1] %vm5241, 0
      %s5243 = scalar_lea.vmem [#allocation3], 72
      %5244 = vst.msk [vmem:[%s5243] sm:$0xf] %vm5239, 0
      %5245 = vst.msk [vmem:[%s5243 + $0x4] sm:$0x1] %vm5241, 0
      %vm5246 = vcmask 57344
      %vm5247 = vmand %vm5246, %vm3235
      %v5248 = vld [vmem:[#allocation3] sm:$0x1]
      %v5249 = vsel %vm5247, 0, %v5248
      %5250 = vst [vmem:[#allocation3] sm:$0x1] %v5249
      %v5251 = vld [vmem:[#allocation3 + $0x8] sm:$0x1]
      %v5252 = vsel %vm5247, 0, %v5251
      %5253 = vst [vmem:[#allocation3 + $0x8] sm:$0x1] %v5252
      %v5254 = vld [vmem:[#allocation3 + $0x10] sm:$0x1]
      %v5255 = vsel %vm5247, 0, %v5254
      %5256 = vst [vmem:[#allocation3 + $0x10] sm:$0x1] %v5255
      %v5257 = vld [vmem:[#allocation3 + $0x18] sm:$0x1]
      %v5258 = vsel %vm5247, 0, %v5257
      %5259 = vst [vmem:[#allocation3 + $0x18] sm:$0x1] %v5258
      %v5260 = vld [vmem:[#allocation3 + $0x20] sm:$0x1]
      %v5261 = vsel %vm5247, 0, %v5260
      %5262 = vst [vmem:[#allocation3 + $0x20] sm:$0x1] %v5261
      %v5263 = vld [vmem:[#allocation3 + $0x28] sm:$0x1]
      %v5264 = vsel %vm5247, 0, %v5263
      %5265 = vst [vmem:[#allocation3 + $0x28] sm:$0x1] %v5264
      %v5266 = vld [vmem:[#allocation3 + $0x30] sm:$0x1]
      %v5267 = vsel %vm5247, 0, %v5266
      %5268 = vst [vmem:[#allocation3 + $0x30] sm:$0x1] %v5267
      %v5269 = vld [vmem:[#allocation3 + $0x38] sm:$0x1]
      %v5270 = vsel %vm5247, 0, %v5269
      %5271 = vst [vmem:[#allocation3 + $0x38] sm:$0x1] %v5270
      %v5272 = vld [vmem:[#allocation3 + $0x40] sm:$0x1]
      %v5273 = vsel %vm5247, 0, %v5272
      %5274 = vst [vmem:[#allocation3 + $0x40] sm:$0x1] %v5273
      %v5275 = vld [vmem:[#allocation3 + $0x48] sm:$0x1]
      %v5276 = vsel %vm5247, 0, %v5275
      %5277 = vst [vmem:[#allocation3 + $0x48] sm:$0x1] %v5276
      %vm5278 = vmand %vm5246, %vm3267
      %v5279 = vld [vmem:[#allocation3 + $0x4] sm:$0x1]
      %v5280 = vsel %vm5278, 0, %v5279
      %5281 = vst [vmem:[#allocation3 + $0x4] sm:$0x1] %v5280
      %v5282 = vld [vmem:[#allocation3 + $0xc] sm:$0x1]
      %v5283 = vsel %vm5278, 0, %v5282
      %5284 = vst [vmem:[#allocation3 + $0xc] sm:$0x1] %v5283
      %v5285 = vld [vmem:[#allocation3 + $0x14] sm:$0x1]
      %v5286 = vsel %vm5278, 0, %v5285
      %5287 = vst [vmem:[#allocation3 + $0x14] sm:$0x1] %v5286
      %v5288 = vld [vmem:[#allocation3 + $0x1c] sm:$0x1]
      %v5289 = vsel %vm5278, 0, %v5288
      %5290 = vst [vmem:[#allocation3 + $0x1c] sm:$0x1] %v5289
      %v5291 = vld [vmem:[#allocation3 + $0x24] sm:$0x1]
      %v5292 = vsel %vm5278, 0, %v5291
      %5293 = vst [vmem:[#allocation3 + $0x24] sm:$0x1] %v5292
      %v5294 = vld [vmem:[#allocation3 + $0x2c] sm:$0x1]
      %v5295 = vsel %vm5278, 0, %v5294
      %5296 = vst [vmem:[#allocation3 + $0x2c] sm:$0x1] %v5295
      %v5297 = vld [vmem:[#allocation3 + $0x34] sm:$0x1]
      %v5298 = vsel %vm5278, 0, %v5297
      %5299 = vst [vmem:[#allocation3 + $0x34] sm:$0x1] %v5298
      %v5300 = vld [vmem:[#allocation3 + $0x3c] sm:$0x1]
      %v5301 = vsel %vm5278, 0, %v5300
      %5302 = vst [vmem:[#allocation3 + $0x3c] sm:$0x1] %v5301
      %v5303 = vld [vmem:[#allocation3 + $0x44] sm:$0x1]
      %v5304 = vsel %vm5278, 0, %v5303
      %5305 = vst [vmem:[#allocation3 + $0x44] sm:$0x1] %v5304
      %v5306 = vld [vmem:[#allocation3 + $0x4c] sm:$0x1]
      %v5307 = vsel %vm5278, 0, %v5306
      %5308 = vst [vmem:[#allocation3 + $0x4c] sm:$0x1] %v5307
      %v5309 = vpack.c.bf16 %v5231, %v5231
      %v5310 = vpack.c.bf16 %v5232, %v5232
      %v5311 = vpack.c.bf16 %v5233, %v5233
      %v5312 = vpack.c.bf16 %v5234, %v5234
      %v5313 = vpack.c.bf16 %v5235, %v5235
      %v5314 = vpack.c.bf16 %v5236, %v5236
      %v5315 = vpack.c.bf16 %v5237, %v5237
      %v5316 = vpack.c.bf16 %v5238, %v5238
      %v5325 = vunpack.c.l.b16 %v5309
      %v5326 = vunpack.c.l.b16 %v5310
      %v5327 = vunpack.c.l.b16 %v5311
      %v5328 = vunpack.c.l.b16 %v5312
      %v5329 = vunpack.c.l.b16 %v5313
      %v5330 = vunpack.c.l.b16 %v5314
      %v5331 = vunpack.c.l.b16 %v5315
      %v5332 = vunpack.c.l.b16 %v5316
      %v5333 = vpack.c.b16 %v5325, %v5325
      %v5334 = vpack.c.b16 %v5326, %v5326
      %v5335 = vpack.c.b16 %v5327, %v5327
      %v5336 = vpack.c.b16 %v5328, %v5328
      %v5337 = vpack.c.b16 %v5329, %v5329
      %v5338 = vpack.c.b16 %v5330, %v5330
      %v5339 = vpack.c.b16 %v5331, %v5331
      %v5340 = vpack.c.b16 %v5332, %v5332
      %v5342 = vshrl.u32 %v5333, 16
      %v5344 = vrot.slane %v5342, 7
      %v5345 = vshll.u32 %v5333, 16
      %v5347 = vor.u32 %v5344, %v5345
      %v5348 = vrot.slane %v5344, 4
      %v5350 = vshrl.u32 %v5334, 16
      %v5352 = vrot.slane %v5350, 7
      %v5353 = vshll.u32 %v5334, 16
      %v5355 = vor.u32 %v5352, %v5353
      %v5356 = vrot.slane %v5352, 4
      %v5358 = vshrl.u32 %v5335, 16
      %v5360 = vrot.slane %v5358, 7
      %v5361 = vshll.u32 %v5335, 16
      %v5363 = vor.u32 %v5360, %v5361
      %v5364 = vrot.slane %v5360, 4
      %v5366 = vshrl.u32 %v5336, 16
      %v5368 = vrot.slane %v5366, 7
      %v5369 = vshll.u32 %v5336, 16
      %v5371 = vor.u32 %v5368, %v5369
      %v5372 = vrot.slane %v5368, 4
      %v5374 = vshrl.u32 %v5337, 16
      %v5376 = vrot.slane %v5374, 7
      %v5377 = vshll.u32 %v5337, 16
      %v5379 = vor.u32 %v5376, %v5377
      %v5380 = vrot.slane %v5376, 4
      %v5382 = vshrl.u32 %v5338, 16
      %v5384 = vrot.slane %v5382, 7
      %v5385 = vshll.u32 %v5338, 16
      %v5387 = vor.u32 %v5384, %v5385
      %v5388 = vrot.slane %v5384, 4
      %v5390 = vshrl.u32 %v5339, 16
      %v5392 = vrot.slane %v5390, 7
      %v5393 = vshll.u32 %v5339, 16
      %v5395 = vor.u32 %v5392, %v5393
      %v5396 = vrot.slane %v5392, 4
      %v5398 = vshrl.u32 %v5340, 16
      %v5400 = vrot.slane %v5398, 7
      %v5401 = vshll.u32 %v5340, 16
      %v5403 = vor.u32 %v5400, %v5401
      %v5404 = vrot.slane %v5400, 4
      %s5421 = scalar_lea.vmem [#allocation3], 8
      %vm5422 = vcmask 60416
      %vm5423 = vmand %vm5422, %vm3267
      %v5424 = vld [vmem:[%s5421] sm:$0xf]
      %v5425 = vsel %vm5423, %v5347, %v5424
      %5426 = vst [vmem:[%s5421] sm:$0xf] %v5425
      %v5427 = vld [vmem:[%s5421 + $0x4] sm:$0x1]
      %v5428 = vsel %vm5247, %v5348, %v5427
      %5429 = vst [vmem:[%s5421 + $0x4] sm:$0x1] %v5428
      %v5430 = vld [vmem:[%s5421 + $0x8] sm:$0xf]
      %v5431 = vsel %vm5423, %v5355, %v5430
      %5432 = vst [vmem:[%s5421 + $0x8] sm:$0xf] %v5431
      %v5433 = vld [vmem:[%s5421 + $0xc] sm:$0x1]
      %v5434 = vsel %vm5247, %v5356, %v5433
      %5435 = vst [vmem:[%s5421 + $0xc] sm:$0x1] %v5434
      %v5436 = vld [vmem:[%s5421 + $0x10] sm:$0xf]
      %v5437 = vsel %vm5423, %v5363, %v5436
      %5438 = vst [vmem:[%s5421 + $0x10] sm:$0xf] %v5437
      %v5439 = vld [vmem:[%s5421 + $0x14] sm:$0x1]
      %v5440 = vsel %vm5247, %v5364, %v5439
      %5441 = vst [vmem:[%s5421 + $0x14] sm:$0x1] %v5440
      %v5442 = vld [vmem:[%s5421 + $0x18] sm:$0xf]
      %v5443 = vsel %vm5423, %v5371, %v5442
      %5444 = vst [vmem:[%s5421 + $0x18] sm:$0xf] %v5443
      %v5445 = vld [vmem:[%s5421 + $0x1c] sm:$0x1]
      %v5446 = vsel %vm5247, %v5372, %v5445
      %5447 = vst [vmem:[%s5421 + $0x1c] sm:$0x1] %v5446
      %v5448 = vld [vmem:[%s5421 + $0x20] sm:$0xf]
      %v5449 = vsel %vm5423, %v5379, %v5448
      %5450 = vst [vmem:[%s5421 + $0x20] sm:$0xf] %v5449
      %v5451 = vld [vmem:[%s5421 + $0x24] sm:$0x1]
      %v5452 = vsel %vm5247, %v5380, %v5451
      %5453 = vst [vmem:[%s5421 + $0x24] sm:$0x1] %v5452
      %v5454 = vld [vmem:[%s5421 + $0x28] sm:$0xf]
      %v5455 = vsel %vm5423, %v5387, %v5454
      %5456 = vst [vmem:[%s5421 + $0x28] sm:$0xf] %v5455
      %v5457 = vld [vmem:[%s5421 + $0x2c] sm:$0x1]
      %v5458 = vsel %vm5247, %v5388, %v5457
      %5459 = vst [vmem:[%s5421 + $0x2c] sm:$0x1] %v5458
      %v5460 = vld [vmem:[%s5421 + $0x30] sm:$0xf]
      %v5461 = vsel %vm5423, %v5395, %v5460
      %5462 = vst [vmem:[%s5421 + $0x30] sm:$0xf] %v5461
      %v5463 = vld [vmem:[%s5421 + $0x34] sm:$0x1]
      %v5464 = vsel %vm5247, %v5396, %v5463
      %5465 = vst [vmem:[%s5421 + $0x34] sm:$0x1] %v5464
      %v5466 = vld [vmem:[%s5421 + $0x38] sm:$0xf]
      %v5467 = vsel %vm5423, %v5403, %v5466
      %5468 = vst [vmem:[%s5421 + $0x38] sm:$0xf] %v5467
      %v5469 = vld [vmem:[%s5421 + $0x3c] sm:$0x1]
      %v5470 = vsel %vm5247, %v5404, %v5469
      %5471 = vst [vmem:[%s5421 + $0x3c] sm:$0x1] %v5470
      %v5472 = vld [vmem:[#allocation3] sm:$0xf]
      %v5473 = vld [vmem:[#allocation3 + $0x8] sm:$0xf]
      %v5474 = vld [vmem:[#allocation3 + $0x10] sm:$0xf]
      %v5475 = vld [vmem:[#allocation3 + $0x18] sm:$0xf]
      %v5476 = vld [vmem:[#allocation3 + $0x20] sm:$0xf]
      %v5477 = vld [vmem:[#allocation3 + $0x28] sm:$0xf]
      %v5478 = vld [vmem:[#allocation3 + $0x30] sm:$0xf]
      %v5479 = vld [vmem:[#allocation3 + $0x38] sm:$0xf]
      %v5480 = vld [vmem:[%s4] sm:$0xf]
      %v5481 = vld [vmem:[#allocation3 + $0x4] sm:$0x1]
      %v5482 = vld [vmem:[#allocation3 + $0xc] sm:$0x1]
      %v5483 = vld [vmem:[#allocation3 + $0x14] sm:$0x1]
      %v5484 = vld [vmem:[#allocation3 + $0x1c] sm:$0x1]
      %v5485 = vld [vmem:[#allocation3 + $0x24] sm:$0x1]
      %v5486 = vld [vmem:[#allocation3 + $0x2c] sm:$0x1]
      %v5487 = vld [vmem:[#allocation3 + $0x34] sm:$0x1]
      %v5488 = vld [vmem:[#allocation3 + $0x3c] sm:$0x1]
      %v5490 = vshrl.u32 %v5472, 16
      %v5492 = vrot.slane %v5490, 4
      %v5493 = vshll.u32 %v5472, 16
      %v5495 = vrot.slane %v5493, 5
      %v5496 = vor.u32 %v5492, %v5495
      %v5497 = vrot.slane %v5496, 4
      %v5499 = vshll.u32 %v5481, 16
      %v5501 = vrot.slane %v5499, 5
      %v5502 = vsel %vm3711, %v5497, %v5501
      %v5504 = vshrl.u32 %v5473, 16
      %v5506 = vrot.slane %v5504, 4
      %v5507 = vshll.u32 %v5473, 16
      %v5509 = vrot.slane %v5507, 5
      %v5510 = vor.u32 %v5506, %v5509
      %v5511 = vrot.slane %v5510, 4
      %v5513 = vshll.u32 %v5482, 16
      %v5515 = vrot.slane %v5513, 5
      %v5516 = vsel %vm3711, %v5511, %v5515
      %v5518 = vshrl.u32 %v5474, 16
      %v5520 = vrot.slane %v5518, 4
      %v5521 = vshll.u32 %v5474, 16
      %v5523 = vrot.slane %v5521, 5
      %v5524 = vor.u32 %v5520, %v5523
      %v5525 = vrot.slane %v5524, 4
      %v5527 = vshll.u32 %v5483, 16
      %v5529 = vrot.slane %v5527, 5
      %v5530 = vsel %vm3711, %v5525, %v5529
      %v5532 = vshrl.u32 %v5475, 16
      %v5534 = vrot.slane %v5532, 4
      %v5535 = vshll.u32 %v5475, 16
      %v5537 = vrot.slane %v5535, 5
      %v5538 = vor.u32 %v5534, %v5537
      %v5539 = vrot.slane %v5538, 4
      %v5541 = vshll.u32 %v5484, 16
      %v5543 = vrot.slane %v5541, 5
      %v5544 = vsel %vm3711, %v5539, %v5543
      %v5546 = vshrl.u32 %v5476, 16
      %v5548 = vrot.slane %v5546, 4
      %v5549 = vshll.u32 %v5476, 16
      %v5551 = vrot.slane %v5549, 5
      %v5552 = vor.u32 %v5548, %v5551
      %v5553 = vrot.slane %v5552, 4
      %v5555 = vshll.u32 %v5485, 16
      %v5557 = vrot.slane %v5555, 5
      %v5558 = vsel %vm3711, %v5553, %v5557
      %v5560 = vshrl.u32 %v5477, 16
      %v5562 = vrot.slane %v5560, 4
      %v5563 = vshll.u32 %v5477, 16
      %v5565 = vrot.slane %v5563, 5
      %v5566 = vor.u32 %v5562, %v5565
      %v5567 = vrot.slane %v5566, 4
      %v5569 = vshll.u32 %v5486, 16
      %v5571 = vrot.slane %v5569, 5
      %v5572 = vsel %vm3711, %v5567, %v5571
      %v5574 = vshrl.u32 %v5478, 16
      %v5576 = vrot.slane %v5574, 4
      %v5577 = vshll.u32 %v5478, 16
      %v5579 = vrot.slane %v5577, 5
      %v5580 = vor.u32 %v5576, %v5579
      %v5581 = vrot.slane %v5580, 4
      %v5583 = vshll.u32 %v5487, 16
      %v5585 = vrot.slane %v5583, 5
      %v5586 = vsel %vm3711, %v5581, %v5585
      %v5588 = vshrl.u32 %v5479, 16
      %v5590 = vrot.slane %v5588, 4
      %v5591 = vshll.u32 %v5479, 16
      %v5593 = vrot.slane %v5591, 5
      %v5594 = vor.u32 %v5590, %v5593
      %v5595 = vrot.slane %v5594, 4
      %v5597 = vshll.u32 %v5488, 16
      %v5599 = vrot.slane %v5597, 5
      %v5600 = vsel %vm3711, %v5595, %v5599
      %v5601 = vld [vmem:[%s4 + $0x4] sm:$0xf]
      %v5602 = vunpack.c.l.b16 %v5502
      %v5603 = vunpack.c.l.b16 %v5516
      %v5604 = vunpack.c.l.b16 %v5530
      %v5605 = vunpack.c.l.b16 %v5544
      %v5606 = vunpack.c.l.b16 %v5558
      %v5607 = vunpack.c.l.b16 %v5572
      %v5608 = vunpack.c.l.b16 %v5586
      %v5609 = vunpack.c.l.b16 %v5600
      %v5610 = vpack.c.b16 %v5603, %v5602
      %v5611 = vpack.c.b16 %v5605, %v5604
      %v5612 = vpack.c.b16 %v5607, %v5606
      %v5613 = vpack.c.b16 %v5609, %v5608
      %vm5614 = vcmask 64512
      %v5616 = vsel %vm5614, %v5610, 0
      %v5619 = vsel %vm5614, %v5611, 0
      %v5622 = vsel %vm5614, %v5612, 0
      %v5625 = vsel %vm5614, %v5613, 0
      %vm5627 = vcmask 1043456
      %v5629 = vsel %vm5627, %v5601, 0
      %5631 = vmatprep.subr.bf16.mxu0 0
      %5632 = vmatpush1.bf16.msra.mxu0 0
      %5633 = vmatprep.subr.bf16.mxu0 0
      %5634 = vmatpush1.bf16.msra.mxu0 0
      %5635 = vmatprep.subr.bf16.mxu0 0
      %5636 = vmatpush1.bf16.msra.mxu0 0
      %5637 = vmatprep.subr.bf16.mxu0 0
      %5638 = vmatpush1.bf16.msra.mxu0 0
      %5639 = vmatprep.subr.bf16.mxu0 0
      %5640 = vmatpush1.bf16.msra.mxu0 0
      %5641 = vmatprep.subr.bf16.mxu0 0
      %5642 = vmatpush1.bf16.msra.mxu0 0
      %5643 = vmatprep.subr.bf16.mxu0 0
      %5644 = vmatpush1.bf16.msra.mxu0 0
      %5645 = vmatprep.subr.bf16.mxu0 0
      %5646 = vmatpush1.bf16.msra.mxu0 %v5629
      %5647 = vmatprep.subr.bf16.mxu0 0
      %5648 = vmatpush2.bf16.msra.mxu0 0
      %5649 = vmatprep.subr.bf16.mxu0 0
      %5650 = vmatpush2.bf16.msra.mxu0 0
      %5651 = vmatprep.subr.bf16.mxu0 0
      %5652 = vmatpush2.bf16.msra.mxu0 0
      %5653 = vmatprep.subr.bf16.mxu0 0
      %5654 = vmatpush2.bf16.msra.mxu0 0
      %5655 = vmatprep.subr.bf16.mxu0 0
      %5656 = vmatpush2.bf16.msra.mxu0 0
      %5657 = vmatprep.subr.bf16.mxu0 0
      %5658 = vmatpush2.bf16.msra.mxu0 0
      %5659 = vmatprep.subr.bf16.mxu0 0
      %5660 = vmatpush2.bf16.msra.mxu0 0
      %5661 = vmatprep.subr.bf16.mxu0 0
      %5662 = vmatpush2.bf16.msra.mxu0 0
      %5663 = vmatprep.mubr.bf16.mxu0 0
      %5664 = vmatmul.mubr.bf16.gmra.mxu0 %v5616
      %v5665 = vpop.f32.mrf.mxu0
      %v5666 = vadd.f32 0.0, %v5665
      %v5667 = vpop.f32.mrf.mxu0
      %v5668 = vpop.f32.mrf.mxu0
      %v5669 = vadd.f32 0.0, %v5668
      %v5670 = vpop.f32.mrf.mxu0
      %5671 = vmatprep.mubr.bf16.mxu0 0
      %5672 = vmatmul.mubr.bf16.gmra.mxu0 %v5619
      %v5673 = vpop.f32.mrf.mxu0
      %v5674 = vadd.f32 0.0, %v5673
      %v5675 = vpop.f32.mrf.mxu0
      %v5676 = vpop.f32.mrf.mxu0
      %v5677 = vadd.f32 0.0, %v5676
      %v5678 = vpop.f32.mrf.mxu0
      %5679 = vmatprep.mubr.bf16.mxu0 0
      %5680 = vmatmul.mubr.bf16.gmra.mxu0 %v5622
      %v5681 = vpop.f32.mrf.mxu0
      %v5682 = vadd.f32 0.0, %v5681
      %v5683 = vpop.f32.mrf.mxu0
      %v5684 = vpop.f32.mrf.mxu0
      %v5685 = vadd.f32 0.0, %v5684
      %v5686 = vpop.f32.mrf.mxu0
      %5687 = vmatprep.mubr.bf16.mxu0 0
      %5688 = vmatmul.mubr.bf16.gmra.mxu0 %v5625
      %v5689 = vpop.f32.mrf.mxu0
      %v5690 = vadd.f32 0.0, %v5689
      %v5691 = vpop.f32.mrf.mxu0
      %v5692 = vpop.f32.mrf.mxu0
      %v5693 = vadd.f32 0.0, %v5692
      %v5694 = vpop.f32.mrf.mxu0
      %5695 = vdwg.mxu0
      %v5704 = vunpack.c.l.b16 %v5472
      %v5705 = vunpack.c.l.b16 %v5473
      %v5706 = vunpack.c.l.b16 %v5474
      %v5707 = vunpack.c.l.b16 %v5475
      %v5708 = vunpack.c.l.b16 %v5476
      %v5709 = vunpack.c.l.b16 %v5477
      %v5710 = vunpack.c.l.b16 %v5478
      %v5711 = vunpack.c.l.b16 %v5479
      %v5712 = vpack.c.b16 %v5705, %v5704
      %v5713 = vpack.c.b16 %v5707, %v5706
      %v5714 = vpack.c.b16 %v5709, %v5708
      %v5715 = vpack.c.b16 %v5711, %v5710
      %v5717 = vsel %vm5614, %v5712, 0
      %v5720 = vsel %vm5614, %v5713, 0
      %v5723 = vsel %vm5614, %v5714, 0
      %v5726 = vsel %vm5614, %v5715, 0
      %v5729 = vsel %vm5627, %v5480, 0
      %5731 = vmatprep.subr.bf16.mxu0 0
      %5732 = vmatpush1.bf16.msra.mxu0 0
      %5733 = vmatprep.subr.bf16.mxu0 0
      %5734 = vmatpush1.bf16.msra.mxu0 0
      %5735 = vmatprep.subr.bf16.mxu0 0
      %5736 = vmatpush1.bf16.msra.mxu0 0
      %5737 = vmatprep.subr.bf16.mxu0 0
      %5738 = vmatpush1.bf16.msra.mxu0 0
      %5739 = vmatprep.subr.bf16.mxu0 0
      %5740 = vmatpush1.bf16.msra.mxu0 0
      %5741 = vmatprep.subr.bf16.mxu0 0
      %5742 = vmatpush1.bf16.msra.mxu0 0
      %5743 = vmatprep.subr.bf16.mxu0 0
      %5744 = vmatpush1.bf16.msra.mxu0 0
      %5745 = vmatprep.subr.bf16.mxu0 0
      %5746 = vmatpush1.bf16.msra.mxu0 %v5729
      %5747 = vmatprep.subr.bf16.mxu0 0
      %5748 = vmatpush2.bf16.msra.mxu0 0
      %5749 = vmatprep.subr.bf16.mxu0 0
      %5750 = vmatpush2.bf16.msra.mxu0 0
      %5751 = vmatprep.subr.bf16.mxu0 0
      %5752 = vmatpush2.bf16.msra.mxu0 0
      %5753 = vmatprep.subr.bf16.mxu0 0
      %5754 = vmatpush2.bf16.msra.mxu0 0
      %5755 = vmatprep.subr.bf16.mxu0 0
      %5756 = vmatpush2.bf16.msra.mxu0 0
      %5757 = vmatprep.subr.bf16.mxu0 0
      %5758 = vmatpush2.bf16.msra.mxu0 0
      %5759 = vmatprep.subr.bf16.mxu0 0
      %5760 = vmatpush2.bf16.msra.mxu0 0
      %5761 = vmatprep.subr.bf16.mxu0 0
      %5762 = vmatpush2.bf16.msra.mxu0 0
      %5763 = vmatprep.mubr.bf16.mxu0 0
      %5764 = vmatmul.mubr.bf16.gmra.mxu0 %v5717
      %v5765 = vpop.f32.mrf.mxu0
      %v5766 = vadd.f32 %v5666, %v5765
      %v5767 = vpop.f32.mrf.mxu0
      %v5768 = vpop.f32.mrf.mxu0
      %v5769 = vadd.f32 %v5669, %v5768
      %v5770 = vpop.f32.mrf.mxu0
      %5771 = vmatprep.mubr.bf16.mxu0 0
      %5772 = vmatmul.mubr.bf16.gmra.mxu0 %v5720
      %v5773 = vpop.f32.mrf.mxu0
      %v5774 = vadd.f32 %v5674, %v5773
      %v5775 = vpop.f32.mrf.mxu0
      %v5776 = vpop.f32.mrf.mxu0
      %v5777 = vadd.f32 %v5677, %v5776
      %v5778 = vpop.f32.mrf.mxu0
      %5779 = vmatprep.mubr.bf16.mxu0 0
      %5780 = vmatmul.mubr.bf16.gmra.mxu0 %v5723
      %v5781 = vpop.f32.mrf.mxu0
      %v5782 = vadd.f32 %v5682, %v5781
      %v5783 = vpop.f32.mrf.mxu0
      %v5784 = vpop.f32.mrf.mxu0
      %v5785 = vadd.f32 %v5685, %v5784
      %v5786 = vpop.f32.mrf.mxu0
      %5787 = vmatprep.mubr.bf16.mxu0 0
      %5788 = vmatmul.mubr.bf16.gmra.mxu0 %v5726
      %v5789 = vpop.f32.mrf.mxu0
      %v5790 = vadd.f32 %v5690, %v5789
      %v5791 = vpop.f32.mrf.mxu0
      %v5792 = vpop.f32.mrf.mxu0
      %v5793 = vadd.f32 %v5693, %v5792
      %v5794 = vpop.f32.mrf.mxu0
      %5795 = vdwg.mxu0
      %v5796 = vld [vmem:[#allocation3] sm:$0xe]
      %v5797 = vld [vmem:[#allocation3 + $0x8] sm:$0xe]
      %v5798 = vld [vmem:[#allocation3 + $0x10] sm:$0xe]
      %v5799 = vld [vmem:[#allocation3 + $0x18] sm:$0xe]
      %v5800 = vld [vmem:[#allocation3 + $0x20] sm:$0xe]
      %v5801 = vld [vmem:[#allocation3 + $0x28] sm:$0xe]
      %v5802 = vld [vmem:[#allocation3 + $0x30] sm:$0xe]
      %v5803 = vld [vmem:[#allocation3 + $0x38] sm:$0xe]
      %v5820 = vrot.slane %v5796, 5
      %v5821 = vrot.slane %v5820, 4
      %v5822 = vrot.slane %v5481, 5
      %v5823 = vsel %vm4048, %v5821, %v5822
      %v5824 = vrot.slane %v5797, 5
      %v5825 = vrot.slane %v5824, 4
      %v5826 = vrot.slane %v5482, 5
      %v5827 = vsel %vm4048, %v5825, %v5826
      %v5828 = vrot.slane %v5798, 5
      %v5829 = vrot.slane %v5828, 4
      %v5830 = vrot.slane %v5483, 5
      %v5831 = vsel %vm4048, %v5829, %v5830
      %v5832 = vrot.slane %v5799, 5
      %v5833 = vrot.slane %v5832, 4
      %v5834 = vrot.slane %v5484, 5
      %v5835 = vsel %vm4048, %v5833, %v5834
      %v5836 = vrot.slane %v5800, 5
      %v5837 = vrot.slane %v5836, 4
      %v5838 = vrot.slane %v5485, 5
      %v5839 = vsel %vm4048, %v5837, %v5838
      %v5840 = vrot.slane %v5801, 5
      %v5841 = vrot.slane %v5840, 4
      %v5842 = vrot.slane %v5486, 5
      %v5843 = vsel %vm4048, %v5841, %v5842
      %v5844 = vrot.slane %v5802, 5
      %v5845 = vrot.slane %v5844, 4
      %v5846 = vrot.slane %v5487, 5
      %v5847 = vsel %vm4048, %v5845, %v5846
      %v5848 = vrot.slane %v5803, 5
      %v5849 = vrot.slane %v5848, 4
      %v5850 = vrot.slane %v5488, 5
      %v5851 = vsel %vm4048, %v5849, %v5850
      %v5852 = vld [vmem:[%s4 + $0x8] sm:$0xf]
      %v5853 = vunpack.c.l.b16 %v5823
      %v5854 = vunpack.c.l.b16 %v5827
      %v5855 = vunpack.c.l.b16 %v5831
      %v5856 = vunpack.c.l.b16 %v5835
      %v5857 = vunpack.c.l.b16 %v5839
      %v5858 = vunpack.c.l.b16 %v5843
      %v5859 = vunpack.c.l.b16 %v5847
      %v5860 = vunpack.c.l.b16 %v5851
      %v5861 = vpack.c.b16 %v5854, %v5853
      %v5862 = vpack.c.b16 %v5856, %v5855
      %v5863 = vpack.c.b16 %v5858, %v5857
      %v5864 = vpack.c.b16 %v5860, %v5859
      %v5866 = vsel %vm5614, %v5861, 0
      %v5869 = vsel %vm5614, %v5862, 0
      %v5872 = vsel %vm5614, %v5863, 0
      %v5875 = vsel %vm5614, %v5864, 0
      %v5878 = vsel %vm5627, %v5852, 0
      %5880 = vmatprep.subr.bf16.mxu0 0
      %5881 = vmatpush1.bf16.msra.mxu0 0
      %5882 = vmatprep.subr.bf16.mxu0 0
      %5883 = vmatpush1.bf16.msra.mxu0 0
      %5884 = vmatprep.subr.bf16.mxu0 0
      %5885 = vmatpush1.bf16.msra.mxu0 0
      %5886 = vmatprep.subr.bf16.mxu0 0
      %5887 = vmatpush1.bf16.msra.mxu0 0
      %5888 = vmatprep.subr.bf16.mxu0 0
      %5889 = vmatpush1.bf16.msra.mxu0 0
      %5890 = vmatprep.subr.bf16.mxu0 0
      %5891 = vmatpush1.bf16.msra.mxu0 0
      %5892 = vmatprep.subr.bf16.mxu0 0
      %5893 = vmatpush1.bf16.msra.mxu0 0
      %5894 = vmatprep.subr.bf16.mxu0 0
      %5895 = vmatpush1.bf16.msra.mxu0 %v5878
      %5896 = vmatprep.subr.bf16.mxu0 0
      %5897 = vmatpush2.bf16.msra.mxu0 0
      %5898 = vmatprep.subr.bf16.mxu0 0
      %5899 = vmatpush2.bf16.msra.mxu0 0
      %5900 = vmatprep.subr.bf16.mxu0 0
      %5901 = vmatpush2.bf16.msra.mxu0 0
      %5902 = vmatprep.subr.bf16.mxu0 0
      %5903 = vmatpush2.bf16.msra.mxu0 0
      %5904 = vmatprep.subr.bf16.mxu0 0
      %5905 = vmatpush2.bf16.msra.mxu0 0
      %5906 = vmatprep.subr.bf16.mxu0 0
      %5907 = vmatpush2.bf16.msra.mxu0 0
      %5908 = vmatprep.subr.bf16.mxu0 0
      %5909 = vmatpush2.bf16.msra.mxu0 0
      %5910 = vmatprep.subr.bf16.mxu0 0
      %5911 = vmatpush2.bf16.msra.mxu0 0
      %5912 = vmatprep.mubr.bf16.mxu0 0
      %5913 = vmatmul.mubr.bf16.gmra.mxu0 %v5866
      %v5914 = vpop.f32.mrf.mxu0
      %v5915 = vadd.f32 0.0, %v5914
      %v5916 = vpop.f32.mrf.mxu0
      %v5917 = vpop.f32.mrf.mxu0
      %v5918 = vadd.f32 0.0, %v5917
      %v5919 = vpop.f32.mrf.mxu0
      %5920 = vmatprep.mubr.bf16.mxu0 0
      %5921 = vmatmul.mubr.bf16.gmra.mxu0 %v5869
      %v5922 = vpop.f32.mrf.mxu0
      %v5923 = vadd.f32 0.0, %v5922
      %v5924 = vpop.f32.mrf.mxu0
      %v5925 = vpop.f32.mrf.mxu0
      %v5926 = vadd.f32 0.0, %v5925
      %v5927 = vpop.f32.mrf.mxu0
      %5928 = vmatprep.mubr.bf16.mxu0 0
      %5929 = vmatmul.mubr.bf16.gmra.mxu0 %v5872
      %v5930 = vpop.f32.mrf.mxu0
      %v5931 = vadd.f32 0.0, %v5930
      %v5932 = vpop.f32.mrf.mxu0
      %v5933 = vpop.f32.mrf.mxu0
      %v5934 = vadd.f32 0.0, %v5933
      %v5935 = vpop.f32.mrf.mxu0
      %5936 = vmatprep.mubr.bf16.mxu0 0
      %5937 = vmatmul.mubr.bf16.gmra.mxu0 %v5875
      %v5938 = vpop.f32.mrf.mxu0
      %v5939 = vadd.f32 0.0, %v5938
      %v5940 = vpop.f32.mrf.mxu0
      %v5941 = vpop.f32.mrf.mxu0
      %v5942 = vadd.f32 0.0, %v5941
      %v5943 = vpop.f32.mrf.mxu0
      %5944 = vdwg.mxu0
      %v5945 = vadd.f32 %v5766, %v5915
      %v5946 = vadd.f32 %v5769, %v5918
      %v5947 = vadd.f32 %v5774, %v5923
      %v5948 = vadd.f32 %v5777, %v5926
      %v5949 = vadd.f32 %v5782, %v5931
      %v5950 = vadd.f32 %v5785, %v5934
      %v5951 = vadd.f32 %v5790, %v5939
      %v5952 = vadd.f32 %v5793, %v5942
      %v5953 = vld [vmem:[%s5421] sm:$0xf]
      %v5954 = vld [vmem:[%s5421 + $0x8] sm:$0xf]
      %v5955 = vld [vmem:[%s5421 + $0x10] sm:$0xf]
      %v5956 = vld [vmem:[%s5421 + $0x18] sm:$0xf]
      %v5957 = vld [vmem:[%s5421 + $0x20] sm:$0xf]
      %v5958 = vld [vmem:[%s5421 + $0x28] sm:$0xf]
      %v5959 = vld [vmem:[%s5421 + $0x30] sm:$0xf]
      %v5960 = vld [vmem:[%s5421 + $0x38] sm:$0xf]
      %v5961 = vld [vmem:[%s4 + $0xc] sm:$0xf]
      %v5970 = vunpack.c.l.b16 %v5953
      %v5971 = vunpack.c.l.b16 %v5954
      %v5972 = vunpack.c.l.b16 %v5955
      %v5973 = vunpack.c.l.b16 %v5956
      %v5974 = vunpack.c.l.b16 %v5957
      %v5975 = vunpack.c.l.b16 %v5958
      %v5976 = vunpack.c.l.b16 %v5959
      %v5977 = vunpack.c.l.b16 %v5960
      %v5978 = vpack.c.b16 %v5971, %v5970
      %v5979 = vpack.c.b16 %v5973, %v5972
      %v5980 = vpack.c.b16 %v5975, %v5974
      %v5981 = vpack.c.b16 %v5977, %v5976
      %v5983 = vsel %vm5614, %v5978, 0
      %v5986 = vsel %vm5614, %v5979, 0
      %v5989 = vsel %vm5614, %v5980, 0
      %v5992 = vsel %vm5614, %v5981, 0
      %v5995 = vsel %vm5627, %v5961, 0
      %5997 = vmatprep.subr.bf16.mxu0 0
      %5998 = vmatpush1.bf16.msra.mxu0 0
      %5999 = vmatprep.subr.bf16.mxu0 0
      %6000 = vmatpush1.bf16.msra.mxu0 0
      %6001 = vmatprep.subr.bf16.mxu0 0
      %6002 = vmatpush1.bf16.msra.mxu0 0
      %6003 = vmatprep.subr.bf16.mxu0 0
      %6004 = vmatpush1.bf16.msra.mxu0 0
      %6005 = vmatprep.subr.bf16.mxu0 0
      %6006 = vmatpush1.bf16.msra.mxu0 0
      %6007 = vmatprep.subr.bf16.mxu0 0
      %6008 = vmatpush1.bf16.msra.mxu0 0
      %6009 = vmatprep.subr.bf16.mxu0 0
      %6010 = vmatpush1.bf16.msra.mxu0 0
      %6011 = vmatprep.subr.bf16.mxu0 0
      %6012 = vmatpush1.bf16.msra.mxu0 %v5995
      %6013 = vmatprep.subr.bf16.mxu0 0
      %6014 = vmatpush2.bf16.msra.mxu0 0
      %6015 = vmatprep.subr.bf16.mxu0 0
      %6016 = vmatpush2.bf16.msra.mxu0 0
      %6017 = vmatprep.subr.bf16.mxu0 0
      %6018 = vmatpush2.bf16.msra.mxu0 0
      %6019 = vmatprep.subr.bf16.mxu0 0
      %6020 = vmatpush2.bf16.msra.mxu0 0
      %6021 = vmatprep.subr.bf16.mxu0 0
      %6022 = vmatpush2.bf16.msra.mxu0 0
      %6023 = vmatprep.subr.bf16.mxu0 0
      %6024 = vmatpush2.bf16.msra.mxu0 0
      %6025 = vmatprep.subr.bf16.mxu0 0
      %6026 = vmatpush2.bf16.msra.mxu0 0
      %6027 = vmatprep.subr.bf16.mxu0 0
      %6028 = vmatpush2.bf16.msra.mxu0 0
      %6029 = vmatprep.mubr.bf16.mxu0 0
      %6030 = vmatmul.mubr.bf16.gmra.mxu0 %v5983
      %v6031 = vpop.f32.mrf.mxu0
      %v6032 = vadd.f32 0.0, %v6031
      %v6033 = vpop.f32.mrf.mxu0
      %v6034 = vpop.f32.mrf.mxu0
      %v6035 = vadd.f32 0.0, %v6034
      %v6036 = vpop.f32.mrf.mxu0
      %6037 = vmatprep.mubr.bf16.mxu0 0
      %6038 = vmatmul.mubr.bf16.gmra.mxu0 %v5986
      %v6039 = vpop.f32.mrf.mxu0
      %v6040 = vadd.f32 0.0, %v6039
      %v6041 = vpop.f32.mrf.mxu0
      %v6042 = vpop.f32.mrf.mxu0
      %v6043 = vadd.f32 0.0, %v6042
      %v6044 = vpop.f32.mrf.mxu0
      %6045 = vmatprep.mubr.bf16.mxu0 0
      %6046 = vmatmul.mubr.bf16.gmra.mxu0 %v5989
      %v6047 = vpop.f32.mrf.mxu0
      %v6048 = vadd.f32 0.0, %v6047
      %v6049 = vpop.f32.mrf.mxu0
      %v6050 = vpop.f32.mrf.mxu0
      %v6051 = vadd.f32 0.0, %v6050
      %v6052 = vpop.f32.mrf.mxu0
      %6053 = vmatprep.mubr.bf16.mxu0 0
      %6054 = vmatmul.mubr.bf16.gmra.mxu0 %v5992
      %v6055 = vpop.f32.mrf.mxu0
      %v6056 = vadd.f32 0.0, %v6055
      %v6057 = vpop.f32.mrf.mxu0
      %v6058 = vpop.f32.mrf.mxu0
      %v6059 = vadd.f32 0.0, %v6058
      %v6060 = vpop.f32.mrf.mxu0
      %6061 = vdwg.mxu0
      %v6062 = vadd.f32 %v5945, %v6032
      %v6063 = vadd.f32 %v5946, %v6035
      %v6064 = vadd.f32 %v5947, %v6040
      %v6065 = vadd.f32 %v5948, %v6043
      %v6066 = vadd.f32 %v5949, %v6048
      %v6067 = vadd.f32 %v5950, %v6051
      %v6068 = vadd.f32 %v5951, %v6056
      %v6069 = vadd.f32 %v5952, %v6059
      %v6070 = vld [vmem:[%s5421] sm:$0xf]
      %v6071 = vld [vmem:[%s5421 + $0x4] sm:$0x1]
      %v6072 = vld [vmem:[%s5421 + $0x8] sm:$0xf]
      %v6073 = vld [vmem:[%s5421 + $0xc] sm:$0x1]
      %v6074 = vld [vmem:[%s5421 + $0x10] sm:$0xf]
      %v6075 = vld [vmem:[%s5421 + $0x14] sm:$0x1]
      %v6076 = vld [vmem:[%s5421 + $0x18] sm:$0xf]
      %v6077 = vld [vmem:[%s5421 + $0x1c] sm:$0x1]
      %v6078 = vld [vmem:[%s5421 + $0x20] sm:$0xf]
      %v6079 = vld [vmem:[%s5421 + $0x24] sm:$0x1]
      %v6080 = vld [vmem:[%s5421 + $0x28] sm:$0xf]
      %v6081 = vld [vmem:[%s5421 + $0x2c] sm:$0x1]
      %v6082 = vld [vmem:[%s5421 + $0x30] sm:$0xf]
      %v6083 = vld [vmem:[%s5421 + $0x34] sm:$0x1]
      %v6084 = vld [vmem:[%s5421 + $0x38] sm:$0xf]
      %v6085 = vld [vmem:[%s5421 + $0x3c] sm:$0x1]
      %v6087 = vshrl.u32 %v6070, 16
      %v6089 = vrot.slane %v6087, 4
      %v6090 = vshll.u32 %v6070, 16
      %v6092 = vrot.slane %v6090, 5
      %v6093 = vor.u32 %v6089, %v6092
      %v6094 = vrot.slane %v6093, 4
      %v6096 = vshll.u32 %v6071, 16
      %v6098 = vrot.slane %v6096, 5
      %v6099 = vsel %vm3711, %v6094, %v6098
      %v6101 = vshrl.u32 %v6072, 16
      %v6103 = vrot.slane %v6101, 4
      %v6104 = vshll.u32 %v6072, 16
      %v6106 = vrot.slane %v6104, 5
      %v6107 = vor.u32 %v6103, %v6106
      %v6108 = vrot.slane %v6107, 4
      %v6110 = vshll.u32 %v6073, 16
      %v6112 = vrot.slane %v6110, 5
      %v6113 = vsel %vm3711, %v6108, %v6112
      %v6115 = vshrl.u32 %v6074, 16
      %v6117 = vrot.slane %v6115, 4
      %v6118 = vshll.u32 %v6074, 16
      %v6120 = vrot.slane %v6118, 5
      %v6121 = vor.u32 %v6117, %v6120
      %v6122 = vrot.slane %v6121, 4
      %v6124 = vshll.u32 %v6075, 16
      %v6126 = vrot.slane %v6124, 5
      %v6127 = vsel %vm3711, %v6122, %v6126
      %v6129 = vshrl.u32 %v6076, 16
      %v6131 = vrot.slane %v6129, 4
      %v6132 = vshll.u32 %v6076, 16
      %v6134 = vrot.slane %v6132, 5
      %v6135 = vor.u32 %v6131, %v6134
      %v6136 = vrot.slane %v6135, 4
      %v6138 = vshll.u32 %v6077, 16
      %v6140 = vrot.slane %v6138, 5
      %v6141 = vsel %vm3711, %v6136, %v6140
      %v6143 = vshrl.u32 %v6078, 16
      %v6145 = vrot.slane %v6143, 4
      %v6146 = vshll.u32 %v6078, 16
      %v6148 = vrot.slane %v6146, 5
      %v6149 = vor.u32 %v6145, %v6148
      %v6150 = vrot.slane %v6149, 4
      %v6152 = vshll.u32 %v6079, 16
      %v6154 = vrot.slane %v6152, 5
      %v6155 = vsel %vm3711, %v6150, %v6154
      %v6157 = vshrl.u32 %v6080, 16
      %v6159 = vrot.slane %v6157, 4
      %v6160 = vshll.u32 %v6080, 16
      %v6162 = vrot.slane %v6160, 5
      %v6163 = vor.u32 %v6159, %v6162
      %v6164 = vrot.slane %v6163, 4
      %v6166 = vshll.u32 %v6081, 16
      %v6168 = vrot.slane %v6166, 5
      %v6169 = vsel %vm3711, %v6164, %v6168
      %v6171 = vshrl.u32 %v6082, 16
      %v6173 = vrot.slane %v6171, 4
      %v6174 = vshll.u32 %v6082, 16
      %v6176 = vrot.slane %v6174, 5
      %v6177 = vor.u32 %v6173, %v6176
      %v6178 = vrot.slane %v6177, 4
      %v6180 = vshll.u32 %v6083, 16
      %v6182 = vrot.slane %v6180, 5
      %v6183 = vsel %vm3711, %v6178, %v6182
      %v6185 = vshrl.u32 %v6084, 16
      %v6187 = vrot.slane %v6185, 4
      %v6188 = vshll.u32 %v6084, 16
      %v6190 = vrot.slane %v6188, 5
      %v6191 = vor.u32 %v6187, %v6190
      %v6192 = vrot.slane %v6191, 4
      %v6194 = vshll.u32 %v6085, 16
      %v6196 = vrot.slane %v6194, 5
      %v6197 = vsel %vm3711, %v6192, %v6196
      %v6198 = vld [vmem:[%s4 + $0x10] sm:$0xf]
      %v6199 = vunpack.c.l.b16 %v6099
      %v6200 = vunpack.c.l.b16 %v6113
      %v6201 = vunpack.c.l.b16 %v6127
      %v6202 = vunpack.c.l.b16 %v6141
      %v6203 = vunpack.c.l.b16 %v6155
      %v6204 = vunpack.c.l.b16 %v6169
      %v6205 = vunpack.c.l.b16 %v6183
      %v6206 = vunpack.c.l.b16 %v6197
      %v6207 = vpack.c.b16 %v6200, %v6199
      %v6208 = vpack.c.b16 %v6202, %v6201
      %v6209 = vpack.c.b16 %v6204, %v6203
      %v6210 = vpack.c.b16 %v6206, %v6205
      %v6212 = vsel %vm5614, %v6207, 0
      %v6215 = vsel %vm5614, %v6208, 0
      %v6218 = vsel %vm5614, %v6209, 0
      %v6221 = vsel %vm5614, %v6210, 0
      %v6224 = vsel %vm5627, %v6198, 0
      %6226 = vmatprep.subr.bf16.mxu0 0
      %6227 = vmatpush1.bf16.msra.mxu0 0
      %6228 = vmatprep.subr.bf16.mxu0 0
      %6229 = vmatpush1.bf16.msra.mxu0 0
      %6230 = vmatprep.subr.bf16.mxu0 0
      %6231 = vmatpush1.bf16.msra.mxu0 0
      %6232 = vmatprep.subr.bf16.mxu0 0
      %6233 = vmatpush1.bf16.msra.mxu0 0
      %6234 = vmatprep.subr.bf16.mxu0 0
      %6235 = vmatpush1.bf16.msra.mxu0 0
      %6236 = vmatprep.subr.bf16.mxu0 0
      %6237 = vmatpush1.bf16.msra.mxu0 0
      %6238 = vmatprep.subr.bf16.mxu0 0
      %6239 = vmatpush1.bf16.msra.mxu0 0
      %6240 = vmatprep.subr.bf16.mxu0 0
      %6241 = vmatpush1.bf16.msra.mxu0 %v6224
      %6242 = vmatprep.subr.bf16.mxu0 0
      %6243 = vmatpush2.bf16.msra.mxu0 0
      %6244 = vmatprep.subr.bf16.mxu0 0
      %6245 = vmatpush2.bf16.msra.mxu0 0
      %6246 = vmatprep.subr.bf16.mxu0 0
      %6247 = vmatpush2.bf16.msra.mxu0 0
      %6248 = vmatprep.subr.bf16.mxu0 0
      %6249 = vmatpush2.bf16.msra.mxu0 0
      %6250 = vmatprep.subr.bf16.mxu0 0
      %6251 = vmatpush2.bf16.msra.mxu0 0
      %6252 = vmatprep.subr.bf16.mxu0 0
      %6253 = vmatpush2.bf16.msra.mxu0 0
      %6254 = vmatprep.subr.bf16.mxu0 0
      %6255 = vmatpush2.bf16.msra.mxu0 0
      %6256 = vmatprep.subr.bf16.mxu0 0
      %6257 = vmatpush2.bf16.msra.mxu0 0
      %6258 = vmatprep.mubr.bf16.mxu0 0
      %6259 = vmatmul.mubr.bf16.gmra.mxu0 %v6212
      %v6260 = vpop.f32.mrf.mxu0
      %v6261 = vadd.f32 0.0, %v6260
      %v6262 = vpop.f32.mrf.mxu0
      %v6263 = vpop.f32.mrf.mxu0
      %v6264 = vadd.f32 0.0, %v6263
      %v6265 = vpop.f32.mrf.mxu0
      %6266 = vmatprep.mubr.bf16.mxu0 0
      %6267 = vmatmul.mubr.bf16.gmra.mxu0 %v6215
      %v6268 = vpop.f32.mrf.mxu0
      %v6269 = vadd.f32 0.0, %v6268
      %v6270 = vpop.f32.mrf.mxu0
      %v6271 = vpop.f32.mrf.mxu0
      %v6272 = vadd.f32 0.0, %v6271
      %v6273 = vpop.f32.mrf.mxu0
      %6274 = vmatprep.mubr.bf16.mxu0 0
      %6275 = vmatmul.mubr.bf16.gmra.mxu0 %v6218
      %v6276 = vpop.f32.mrf.mxu0
      %v6277 = vadd.f32 0.0, %v6276
      %v6278 = vpop.f32.mrf.mxu0
      %v6279 = vpop.f32.mrf.mxu0
      %v6280 = vadd.f32 0.0, %v6279
      %v6281 = vpop.f32.mrf.mxu0
      %6282 = vmatprep.mubr.bf16.mxu0 0
      %6283 = vmatmul.mubr.bf16.gmra.mxu0 %v6221
      %v6284 = vpop.f32.mrf.mxu0
      %v6285 = vadd.f32 0.0, %v6284
      %v6286 = vpop.f32.mrf.mxu0
      %v6287 = vpop.f32.mrf.mxu0
      %v6288 = vadd.f32 0.0, %v6287
      %v6289 = vpop.f32.mrf.mxu0
      %6290 = vdwg.mxu0
      %v6291 = vadd.f32 %v6062, %v6261
      %v6292 = vadd.f32 %v6063, %v6264
      %v6293 = vadd.f32 %v6064, %v6269
      %v6294 = vadd.f32 %v6065, %v6272
      %v6295 = vadd.f32 %v6066, %v6277
      %v6296 = vadd.f32 %v6067, %v6280
      %v6297 = vadd.f32 %v6068, %v6285
      %v6298 = vadd.f32 %v6069, %v6288
      %v6299 = vld [vmem:[%s5421] sm:$0xe]
      %v6300 = vld [vmem:[%s5421 + $0x8] sm:$0xe]
      %v6301 = vld [vmem:[%s5421 + $0x10] sm:$0xe]
      %v6302 = vld [vmem:[%s5421 + $0x18] sm:$0xe]
      %v6303 = vld [vmem:[%s5421 + $0x20] sm:$0xe]
      %v6304 = vld [vmem:[%s5421 + $0x28] sm:$0xe]
      %v6305 = vld [vmem:[%s5421 + $0x30] sm:$0xe]
      %v6306 = vld [vmem:[%s5421 + $0x38] sm:$0xe]
      %v6323 = vrot.slane %v6299, 5
      %v6324 = vrot.slane %v6323, 4
      %v6325 = vrot.slane %v6071, 5
      %v6326 = vsel %vm4048, %v6324, %v6325
      %v6327 = vrot.slane %v6300, 5
      %v6328 = vrot.slane %v6327, 4
      %v6329 = vrot.slane %v6073, 5
      %v6330 = vsel %vm4048, %v6328, %v6329
      %v6331 = vrot.slane %v6301, 5
      %v6332 = vrot.slane %v6331, 4
      %v6333 = vrot.slane %v6075, 5
      %v6334 = vsel %vm4048, %v6332, %v6333
      %v6335 = vrot.slane %v6302, 5
      %v6336 = vrot.slane %v6335, 4
      %v6337 = vrot.slane %v6077, 5
      %v6338 = vsel %vm4048, %v6336, %v6337
      %v6339 = vrot.slane %v6303, 5
      %v6340 = vrot.slane %v6339, 4
      %v6341 = vrot.slane %v6079, 5
      %v6342 = vsel %vm4048, %v6340, %v6341
      %v6343 = vrot.slane %v6304, 5
      %v6344 = vrot.slane %v6343, 4
      %v6345 = vrot.slane %v6081, 5
      %v6346 = vsel %vm4048, %v6344, %v6345
      %v6347 = vrot.slane %v6305, 5
      %v6348 = vrot.slane %v6347, 4
      %v6349 = vrot.slane %v6083, 5
      %v6350 = vsel %vm4048, %v6348, %v6349
      %v6351 = vrot.slane %v6306, 5
      %v6352 = vrot.slane %v6351, 4
      %v6353 = vrot.slane %v6085, 5
      %v6354 = vsel %vm4048, %v6352, %v6353
      %v6355 = vld [vmem:[%s4 + $0x14] sm:$0xf]
      %v6356 = vunpack.c.l.b16 %v6326
      %v6357 = vunpack.c.l.b16 %v6330
      %v6358 = vunpack.c.l.b16 %v6334
      %v6359 = vunpack.c.l.b16 %v6338
      %v6360 = vunpack.c.l.b16 %v6342
      %v6361 = vunpack.c.l.b16 %v6346
      %v6362 = vunpack.c.l.b16 %v6350
      %v6363 = vunpack.c.l.b16 %v6354
      %v6364 = vpack.c.b16 %v6357, %v6356
      %v6365 = vpack.c.b16 %v6359, %v6358
      %v6366 = vpack.c.b16 %v6361, %v6360
      %v6367 = vpack.c.b16 %v6363, %v6362
      %v6369 = vsel %vm5614, %v6364, 0
      %v6372 = vsel %vm5614, %v6365, 0
      %v6375 = vsel %vm5614, %v6366, 0
      %v6378 = vsel %vm5614, %v6367, 0
      %v6381 = vsel %vm5627, %v6355, 0
      %6383 = vmatprep.subr.bf16.mxu0 0
      %6384 = vmatpush1.bf16.msra.mxu0 0
      %6385 = vmatprep.subr.bf16.mxu0 0
      %6386 = vmatpush1.bf16.msra.mxu0 0
      %6387 = vmatprep.subr.bf16.mxu0 0
      %6388 = vmatpush1.bf16.msra.mxu0 0
      %6389 = vmatprep.subr.bf16.mxu0 0
      %6390 = vmatpush1.bf16.msra.mxu0 0
      %6391 = vmatprep.subr.bf16.mxu0 0
      %6392 = vmatpush1.bf16.msra.mxu0 0
      %6393 = vmatprep.subr.bf16.mxu0 0
      %6394 = vmatpush1.bf16.msra.mxu0 0
      %6395 = vmatprep.subr.bf16.mxu0 0
      %6396 = vmatpush1.bf16.msra.mxu0 0
      %6397 = vmatprep.subr.bf16.mxu0 0
      %6398 = vmatpush1.bf16.msra.mxu0 %v6381
      %6399 = vmatprep.subr.bf16.mxu0 0
      %6400 = vmatpush2.bf16.msra.mxu0 0
      %6401 = vmatprep.subr.bf16.mxu0 0
      %6402 = vmatpush2.bf16.msra.mxu0 0
      %6403 = vmatprep.subr.bf16.mxu0 0
      %6404 = vmatpush2.bf16.msra.mxu0 0
      %6405 = vmatprep.subr.bf16.mxu0 0
      %6406 = vmatpush2.bf16.msra.mxu0 0
      %6407 = vmatprep.subr.bf16.mxu0 0
      %6408 = vmatpush2.bf16.msra.mxu0 0
      %6409 = vmatprep.subr.bf16.mxu0 0
      %6410 = vmatpush2.bf16.msra.mxu0 0
      %6411 = vmatprep.subr.bf16.mxu0 0
      %6412 = vmatpush2.bf16.msra.mxu0 0
      %6413 = vmatprep.subr.bf16.mxu0 0
      %6414 = vmatpush2.bf16.msra.mxu0 0
      %6415 = vmatprep.mubr.bf16.mxu0 0
      %6416 = vmatmul.mubr.bf16.gmra.mxu0 %v6369
      %v6417 = vpop.f32.mrf.mxu0
      %v6418 = vadd.f32 0.0, %v6417
      %v6419 = vpop.f32.mrf.mxu0
      %v6420 = vpop.f32.mrf.mxu0
      %v6421 = vadd.f32 0.0, %v6420
      %v6422 = vpop.f32.mrf.mxu0
      %6423 = vmatprep.mubr.bf16.mxu0 0
      %6424 = vmatmul.mubr.bf16.gmra.mxu0 %v6372
      %v6425 = vpop.f32.mrf.mxu0
      %v6426 = vadd.f32 0.0, %v6425
      %v6427 = vpop.f32.mrf.mxu0
      %v6428 = vpop.f32.mrf.mxu0
      %v6429 = vadd.f32 0.0, %v6428
      %v6430 = vpop.f32.mrf.mxu0
      %6431 = vmatprep.mubr.bf16.mxu0 0
      %6432 = vmatmul.mubr.bf16.gmra.mxu0 %v6375
      %v6433 = vpop.f32.mrf.mxu0
      %v6434 = vadd.f32 0.0, %v6433
      %v6435 = vpop.f32.mrf.mxu0
      %v6436 = vpop.f32.mrf.mxu0
      %v6437 = vadd.f32 0.0, %v6436
      %v6438 = vpop.f32.mrf.mxu0
      %6439 = vmatprep.mubr.bf16.mxu0 0
      %6440 = vmatmul.mubr.bf16.gmra.mxu0 %v6378
      %v6441 = vpop.f32.mrf.mxu0
      %v6442 = vadd.f32 0.0, %v6441
      %v6443 = vpop.f32.mrf.mxu0
      %v6444 = vpop.f32.mrf.mxu0
      %v6445 = vadd.f32 0.0, %v6444
      %v6446 = vpop.f32.mrf.mxu0
      %6447 = vdwg.mxu0
      %v6448 = vadd.f32 %v6291, %v6418
      %v6449 = vadd.f32 %v6292, %v6421
      %v6450 = vadd.f32 %v6293, %v6426
      %v6451 = vadd.f32 %v6294, %v6429
      %v6452 = vadd.f32 %v6295, %v6434
      %v6453 = vadd.f32 %v6296, %v6437
      %v6454 = vadd.f32 %v6297, %v6442
      %v6455 = vadd.f32 %v6298, %v6445
      %s6456 = scalar_lea.vmem [#allocation3], 16
      %v6457 = vld [vmem:[%s6456] sm:$0xf]
      %v6458 = vld [vmem:[%s6456 + $0x8] sm:$0xf]
      %v6459 = vld [vmem:[%s6456 + $0x10] sm:$0xf]
      %v6460 = vld [vmem:[%s6456 + $0x18] sm:$0xf]
      %v6461 = vld [vmem:[%s6456 + $0x20] sm:$0xf]
      %v6462 = vld [vmem:[%s6456 + $0x28] sm:$0xf]
      %v6463 = vld [vmem:[%s6456 + $0x30] sm:$0xf]
      %v6464 = vld [vmem:[%s6456 + $0x38] sm:$0xf]
      %v6465 = vld [vmem:[%s4 + $0x18] sm:$0xf]
      %v6474 = vunpack.c.l.b16 %v6457
      %v6475 = vunpack.c.l.b16 %v6458
      %v6476 = vunpack.c.l.b16 %v6459
      %v6477 = vunpack.c.l.b16 %v6460
      %v6478 = vunpack.c.l.b16 %v6461
      %v6479 = vunpack.c.l.b16 %v6462
      %v6480 = vunpack.c.l.b16 %v6463
      %v6481 = vunpack.c.l.b16 %v6464
      %v6482 = vpack.c.b16 %v6475, %v6474
      %v6483 = vpack.c.b16 %v6477, %v6476
      %v6484 = vpack.c.b16 %v6479, %v6478
      %v6485 = vpack.c.b16 %v6481, %v6480
      %v6487 = vsel %vm5614, %v6482, 0
      %v6490 = vsel %vm5614, %v6483, 0
      %v6493 = vsel %vm5614, %v6484, 0
      %v6496 = vsel %vm5614, %v6485, 0
      %v6499 = vsel %vm5627, %v6465, 0
      %6501 = vmatprep.subr.bf16.mxu0 0
      %6502 = vmatpush1.bf16.msra.mxu0 0
      %6503 = vmatprep.subr.bf16.mxu0 0
      %6504 = vmatpush1.bf16.msra.mxu0 0
      %6505 = vmatprep.subr.bf16.mxu0 0
      %6506 = vmatpush1.bf16.msra.mxu0 0
      %6507 = vmatprep.subr.bf16.mxu0 0
      %6508 = vmatpush1.bf16.msra.mxu0 0
      %6509 = vmatprep.subr.bf16.mxu0 0
      %6510 = vmatpush1.bf16.msra.mxu0 0
      %6511 = vmatprep.subr.bf16.mxu0 0
      %6512 = vmatpush1.bf16.msra.mxu0 0
      %6513 = vmatprep.subr.bf16.mxu0 0
      %6514 = vmatpush1.bf16.msra.mxu0 0
      %6515 = vmatprep.subr.bf16.mxu0 0
      %6516 = vmatpush1.bf16.msra.mxu0 %v6499
      %6517 = vmatprep.subr.bf16.mxu0 0
      %6518 = vmatpush2.bf16.msra.mxu0 0
      %6519 = vmatprep.subr.bf16.mxu0 0
      %6520 = vmatpush2.bf16.msra.mxu0 0
      %6521 = vmatprep.subr.bf16.mxu0 0
      %6522 = vmatpush2.bf16.msra.mxu0 0
      %6523 = vmatprep.subr.bf16.mxu0 0
      %6524 = vmatpush2.bf16.msra.mxu0 0
      %6525 = vmatprep.subr.bf16.mxu0 0
      %6526 = vmatpush2.bf16.msra.mxu0 0
      %6527 = vmatprep.subr.bf16.mxu0 0
      %6528 = vmatpush2.bf16.msra.mxu0 0
      %6529 = vmatprep.subr.bf16.mxu0 0
      %6530 = vmatpush2.bf16.msra.mxu0 0
      %6531 = vmatprep.subr.bf16.mxu0 0
      %6532 = vmatpush2.bf16.msra.mxu0 0
      %6533 = vmatprep.mubr.bf16.mxu0 0
      %6534 = vmatmul.mubr.bf16.gmra.mxu0 %v6487
      %v6535 = vpop.f32.mrf.mxu0
      %v6536 = vadd.f32 0.0, %v6535
      %v6537 = vpop.f32.mrf.mxu0
      %v6538 = vpop.f32.mrf.mxu0
      %v6539 = vadd.f32 0.0, %v6538
      %v6540 = vpop.f32.mrf.mxu0
      %6541 = vmatprep.mubr.bf16.mxu0 0
      %6542 = vmatmul.mubr.bf16.gmra.mxu0 %v6490
      %v6543 = vpop.f32.mrf.mxu0
      %v6544 = vadd.f32 0.0, %v6543
      %v6545 = vpop.f32.mrf.mxu0
      %v6546 = vpop.f32.mrf.mxu0
      %v6547 = vadd.f32 0.0, %v6546
      %v6548 = vpop.f32.mrf.mxu0
      %6549 = vmatprep.mubr.bf16.mxu0 0
      %6550 = vmatmul.mubr.bf16.gmra.mxu0 %v6493
      %v6551 = vpop.f32.mrf.mxu0
      %v6552 = vadd.f32 0.0, %v6551
      %v6553 = vpop.f32.mrf.mxu0
      %v6554 = vpop.f32.mrf.mxu0
      %v6555 = vadd.f32 0.0, %v6554
      %v6556 = vpop.f32.mrf.mxu0
      %6557 = vmatprep.mubr.bf16.mxu0 0
      %6558 = vmatmul.mubr.bf16.gmra.mxu0 %v6496
      %v6559 = vpop.f32.mrf.mxu0
      %v6560 = vadd.f32 0.0, %v6559
      %v6561 = vpop.f32.mrf.mxu0
      %v6562 = vpop.f32.mrf.mxu0
      %v6563 = vadd.f32 0.0, %v6562
      %v6564 = vpop.f32.mrf.mxu0
      %6565 = vdwg.mxu0
      %v6566 = vadd.f32 %v6448, %v6536
      %v6567 = vadd.f32 %v6449, %v6539
      %v6568 = vadd.f32 %v6450, %v6544
      %v6569 = vadd.f32 %v6451, %v6547
      %v6570 = vadd.f32 %v6452, %v6552
      %v6571 = vadd.f32 %v6453, %v6555
      %v6572 = vadd.f32 %v6454, %v6560
      %v6573 = vadd.f32 %v6455, %v6563
      %v6574 = vld [vmem:[%s6456] sm:$0xf]
      %v6575 = vld [vmem:[%s6456 + $0x4] sm:$0x1]
      %v6576 = vld [vmem:[%s6456 + $0x8] sm:$0xf]
      %v6577 = vld [vmem:[%s6456 + $0xc] sm:$0x1]
      %v6578 = vld [vmem:[%s6456 + $0x10] sm:$0xf]
      %v6579 = vld [vmem:[%s6456 + $0x14] sm:$0x1]
      %v6580 = vld [vmem:[%s6456 + $0x18] sm:$0xf]
      %v6581 = vld [vmem:[%s6456 + $0x1c] sm:$0x1]
      %v6582 = vld [vmem:[%s6456 + $0x20] sm:$0xf]
      %v6583 = vld [vmem:[%s6456 + $0x24] sm:$0x1]
      %v6584 = vld [vmem:[%s6456 + $0x28] sm:$0xf]
      %v6585 = vld [vmem:[%s6456 + $0x2c] sm:$0x1]
      %v6586 = vld [vmem:[%s6456 + $0x30] sm:$0xf]
      %v6587 = vld [vmem:[%s6456 + $0x34] sm:$0x1]
      %v6588 = vld [vmem:[%s6456 + $0x38] sm:$0xf]
      %v6589 = vld [vmem:[%s6456 + $0x3c] sm:$0x1]
      %v6591 = vshrl.u32 %v6574, 16
      %v6593 = vrot.slane %v6591, 4
      %v6594 = vshll.u32 %v6574, 16
      %v6596 = vrot.slane %v6594, 5
      %v6597 = vor.u32 %v6593, %v6596
      %v6598 = vrot.slane %v6597, 4
      %v6600 = vshll.u32 %v6575, 16
      %v6602 = vrot.slane %v6600, 5
      %v6603 = vsel %vm3711, %v6598, %v6602
      %v6605 = vshrl.u32 %v6576, 16
      %v6607 = vrot.slane %v6605, 4
      %v6608 = vshll.u32 %v6576, 16
      %v6610 = vrot.slane %v6608, 5
      %v6611 = vor.u32 %v6607, %v6610
      %v6612 = vrot.slane %v6611, 4
      %v6614 = vshll.u32 %v6577, 16
      %v6616 = vrot.slane %v6614, 5
      %v6617 = vsel %vm3711, %v6612, %v6616
      %v6619 = vshrl.u32 %v6578, 16
      %v6621 = vrot.slane %v6619, 4
      %v6622 = vshll.u32 %v6578, 16
      %v6624 = vrot.slane %v6622, 5
      %v6625 = vor.u32 %v6621, %v6624
      %v6626 = vrot.slane %v6625, 4
      %v6628 = vshll.u32 %v6579, 16
      %v6630 = vrot.slane %v6628, 5
      %v6631 = vsel %vm3711, %v6626, %v6630
      %v6633 = vshrl.u32 %v6580, 16
      %v6635 = vrot.slane %v6633, 4
      %v6636 = vshll.u32 %v6580, 16
      %v6638 = vrot.slane %v6636, 5
      %v6639 = vor.u32 %v6635, %v6638
      %v6640 = vrot.slane %v6639, 4
      %v6642 = vshll.u32 %v6581, 16
      %v6644 = vrot.slane %v6642, 5
      %v6645 = vsel %vm3711, %v6640, %v6644
      %v6647 = vshrl.u32 %v6582, 16
      %v6649 = vrot.slane %v6647, 4
      %v6650 = vshll.u32 %v6582, 16
      %v6652 = vrot.slane %v6650, 5
      %v6653 = vor.u32 %v6649, %v6652
      %v6654 = vrot.slane %v6653, 4
      %v6656 = vshll.u32 %v6583, 16
      %v6658 = vrot.slane %v6656, 5
      %v6659 = vsel %vm3711, %v6654, %v6658
      %v6661 = vshrl.u32 %v6584, 16
      %v6663 = vrot.slane %v6661, 4
      %v6664 = vshll.u32 %v6584, 16
      %v6666 = vrot.slane %v6664, 5
      %v6667 = vor.u32 %v6663, %v6666
      %v6668 = vrot.slane %v6667, 4
      %v6670 = vshll.u32 %v6585, 16
      %v6672 = vrot.slane %v6670, 5
      %v6673 = vsel %vm3711, %v6668, %v6672
      %v6675 = vshrl.u32 %v6586, 16
      %v6677 = vrot.slane %v6675, 4
      %v6678 = vshll.u32 %v6586, 16
      %v6680 = vrot.slane %v6678, 5
      %v6681 = vor.u32 %v6677, %v6680
      %v6682 = vrot.slane %v6681, 4
      %v6684 = vshll.u32 %v6587, 16
      %v6686 = vrot.slane %v6684, 5
      %v6687 = vsel %vm3711, %v6682, %v6686
      %v6689 = vshrl.u32 %v6588, 16
      %v6691 = vrot.slane %v6689, 4
      %v6692 = vshll.u32 %v6588, 16
      %v6694 = vrot.slane %v6692, 5
      %v6695 = vor.u32 %v6691, %v6694
      %v6696 = vrot.slane %v6695, 4
      %v6698 = vshll.u32 %v6589, 16
      %v6700 = vrot.slane %v6698, 5
      %v6701 = vsel %vm3711, %v6696, %v6700
      %v6702 = vld [vmem:[%s4 + $0x1c] sm:$0xf]
      %v6703 = vunpack.c.l.b16 %v6603
      %v6704 = vunpack.c.l.b16 %v6617
      %v6705 = vunpack.c.l.b16 %v6631
      %v6706 = vunpack.c.l.b16 %v6645
      %v6707 = vunpack.c.l.b16 %v6659
      %v6708 = vunpack.c.l.b16 %v6673
      %v6709 = vunpack.c.l.b16 %v6687
      %v6710 = vunpack.c.l.b16 %v6701
      %v6711 = vpack.c.b16 %v6704, %v6703
      %v6712 = vpack.c.b16 %v6706, %v6705
      %v6713 = vpack.c.b16 %v6708, %v6707
      %v6714 = vpack.c.b16 %v6710, %v6709
      %v6716 = vsel %vm5614, %v6711, 0
      %v6719 = vsel %vm5614, %v6712, 0
      %v6722 = vsel %vm5614, %v6713, 0
      %v6725 = vsel %vm5614, %v6714, 0
      %v6728 = vsel %vm5627, %v6702, 0
      %6730 = vmatprep.subr.bf16.mxu0 0
      %6731 = vmatpush1.bf16.msra.mxu0 0
      %6732 = vmatprep.subr.bf16.mxu0 0
      %6733 = vmatpush1.bf16.msra.mxu0 0
      %6734 = vmatprep.subr.bf16.mxu0 0
      %6735 = vmatpush1.bf16.msra.mxu0 0
      %6736 = vmatprep.subr.bf16.mxu0 0
      %6737 = vmatpush1.bf16.msra.mxu0 0
      %6738 = vmatprep.subr.bf16.mxu0 0
      %6739 = vmatpush1.bf16.msra.mxu0 0
      %6740 = vmatprep.subr.bf16.mxu0 0
      %6741 = vmatpush1.bf16.msra.mxu0 0
      %6742 = vmatprep.subr.bf16.mxu0 0
      %6743 = vmatpush1.bf16.msra.mxu0 0
      %6744 = vmatprep.subr.bf16.mxu0 0
      %6745 = vmatpush1.bf16.msra.mxu0 %v6728
      %6746 = vmatprep.subr.bf16.mxu0 0
      %6747 = vmatpush2.bf16.msra.mxu0 0
      %6748 = vmatprep.subr.bf16.mxu0 0
      %6749 = vmatpush2.bf16.msra.mxu0 0
      %6750 = vmatprep.subr.bf16.mxu0 0
      %6751 = vmatpush2.bf16.msra.mxu0 0
      %6752 = vmatprep.subr.bf16.mxu0 0
      %6753 = vmatpush2.bf16.msra.mxu0 0
      %6754 = vmatprep.subr.bf16.mxu0 0
      %6755 = vmatpush2.bf16.msra.mxu0 0
      %6756 = vmatprep.subr.bf16.mxu0 0
      %6757 = vmatpush2.bf16.msra.mxu0 0
      %6758 = vmatprep.subr.bf16.mxu0 0
      %6759 = vmatpush2.bf16.msra.mxu0 0
      %6760 = vmatprep.subr.bf16.mxu0 0
      %6761 = vmatpush2.bf16.msra.mxu0 0
      %6762 = vmatprep.mubr.bf16.mxu0 0
      %6763 = vmatmul.mubr.bf16.gmra.mxu0 %v6716
      %v6764 = vpop.f32.mrf.mxu0
      %v6765 = vadd.f32 0.0, %v6764
      %v6766 = vpop.f32.mrf.mxu0
      %v6767 = vpop.f32.mrf.mxu0
      %v6768 = vadd.f32 0.0, %v6767
      %v6769 = vpop.f32.mrf.mxu0
      %6770 = vmatprep.mubr.bf16.mxu0 0
      %6771 = vmatmul.mubr.bf16.gmra.mxu0 %v6719
      %v6772 = vpop.f32.mrf.mxu0
      %v6773 = vadd.f32 0.0, %v6772
      %v6774 = vpop.f32.mrf.mxu0
      %v6775 = vpop.f32.mrf.mxu0
      %v6776 = vadd.f32 0.0, %v6775
      %v6777 = vpop.f32.mrf.mxu0
      %6778 = vmatprep.mubr.bf16.mxu0 0
      %6779 = vmatmul.mubr.bf16.gmra.mxu0 %v6722
      %v6780 = vpop.f32.mrf.mxu0
      %v6781 = vadd.f32 0.0, %v6780
      %v6782 = vpop.f32.mrf.mxu0
      %v6783 = vpop.f32.mrf.mxu0
      %v6784 = vadd.f32 0.0, %v6783
      %v6785 = vpop.f32.mrf.mxu0
      %6786 = vmatprep.mubr.bf16.mxu0 0
      %6787 = vmatmul.mubr.bf16.gmra.mxu0 %v6725
      %v6788 = vpop.f32.mrf.mxu0
      %v6789 = vadd.f32 0.0, %v6788
      %v6790 = vpop.f32.mrf.mxu0
      %v6791 = vpop.f32.mrf.mxu0
      %v6792 = vadd.f32 0.0, %v6791
      %v6793 = vpop.f32.mrf.mxu0
      %6794 = vdwg.mxu0
      %v6795 = vadd.f32 %v6566, %v6765
      %v6796 = vadd.f32 %v6567, %v6768
      %v6797 = vadd.f32 %v6568, %v6773
      %v6798 = vadd.f32 %v6569, %v6776
      %v6799 = vadd.f32 %v6570, %v6781
      %v6800 = vadd.f32 %v6571, %v6784
      %v6801 = vadd.f32 %v6572, %v6789
      %v6802 = vadd.f32 %v6573, %v6792
      %v6803 = vld [vmem:[%s6456] sm:$0xe]
      %v6804 = vld [vmem:[%s6456 + $0x8] sm:$0xe]
      %v6805 = vld [vmem:[%s6456 + $0x10] sm:$0xe]
      %v6806 = vld [vmem:[%s6456 + $0x18] sm:$0xe]
      %v6807 = vld [vmem:[%s6456 + $0x20] sm:$0xe]
      %v6808 = vld [vmem:[%s6456 + $0x28] sm:$0xe]
      %v6809 = vld [vmem:[%s6456 + $0x30] sm:$0xe]
      %v6810 = vld [vmem:[%s6456 + $0x38] sm:$0xe]
      %v6827 = vrot.slane %v6803, 5
      %v6828 = vrot.slane %v6827, 4
      %v6829 = vrot.slane %v6575, 5
      %v6830 = vsel %vm4048, %v6828, %v6829
      %v6831 = vrot.slane %v6804, 5
      %v6832 = vrot.slane %v6831, 4
      %v6833 = vrot.slane %v6577, 5
      %v6834 = vsel %vm4048, %v6832, %v6833
      %v6835 = vrot.slane %v6805, 5
      %v6836 = vrot.slane %v6835, 4
      %v6837 = vrot.slane %v6579, 5
      %v6838 = vsel %vm4048, %v6836, %v6837
      %v6839 = vrot.slane %v6806, 5
      %v6840 = vrot.slane %v6839, 4
      %v6841 = vrot.slane %v6581, 5
      %v6842 = vsel %vm4048, %v6840, %v6841
      %v6843 = vrot.slane %v6807, 5
      %v6844 = vrot.slane %v6843, 4
      %v6845 = vrot.slane %v6583, 5
      %v6846 = vsel %vm4048, %v6844, %v6845
      %v6847 = vrot.slane %v6808, 5
      %v6848 = vrot.slane %v6847, 4
      %v6849 = vrot.slane %v6585, 5
      %v6850 = vsel %vm4048, %v6848, %v6849
      %v6851 = vrot.slane %v6809, 5
      %v6852 = vrot.slane %v6851, 4
      %v6853 = vrot.slane %v6587, 5
      %v6854 = vsel %vm4048, %v6852, %v6853
      %v6855 = vrot.slane %v6810, 5
      %v6856 = vrot.slane %v6855, 4
      %v6857 = vrot.slane %v6589, 5
      %v6858 = vsel %vm4048, %v6856, %v6857
      %v6859 = vld [vmem:[%s4 + $0x20] sm:$0xf]
      %v6860 = vunpack.c.l.b16 %v6830
      %v6861 = vunpack.c.l.b16 %v6834
      %v6862 = vunpack.c.l.b16 %v6838
      %v6863 = vunpack.c.l.b16 %v6842
      %v6864 = vunpack.c.l.b16 %v6846
      %v6865 = vunpack.c.l.b16 %v6850
      %v6866 = vunpack.c.l.b16 %v6854
      %v6867 = vunpack.c.l.b16 %v6858
      %v6868 = vpack.c.b16 %v6861, %v6860
      %v6869 = vpack.c.b16 %v6863, %v6862
      %v6870 = vpack.c.b16 %v6865, %v6864
      %v6871 = vpack.c.b16 %v6867, %v6866
      %v6873 = vsel %vm5614, %v6868, 0
      %v6876 = vsel %vm5614, %v6869, 0
      %v6879 = vsel %vm5614, %v6870, 0
      %v6882 = vsel %vm5614, %v6871, 0
      %v6885 = vsel %vm5627, %v6859, 0
      %6887 = vmatprep.subr.bf16.mxu0 0
      %6888 = vmatpush1.bf16.msra.mxu0 0
      %6889 = vmatprep.subr.bf16.mxu0 0
      %6890 = vmatpush1.bf16.msra.mxu0 0
      %6891 = vmatprep.subr.bf16.mxu0 0
      %6892 = vmatpush1.bf16.msra.mxu0 0
      %6893 = vmatprep.subr.bf16.mxu0 0
      %6894 = vmatpush1.bf16.msra.mxu0 0
      %6895 = vmatprep.subr.bf16.mxu0 0
      %6896 = vmatpush1.bf16.msra.mxu0 0
      %6897 = vmatprep.subr.bf16.mxu0 0
      %6898 = vmatpush1.bf16.msra.mxu0 0
      %6899 = vmatprep.subr.bf16.mxu0 0
      %6900 = vmatpush1.bf16.msra.mxu0 0
      %6901 = vmatprep.subr.bf16.mxu0 0
      %6902 = vmatpush1.bf16.msra.mxu0 %v6885
      %6903 = vmatprep.subr.bf16.mxu0 0
      %6904 = vmatpush2.bf16.msra.mxu0 0
      %6905 = vmatprep.subr.bf16.mxu0 0
      %6906 = vmatpush2.bf16.msra.mxu0 0
      %6907 = vmatprep.subr.bf16.mxu0 0
      %6908 = vmatpush2.bf16.msra.mxu0 0
      %6909 = vmatprep.subr.bf16.mxu0 0
      %6910 = vmatpush2.bf16.msra.mxu0 0
      %6911 = vmatprep.subr.bf16.mxu0 0
      %6912 = vmatpush2.bf16.msra.mxu0 0
      %6913 = vmatprep.subr.bf16.mxu0 0
      %6914 = vmatpush2.bf16.msra.mxu0 0
      %6915 = vmatprep.subr.bf16.mxu0 0
      %6916 = vmatpush2.bf16.msra.mxu0 0
      %6917 = vmatprep.subr.bf16.mxu0 0
      %6918 = vmatpush2.bf16.msra.mxu0 0
      %6919 = vmatprep.mubr.bf16.mxu0 0
      %6920 = vmatmul.mubr.bf16.gmra.mxu0 %v6873
      %v6921 = vpop.f32.mrf.mxu0
      %v6922 = vadd.f32 0.0, %v6921
      %v6923 = vpop.f32.mrf.mxu0
      %v6924 = vpop.f32.mrf.mxu0
      %v6925 = vadd.f32 0.0, %v6924
      %v6926 = vpop.f32.mrf.mxu0
      %6927 = vmatprep.mubr.bf16.mxu0 0
      %6928 = vmatmul.mubr.bf16.gmra.mxu0 %v6876
      %v6929 = vpop.f32.mrf.mxu0
      %v6930 = vadd.f32 0.0, %v6929
      %v6931 = vpop.f32.mrf.mxu0
      %v6932 = vpop.f32.mrf.mxu0
      %v6933 = vadd.f32 0.0, %v6932
      %v6934 = vpop.f32.mrf.mxu0
      %6935 = vmatprep.mubr.bf16.mxu0 0
      %6936 = vmatmul.mubr.bf16.gmra.mxu0 %v6879
      %v6937 = vpop.f32.mrf.mxu0
      %v6938 = vadd.f32 0.0, %v6937
      %v6939 = vpop.f32.mrf.mxu0
      %v6940 = vpop.f32.mrf.mxu0
      %v6941 = vadd.f32 0.0, %v6940
      %v6942 = vpop.f32.mrf.mxu0
      %6943 = vmatprep.mubr.bf16.mxu0 0
      %6944 = vmatmul.mubr.bf16.gmra.mxu0 %v6882
      %v6945 = vpop.f32.mrf.mxu0
      %v6946 = vadd.f32 0.0, %v6945
      %v6947 = vpop.f32.mrf.mxu0
      %v6948 = vpop.f32.mrf.mxu0
      %v6949 = vadd.f32 0.0, %v6948
      %v6950 = vpop.f32.mrf.mxu0
      %6951 = vdwg.mxu0
      %v6952 = vadd.f32 %v6795, %v6922
      %v6953 = vadd.f32 %v6796, %v6925
      %v6954 = vadd.f32 %v6797, %v6930
      %v6955 = vadd.f32 %v6798, %v6933
      %v6956 = vadd.f32 %v6799, %v6938
      %v6957 = vadd.f32 %v6800, %v6941
      %v6958 = vadd.f32 %v6801, %v6946
      %v6959 = vadd.f32 %v6802, %v6949
      %v6960 = vld [vmem:[%s5] sm:$0x1]
      %v6962 = vlaneseq
      %v6963 = vshrl.u32 %v6962, 7
      %v6964 = vsub.s32 0, %v6963
      %v6965 = vrot.slane %v6960, %v6964
      %v6967 = vmul.f32 %v6952, %v6965
      %v6968 = vmul.f32 %v6953, %v6965
      %v6969 = vmul.f32 %v6954, %v6965
      %v6970 = vmul.f32 %v6955, %v6965
      %v6971 = vmul.f32 %v6956, %v6965
      %v6972 = vmul.f32 %v6957, %v6965
      %v6973 = vmul.f32 %v6958, %v6965
      %v6974 = vmul.f32 %v6959, %v6965
      %v6975 = vld [vmem:[%s6] sm:$0x1]
      %v6977 = vlaneseq
      %v6978 = vshrl.u32 %v6977, 7
      %v6979 = vsub.s32 0, %v6978
      %v6980 = vrot.slane %v6975, %v6979
      %v6982 = vadd.f32 %v6967, %v6980
      %v6983 = vadd.f32 %v6968, %v6980
      %v6984 = vadd.f32 %v6969, %v6980
      %v6985 = vadd.f32 %v6970, %v6980
      %v6986 = vadd.f32 %v6971, %v6980
      %v6987 = vadd.f32 %v6972, %v6980
      %v6988 = vadd.f32 %v6973, %v6980
      %v6989 = vadd.f32 %v6974, %v6980
      %v6990 = vmax.f32 %v6982, 0.0
      %v6991 = vmax.f32 %v6983, 0.0
      %v6992 = vmax.f32 %v6984, 0.0
      %v6993 = vmax.f32 %v6985, 0.0
      %v6994 = vmax.f32 %v6986, 0.0
      %v6995 = vmax.f32 %v6987, 0.0
      %v6996 = vmax.f32 %v6988, 0.0
      %v6997 = vmax.f32 %v6989, 0.0
      %6998 = vst.msk [vmem:[%s278] sm:$0xff] %vm5614, %v6990
      %6999 = vst.msk [vmem:[%s278 + $0x8] sm:$0xff] %vm5614, %v6991
      %7000 = vst.msk [vmem:[%s278 + $0x10] sm:$0xff] %vm5614, %v6992
      %7001 = vst.msk [vmem:[%s278 + $0x18] sm:$0xff] %vm5614, %v6993
      %7002 = vst.msk [vmem:[%s278 + $0x20] sm:$0xff] %vm5614, %v6994
      %7003 = vst.msk [vmem:[%s278 + $0x28] sm:$0xff] %vm5614, %v6995
      %7004 = vst.msk [vmem:[%s278 + $0x30] sm:$0xff] %vm5614, %v6996
      %7005 = vst.msk [vmem:[%s278 + $0x38] sm:$0xff] %vm5614, %v6997
      %p7006 = scmp.lt.s32.totalorder %s18, 1
      %s7007 = scalar_select %p7006, %s18, 1
      %s7008 = smul.addr %s7007, 8
      %s7009 = smul.addr %s7008, 8
      %s7010 = scalar_lea.vmem %s7, %s7009
      // Predicated region
      $region49: #{down_forward.1} parent=47 // pred_check
        %p7011 = pneg %p188
      $region50: #{down_forward.1} parent=47 // pred_check_branch
        %7013 = sbr.rel (%p7011) target = $region52
      $region51: #{down_forward.1} parent=47 // pred_region
        _
      $region52: #{down_forward.1} parent=47 // pred_fallthru
        _
    $region48: #{down_forward.1} parent=5 // pred_fallthru
      _
    %p7014 = scmp.le.s32.totalorder 2, %s13
    // Predicated region
    $region53: #{down_forward.1} parent=5 // pred_check
      %p7015 = pneg %p7014
    $region54: #{down_forward.1} parent=5 // pred_check_branch
      %7017 = sbr.rel (%p7015) target = $region56
    $region55: #{down_forward.1} parent=5 // pred_region
      %s7018 = ssub.s32 %s13, 2
      // Predicated region
      $region57: #{down_forward.1} parent=55 // pred_check
        %p7019 = pneg %p194
      $region58: #{down_forward.1} parent=55 // pred_check_branch
        %7021 = sbr.rel (%p7019) target = $region60
      $region59: #{down_forward.1} parent=55 // pred_region
        %p7022 = scmp.lt.s32.totalorder %s19, 1
        %s7023 = scalar_select %p7022, %s19, 1
        %s7024 = smul.addr %s7023, 8
        %s7025 = smul.addr %s7024, 8
        %s7026 = scalar_lea.vmem %s7, %s7025
      $region60: #{down_forward.1} parent=55 // pred_fallthru
        _
    $region56: #{down_forward.1} parent=5 // pred_fallthru
      _
  $region6: #{down_forward.1} parent=0 // loop_footer
    %s17 = sadd.s32 1, %s13
  $region7: #{down_forward.1} parent=0 // loop_footer_branch
    %12 = sbr.rel target = $region3
  $region8: #{down_forward.1} parent=0 // loop_exit
    _

</llo_original>
